<compile_context>
chip_gen: v6e
topology: v6e:2x2x1
jax: 0.10.0
libtpu: 0.0.40
codegen_flags: <defaults>
</compile_context>

<pallas_src>
import functools

import jax
import jax.numpy as jnp
from jax import lax
from jax.experimental import pallas as pl
from jax.experimental.pallas import tpu as pltpu


def _round_up(x, m):
    return ((x + m - 1) // m) * m


_VMEM = pl.BlockSpec(memory_space=pltpu.MemorySpace.VMEM)


def _vmem_limit_bytes():
    """~3/4 of physical VMEM (96 MiB on v5e/v6e, 48 MiB on v7x)."""
    try:
        cap = int(pltpu.get_tpu_info().vmem_capacity_bytes)
    except Exception:
        cap = 64 * 1024 * 1024
    return int(min(cap * 3 // 4, 112 * 1024 * 1024))


# ----------------------------------------------------------------------------
# Fused forward kernel: all layers + vnode updates + pool + head in one call.
# ----------------------------------------------------------------------------
def _fused_forward_kernel(adj_ref, h0_ref, psum_ref, psumT_ref, invcnt_ref,
                          w1_ref, b1_ref, w2_ref, b2_ref, wv_ref, bv_ref,
                          wout_ref, bout_ref, out_ref, *, layers, k, eps):
    f32 = jnp.float32
    bf16 = jnp.bfloat16
    n = adj_ref.shape[0]          # padded node count
    g = psum_ref.shape[0]         # padded graph count
    hid = h0_ref.shape[1]         # padded hidden

    adj = adj_ref[...]            # bf16 [N, N] 0/1
    psum = psum_ref[...]          # bf16 [G, N] one-hot (sum pooling)
    psum_t = psumT_ref[...]       # bf16 [N, G] (vnode broadcast)
    inv_cnt = invcnt_ref[...]     # f32  [G, 1]

    # diagonal mask built in-kernel (boolean only, no f32 N^2 temporaries)
    rows = lax.broadcasted_iota(jnp.int32, (n, n), 0)
    cols = lax.broadcasted_iota(jnp.int32, (n, n), 1)
    diag = rows == cols
    diag_val = jnp.asarray(1.0 + eps, dtype=bf16)

    h = h0_ref[...]                                  # bf16 [N, hid]
    # v0 is a zeros-initialized parameter -> initialize in-kernel, skip its
    # layer-0 broadcast matmul entirely.
    v = jnp.zeros((g, hid), dtype=bf16)              # bf16 [G, hid]

    # incremental k-hop reachability (make_multihop_edges)
    reach = adj                   # union of <= current-hop reachability (0/1)
    power = adj                   # exactly-current-hop frontier (0/1)

    for layer in range(layers):
        # layer uses k_hop = min(layer + 1, k): extend reach by one hop.
        if 1 <= layer < k:
            power = (jnp.dot(power, adj, preferred_element_type=f32)
                     > 0.0).astype(bf16)
            reach = jnp.maximum(reach, power)        # union of 0/1 masks
        a_hat = jnp.where(diag, diag_val, reach)     # bf16 [N, N]

        # GIN aggregation on the MXU (+ virtual-node broadcast for layer >= 1)
        agg = jnp.dot(a_hat, h, preferred_element_type=f32)       # f32 [N,hid]
        if layer > 0:
            agg = agg + jnp.dot(psum_t, v, preferred_element_type=f32)

        # 2-layer GIN MLP (BN folded to identity, dropout = identity)
        h1 = jnp.dot(agg.astype(bf16), w1_ref[layer],
                     preferred_element_type=f32)
        h1 = jnp.maximum(h1 + b1_ref[layer], 0.0).astype(bf16)
        h2 = jnp.dot(h1, w2_ref[layer], preferred_element_type=f32)
        h = jnp.maximum(h2 + b2_ref[layer], 0.0).astype(bf16)

        # virtual-node aggregation on every layer except the last
        if layer < layers - 1:
            pooled = (jnp.dot(psum, h, preferred_element_type=f32)
                      + v.astype(f32))
            vn = jnp.dot(pooled.astype(bf16), wv_ref[layer],
                         preferred_element_type=f32)
            v = jnp.maximum(vn + bv_ref[layer], 0.0).astype(bf16)

    # GlobalPool(mean) + Linear(hidden, num_tasks); lane-dense (padded) store.
    pooled_mean = jnp.dot(psum, h, preferred_element_type=f32) * inv_cnt
    out = jnp.dot(pooled_mean.astype(bf16), wout_ref[...],
                  preferred_element_type=f32)
    out_ref[...] = out + bout_ref[...]


# ----------------------------------------------------------------------------
# Model (forward pass only, eval mode)
# ----------------------------------------------------------------------------
class PallasModel:
    def __init__(self, hidden=32, layers=3, k=3, num_tasks=8,
                 num_atom_types=10, max_degree=8, seed=0):
        self.hidden = hidden
        self.layers = layers
        self.k = k
        self.num_tasks = num_tasks
        self.eps = 0.1

        # lane-dense padded sizes (zero padding is exact for the real slice)
        self.hid_pad = _round_up(hidden, 128)
        self.out_pad = _round_up(num_tasks, 128)
        hp = self.hid_pad

        key = jax.random.PRNGKey(seed)
        ks = jax.random.split(key, 4 * layers + 5)
        s = 0.1

        def nrm(k_, shape):
            return s * jax.random.normal(k_, shape, dtype=jnp.float32)

        def pad_w(w):
            return jnp.pad(w, ((0, hp - w.shape[0]), (0, hp - w.shape[1])))

        # OGBMolEmbedding: atom-type embedding + degree embedding (glue gathers)
        self.atom_emb = nrm(ks[0], (num_atom_types, hidden))
        self.deg_emb = nrm(ks[1], (max_degree + 1, hidden))
        # v0 (virtual-node init) is zeros at init -> folded into the kernel.

        # per-layer GIN MLP params + virtual-node MLP params, stacked, padded,
        # cast to bf16 for the MXU (accumulation stays f32 in-kernel).
        w1, w2, wv = [], [], []
        idx = 2
        for _ in range(layers):
            w1.append(pad_w(nrm(ks[idx], (hidden, hidden)))); idx += 1
            w2.append(pad_w(nrm(ks[idx], (hidden, hidden)))); idx += 1
            wv.append(pad_w(nrm(ks[idx], (hidden, hidden)))); idx += 1
        self.w1s = jnp.stack(w1).astype(jnp.bfloat16)  # [L, hid_pad, hid_pad]
        self.w2s = jnp.stack(w2).astype(jnp.bfloat16)
        self.wvs = jnp.stack(wv).astype(jnp.bfloat16)
        zb = jnp.zeros((layers, 1, hp), jnp.float32)    # biases stay f32
        self.b1s, self.b2s, self.bvs = zb, zb, zb

        # aggregate head: Linear(hidden, num_tasks), padded lane-dense, bf16
        self.wout_p = jnp.pad(nrm(ks[idx], (hidden, num_tasks)),
                              ((0, hp - hidden),
                               (0, self.out_pad - num_tasks))
                              ).astype(jnp.bfloat16)
        self.bout_p = jnp.zeros((1, self.out_pad), jnp.float32)

    def forward(self, atom_idx, adj, batch, num_graphs):
        n = atom_idx.shape[0]
        hid = self.hidden
        hp, op = self.hid_pad, self.out_pad
        n_pad = _round_up(n, 128)
        g_pad = _round_up(num_graphs, 8)

        # make_degree + OGBMolEmbedding (glue: embedding table gathers)
        degree = jnp.clip(adj.sum(axis=1).astype(jnp.int32), 0,
                          self.deg_emb.shape[0] - 1)
        h0 = self.atom_emb[atom_idx] + self.deg_emb[degree]       # [N, hid]

        # zero-pad to lane-dense shapes (exact for the real slice), cast bf16
        adj_p = jnp.pad(adj.astype(jnp.float32),
                        ((0, n_pad - n), (0, n_pad - n))
                        ).astype(jnp.bfloat16)
        h0_p = jnp.pad(h0, ((0, n_pad - n), (0, hp - hid))
                       ).astype(jnp.bfloat16)

        onehot = jax.nn.one_hot(batch, num_graphs, dtype=jnp.float32).T  # [G,N]
        psum_f32 = jnp.pad(onehot, ((0, g_pad - num_graphs), (0, n_pad - n)))
        counts = psum_f32.sum(axis=1, keepdims=True)
        inv_cnt = 1.0 / jnp.maximum(counts, 1.0)                   # [G_pad, 1]
        psum_p = psum_f32.astype(jnp.bfloat16)
        psumT_p = psum_p.T

        kernel = functools.partial(_fused_forward_kernel,
                                   layers=self.layers, k=self.k, eps=self.eps)

        # advisory cost estimate for the XLA scheduler (bf16 inputs, f32 acc)
        L = self.layers
        khop_updates = sum(1 for l in range(L) if 1 <= l < self.k)
        flops = (khop_updates * 2 * n_pad ** 3
                 + L * (2 * n_pad * n_pad * hp + 4 * n_pad * hp * hp)
                 + (L - 1) * (2 * n_pad * g_pad * hp
                              + 2 * g_pad * n_pad * hp + 2 * g_pad * hp * hp)
                 + 2 * g_pad * n_pad * hp + 2 * g_pad * hp * op)
        bytes_accessed = (2 * (n_pad * n_pad + n_pad * hp + 2 * g_pad * n_pad
                               + 3 * L * hp * hp + hp * op)       # bf16 inputs
                          + 4 * (g_pad + 3 * L * hp + op           # f32 biases
                                 + g_pad * op))                    # f32 output

        out_p = pl.pallas_call(
            kernel,
            out_shape=jax.ShapeDtypeStruct((g_pad, op), jnp.float32),
            in_specs=[_VMEM] * 13,
            out_specs=_VMEM,
            compiler_params=pltpu.CompilerParams(
                vmem_limit_bytes=_vmem_limit_bytes()),
            cost_estimate=pl.CostEstimate(flops=int(flops),
                                          transcendentals=0,
                                          bytes_accessed=int(bytes_accessed)),
        )(adj_p, h0_p, psum_p, psumT_p, inv_cnt,
          self.w1s, self.b1s, self.w2s, self.b2s, self.wvs, self.bvs,
          self.wout_p, self.bout_p)

        # eval mode: no division by config.T
        return out_p[:num_graphs, :self.num_tasks]


# ----------------------------------------------------------------------------
# Demo
# ----------------------------------------------------------------------------
if __name__ == "__main__":
    key = jax.random.PRNGKey(0)
    num_graphs = 2
    nodes_per_graph = 8
    N = num_graphs * nodes_per_graph
    hidden = 32
    num_tasks = 8

    # deterministic synthetic batched graph: two 8-node rings
    atom_idx = jax.random.randint(key, (N,), 0, 10)
    batch = jnp.repeat(jnp.arange(num_graphs), nodes_per_graph)

    adj = jnp.zeros((N, N), dtype=jnp.float32)
    for g in range(num_graphs):
        base = g * nodes_per_graph
        for i in range(nodes_per_graph):
            a = base + i
            b = base + (i + 1) % nodes_per_graph
            adj = adj.at[a, b].set(1.0).at[b, a].set(1.0)

    model = PallasModel(hidden=hidden, layers=3, k=3, num_tasks=num_tasks,
                        seed=0)
    out = model.forward(atom_idx, adj, batch, num_graphs)
    out = jax.block_until_ready(out)
    assert out.shape == (num_graphs, num_tasks)
    assert jnp.all(jnp.isfinite(out))
    print("KERNEL_OK")
</pallas_src>

<mosaic_0001>
module attributes {stable_mosaic.version = 11 : i64} {
  func.func @_fused_forward_kernel(%arg0: memref<128x128xbf16, #tpu.memory_space<vmem>>, %arg1: memref<128x128xbf16, #tpu.memory_space<vmem>>, %arg2: memref<8x128xbf16, #tpu.memory_space<vmem>>, %arg3: memref<128x8xbf16, #tpu.memory_space<vmem>>, %arg4: memref<8x1xf32, #tpu.memory_space<vmem>>, %arg5: memref<3x128x128xbf16, #tpu.memory_space<vmem>>, %arg6: memref<3x1x128xf32, #tpu.memory_space<vmem>>, %arg7: memref<3x128x128xbf16, #tpu.memory_space<vmem>>, %arg8: memref<3x1x128xf32, #tpu.memory_space<vmem>>, %arg9: memref<3x128x128xbf16, #tpu.memory_space<vmem>>, %arg10: memref<3x1x128xf32, #tpu.memory_space<vmem>>, %arg11: memref<128x128xbf16, #tpu.memory_space<vmem>>, %arg12: memref<1x128xf32, #tpu.memory_space<vmem>>, %arg13: memref<8x128xf32, #tpu.memory_space<vmem>>) attributes {dimension_semantics = [], scalar_prefetch = 0 : i64, scratch_operands = 0 : i64, tpu.core_type = #tpu.core_type<tc>} {
    %c0 = arith.constant 0 : index
    %c0_0 = arith.constant 0 : index
    %0 = vector.load %arg0[%c0, %c0_0] : memref<128x128xbf16, #tpu.memory_space<vmem>>, vector<128x128xbf16>
    %c0_1 = arith.constant 0 : index
    %c0_2 = arith.constant 0 : index
    %1 = vector.load %arg2[%c0_1, %c0_2] : memref<8x128xbf16, #tpu.memory_space<vmem>>, vector<8x128xbf16>
    %c0_3 = arith.constant 0 : index
    %c0_4 = arith.constant 0 : index
    %2 = vector.load %arg3[%c0_3, %c0_4] : memref<128x8xbf16, #tpu.memory_space<vmem>>, vector<128x8xbf16>
    %c0_5 = arith.constant 0 : index
    %c0_6 = arith.constant 0 : index
    %3 = vector.load %arg4[%c0_5, %c0_6] : memref<8x1xf32, #tpu.memory_space<vmem>>, vector<8x1xf32>
    %4 = tpu.iota {dimensions = array<i32: 0>} : vector<128x128xi32>
    %5 = tpu.iota {dimensions = array<i32: 1>} : vector<128x128xi32>
    %6 = arith.cmpi eq, %4, %5 : vector<128x128xi32>
    %c0_7 = arith.constant 0 : index
    %c0_8 = arith.constant 0 : index
    %7 = vector.load %arg1[%c0_7, %c0_8] : memref<128x128xbf16, #tpu.memory_space<vmem>>, vector<128x128xbf16>
    %cst = arith.constant 0.000000e+00 : bf16
    %8 = vector.broadcast %cst : bf16 to vector<8x128xbf16>
    %cst_9 = arith.constant 1.101560e+00 : bf16
    %9 = vector.broadcast %cst_9 : bf16 to vector<128x128xbf16>
    %10 = arith.select %6, %9, %0 : vector<128x128xi1>, vector<128x128xbf16>
    %cst_10 = arith.constant dense<0.000000e+00> : vector<128x128xf32>
    %11 = tpu.matmul %10, %7, %cst_10 {dimension_numbers = #tpu.dot_dimension_numbers<[1], [0], [0], [1], [0, 0, 1, 1], [], []>} : vector<128x128xbf16>, vector<128x128xbf16>, vector<128x128xf32> -> vector<128x128xf32>
    %12 = arith.truncf %11 : vector<128x128xf32> to vector<128x128xbf16>
    %c0_11 = arith.constant 0 : index
    %c0_12 = arith.constant 0 : index
    %c0_13 = arith.constant 0 : index
    %13 = vector.load %arg5[%c0_11, %c0_12, %c0_13] : memref<3x128x128xbf16, #tpu.memory_space<vmem>>, vector<1x128x128xbf16>
    %14 = vector.shape_cast %13 : vector<1x128x128xbf16> to vector<128x128xbf16>
    %cst_14 = arith.constant dense<0.000000e+00> : vector<128x128xf32>
    %15 = tpu.matmul %12, %14, %cst_14 {dimension_numbers = #tpu.dot_dimension_numbers<[1], [0], [0], [1], [0, 0, 1, 1], [], []>} : vector<128x128xbf16>, vector<128x128xbf16>, vector<128x128xf32> -> vector<128x128xf32>
    %c0_15 = arith.constant 0 : index
    %c0_16 = arith.constant 0 : index
    %c0_17 = arith.constant 0 : index
    %16 = vector.load %arg6[%c0_15, %c0_16, %c0_17] : memref<3x1x128xf32, #tpu.memory_space<vmem>>, vector<1x1x128xf32>
    %17 = vector.shape_cast %16 : vector<1x1x128xf32> to vector<1x128xf32>
    %18 = vector.broadcast %17 : vector<1x128xf32> to vector<128x128xf32>
    %19 = arith.addf %15, %18 : vector<128x128xf32>
    %cst_18 = arith.constant 0.000000e+00 : f32
    %20 = vector.broadcast %cst_18 : f32 to vector<128x128xf32>
    %21 = arith.maximumf %19, %20 : vector<128x128xf32>
    %22 = arith.truncf %21 : vector<128x128xf32> to vector<128x128xbf16>
    %c0_19 = arith.constant 0 : index
    %c0_20 = arith.constant 0 : index
    %c0_21 = arith.constant 0 : index
    %23 = vector.load %arg7[%c0_19, %c0_20, %c0_21] : memref<3x128x128xbf16, #tpu.memory_space<vmem>>, vector<1x128x128xbf16>
    %24 = vector.shape_cast %23 : vector<1x128x128xbf16> to vector<128x128xbf16>
    %cst_22 = arith.constant dense<0.000000e+00> : vector<128x128xf32>
    %25 = tpu.matmul %22, %24, %cst_22 {dimension_numbers = #tpu.dot_dimension_numbers<[1], [0], [0], [1], [0, 0, 1, 1], [], []>} : vector<128x128xbf16>, vector<128x128xbf16>, vector<128x128xf32> -> vector<128x128xf32>
    %c0_23 = arith.constant 0 : index
    %c0_24 = arith.constant 0 : index
    %c0_25 = arith.constant 0 : index
    %26 = vector.load %arg8[%c0_23, %c0_24, %c0_25] : memref<3x1x128xf32, #tpu.memory_space<vmem>>, vector<1x1x128xf32>
    %27 = vector.shape_cast %26 : vector<1x1x128xf32> to vector<1x128xf32>
    %28 = vector.broadcast %27 : vector<1x128xf32> to vector<128x128xf32>
    %29 = arith.addf %25, %28 : vector<128x128xf32>
    %cst_26 = arith.constant 0.000000e+00 : f32
    %30 = vector.broadcast %cst_26 : f32 to vector<128x128xf32>
    %31 = arith.maximumf %29, %30 : vector<128x128xf32>
    %32 = arith.truncf %31 : vector<128x128xf32> to vector<128x128xbf16>
    %cst_27 = arith.constant dense<0.000000e+00> : vector<8x128xf32>
    %33 = tpu.matmul %1, %32, %cst_27 {dimension_numbers = #tpu.dot_dimension_numbers<[1], [0], [0], [1], [0, 0, 1, 1], [], []>} : vector<8x128xbf16>, vector<128x128xbf16>, vector<8x128xf32> -> vector<8x128xf32>
    %34 = arith.extf %8 : vector<8x128xbf16> to vector<8x128xf32>
    %35 = arith.addf %33, %34 : vector<8x128xf32>
    %36 = arith.truncf %35 : vector<8x128xf32> to vector<8x128xbf16>
    %c0_28 = arith.constant 0 : index
    %c0_29 = arith.constant 0 : index
    %c0_30 = arith.constant 0 : index
    %37 = vector.load %arg9[%c0_28, %c0_29, %c0_30] : memref<3x128x128xbf16, #tpu.memory_space<vmem>>, vector<1x128x128xbf16>
    %38 = vector.shape_cast %37 : vector<1x128x128xbf16> to vector<128x128xbf16>
    %cst_31 = arith.constant dense<0.000000e+00> : vector<8x128xf32>
    %39 = tpu.matmul %36, %38, %cst_31 {dimension_numbers = #tpu.dot_dimension_numbers<[1], [0], [0], [1], [0, 0, 1, 1], [], []>} : vector<8x128xbf16>, vector<128x128xbf16>, vector<8x128xf32> -> vector<8x128xf32>
    %c0_32 = arith.constant 0 : index
    %c0_33 = arith.constant 0 : index
    %c0_34 = arith.constant 0 : index
    %40 = vector.load %arg10[%c0_32, %c0_33, %c0_34] : memref<3x1x128xf32, #tpu.memory_space<vmem>>, vector<1x1x128xf32>
    %41 = vector.shape_cast %40 : vector<1x1x128xf32> to vector<1x128xf32>
    %42 = vector.broadcast %41 : vector<1x128xf32> to vector<8x128xf32>
    %43 = arith.addf %39, %42 : vector<8x128xf32>
    %cst_35 = arith.constant 0.000000e+00 : f32
    %44 = vector.broadcast %cst_35 : f32 to vector<8x128xf32>
    %45 = arith.maximumf %43, %44 : vector<8x128xf32>
    %46 = arith.truncf %45 : vector<8x128xf32> to vector<8x128xbf16>
    %cst_36 = arith.constant dense<0.000000e+00> : vector<128x128xf32>
    %47 = tpu.matmul %0, %0, %cst_36 {dimension_numbers = #tpu.dot_dimension_numbers<[1], [0], [0], [1], [0, 0, 1, 1], [], []>} : vector<128x128xbf16>, vector<128x128xbf16>, vector<128x128xf32> -> vector<128x128xf32>
    %cst_37 = arith.constant 0.000000e+00 : f32
    %48 = vector.broadcast %cst_37 : f32 to vector<128x128xf32>
    %49 = arith.cmpf ogt, %47, %48 : vector<128x128xf32>
    %50 = arith.extui %49 : vector<128x128xi1> to vector<128x128xi32>
    %51 = arith.sitofp %50 : vector<128x128xi32> to vector<128x128xf32>
    %52 = arith.truncf %51 : vector<128x128xf32> to vector<128x128xbf16>
    %53 = arith.maximumf %0, %52 : vector<128x128xbf16>
    %cst_38 = arith.constant 1.101560e+00 : bf16
    %54 = vector.broadcast %cst_38 : bf16 to vector<128x128xbf16>
    %55 = arith.select %6, %54, %53 : vector<128x128xi1>, vector<128x128xbf16>
    %cst_39 = arith.constant dense<0.000000e+00> : vector<128x128xf32>
    %56 = tpu.matmul %55, %32, %cst_39 {dimension_numbers = #tpu.dot_dimension_numbers<[1], [0], [0], [1], [0, 0, 1, 1], [], []>} : vector<128x128xbf16>, vector<128x128xbf16>, vector<128x128xf32> -> vector<128x128xf32>
    %cst_40 = arith.constant dense<0.000000e+00> : vector<128x128xf32>
    %57 = tpu.matmul %2, %46, %cst_40 {dimension_numbers = #tpu.dot_dimension_numbers<[1], [0], [0], [1], [0, 0, 1, 1], [], []>} : vector<128x8xbf16>, vector<8x128xbf16>, vector<128x128xf32> -> vector<128x128xf32>
    %58 = arith.addf %56, %57 : vector<128x128xf32>
    %59 = arith.truncf %58 : vector<128x128xf32> to vector<128x128xbf16>
    %c1 = arith.constant 1 : index
    %c0_41 = arith.constant 0 : index
    %c0_42 = arith.constant 0 : index
    %60 = vector.load %arg5[%c1, %c0_41, %c0_42] : memref<3x128x128xbf16, #tpu.memory_space<vmem>>, vector<1x128x128xbf16>
    %61 = vector.shape_cast %60 : vector<1x128x128xbf16> to vector<128x128xbf16>
    %cst_43 = arith.constant dense<0.000000e+00> : vector<128x128xf32>
    %62 = tpu.matmul %59, %61, %cst_43 {dimension_numbers = #tpu.dot_dimension_numbers<[1], [0], [0], [1], [0, 0, 1, 1], [], []>} : vector<128x128xbf16>, vector<128x128xbf16>, vector<128x128xf32> -> vector<128x128xf32>
    %c1_44 = arith.constant 1 : index
    %c0_45 = arith.constant 0 : index
    %c0_46 = arith.constant 0 : index
    %63 = vector.load %arg6[%c1_44, %c0_45, %c0_46] : memref<3x1x128xf32, #tpu.memory_space<vmem>>, vector<1x1x128xf32>
    %64 = vector.shape_cast %63 : vector<1x1x128xf32> to vector<1x128xf32>
    %65 = vector.broadcast %64 : vector<1x128xf32> to vector<128x128xf32>
    %66 = arith.addf %62, %65 : vector<128x128xf32>
    %cst_47 = arith.constant 0.000000e+00 : f32
    %67 = vector.broadcast %cst_47 : f32 to vector<128x128xf32>
    %68 = arith.maximumf %66, %67 : vector<128x128xf32>
    %69 = arith.truncf %68 : vector<128x128xf32> to vector<128x128xbf16>
    %c1_48 = arith.constant 1 : index
    %c0_49 = arith.constant 0 : index
    %c0_50 = arith.constant 0 : index
    %70 = vector.load %arg7[%c1_48, %c0_49, %c0_50] : memref<3x128x128xbf16, #tpu.memory_space<vmem>>, vector<1x128x128xbf16>
    %71 = vector.shape_cast %70 : vector<1x128x128xbf16> to vector<128x128xbf16>
    %cst_51 = arith.constant dense<0.000000e+00> : vector<128x128xf32>
    %72 = tpu.matmul %69, %71, %cst_51 {dimension_numbers = #tpu.dot_dimension_numbers<[1], [0], [0], [1], [0, 0, 1, 1], [], []>} : vector<128x128xbf16>, vector<128x128xbf16>, vector<128x128xf32> -> vector<128x128xf32>
    %c1_52 = arith.constant 1 : index
    %c0_53 = arith.constant 0 : index
    %c0_54 = arith.constant 0 : index
    %73 = vector.load %arg8[%c1_52, %c0_53, %c0_54] : memref<3x1x128xf32, #tpu.memory_space<vmem>>, vector<1x1x128xf32>
    %74 = vector.shape_cast %73 : vector<1x1x128xf32> to vector<1x128xf32>
    %75 = vector.broadcast %74 : vector<1x128xf32> to vector<128x128xf32>
    %76 = arith.addf %72, %75 : vector<128x128xf32>
    %cst_55 = arith.constant 0.000000e+00 : f32
    %77 = vector.broadcast %cst_55 : f32 to vector<128x128xf32>
    %78 = arith.maximumf %76, %77 : vector<128x128xf32>
    %79 = arith.truncf %78 : vector<128x128xf32> to vector<128x128xbf16>
    %cst_56 = arith.constant dense<0.000000e+00> : vector<8x128xf32>
    %80 = tpu.matmul %1, %79, %cst_56 {dimension_numbers = #tpu.dot_dimension_numbers<[1], [0], [0], [1], [0, 0, 1, 1], [], []>} : vector<8x128xbf16>, vector<128x128xbf16>, vector<8x128xf32> -> vector<8x128xf32>
    %81 = arith.extf %46 : vector<8x128xbf16> to vector<8x128xf32>
    %82 = arith.addf %80, %81 : vector<8x128xf32>
    %83 = arith.truncf %82 : vector<8x128xf32> to vector<8x128xbf16>
    %c1_57 = arith.constant 1 : index
    %c0_58 = arith.constant 0 : index
    %c0_59 = arith.constant 0 : index
    %84 = vector.load %arg9[%c1_57, %c0_58, %c0_59] : memref<3x128x128xbf16, #tpu.memory_space<vmem>>, vector<1x128x128xbf16>
    %85 = vector.shape_cast %84 : vector<1x128x128xbf16> to vector<128x128xbf16>
    %cst_60 = arith.constant dense<0.000000e+00> : vector<8x128xf32>
    %86 = tpu.matmul %83, %85, %cst_60 {dimension_numbers = #tpu.dot_dimension_numbers<[1], [0], [0], [1], [0, 0, 1, 1], [], []>} : vector<8x128xbf16>, vector<128x128xbf16>, vector<8x128xf32> -> vector<8x128xf32>
    %c1_61 = arith.constant 1 : index
    %c0_62 = arith.constant 0 : index
    %c0_63 = arith.constant 0 : index
    %87 = vector.load %arg10[%c1_61, %c0_62, %c0_63] : memref<3x1x128xf32, #tpu.memory_space<vmem>>, vector<1x1x128xf32>
    %88 = vector.shape_cast %87 : vector<1x1x128xf32> to vector<1x128xf32>
    %89 = vector.broadcast %88 : vector<1x128xf32> to vector<8x128xf32>
    %90 = arith.addf %86, %89 : vector<8x128xf32>
    %cst_64 = arith.constant 0.000000e+00 : f32
    %91 = vector.broadcast %cst_64 : f32 to vector<8x128xf32>
    %92 = arith.maximumf %90, %91 : vector<8x128xf32>
    %93 = arith.truncf %92 : vector<8x128xf32> to vector<8x128xbf16>
    %cst_65 = arith.constant dense<0.000000e+00> : vector<128x128xf32>
    %94 = tpu.matmul %52, %0, %cst_65 {dimension_numbers = #tpu.dot_dimension_numbers<[1], [0], [0], [1], [0, 0, 1, 1], [], []>} : vector<128x128xbf16>, vector<128x128xbf16>, vector<128x128xf32> -> vector<128x128xf32>
    %cst_66 = arith.constant 0.000000e+00 : f32
    %95 = vector.broadcast %cst_66 : f32 to vector<128x128xf32>
    %96 = arith.cmpf ogt, %94, %95 : vector<128x128xf32>
    %97 = arith.extui %96 : vector<128x128xi1> to vector<128x128xi32>
    %98 = arith.sitofp %97 : vector<128x128xi32> to vector<128x128xf32>
    %99 = arith.truncf %98 : vector<128x128xf32> to vector<128x128xbf16>
    %100 = arith.maximumf %53, %99 : vector<128x128xbf16>
    %cst_67 = arith.constant 1.101560e+00 : bf16
    %101 = vector.broadcast %cst_67 : bf16 to vector<128x128xbf16>
    %102 = arith.select %6, %101, %100 : vector<128x128xi1>, vector<128x128xbf16>
    %cst_68 = arith.constant dense<0.000000e+00> : vector<128x128xf32>
    %103 = tpu.matmul %102, %79, %cst_68 {dimension_numbers = #tpu.dot_dimension_numbers<[1], [0], [0], [1], [0, 0, 1, 1], [], []>} : vector<128x128xbf16>, vector<128x128xbf16>, vector<128x128xf32> -> vector<128x128xf32>
    %cst_69 = arith.constant dense<0.000000e+00> : vector<128x128xf32>
    %104 = tpu.matmul %2, %93, %cst_69 {dimension_numbers = #tpu.dot_dimension_numbers<[1], [0], [0], [1], [0, 0, 1, 1], [], []>} : vector<128x8xbf16>, vector<8x128xbf16>, vector<128x128xf32> -> vector<128x128xf32>
    %105 = arith.addf %103, %104 : vector<128x128xf32>
    %106 = arith.truncf %105 : vector<128x128xf32> to vector<128x128xbf16>
    %c2 = arith.constant 2 : index
    %c0_70 = arith.constant 0 : index
    %c0_71 = arith.constant 0 : index
    %107 = vector.load %arg5[%c2, %c0_70, %c0_71] : memref<3x128x128xbf16, #tpu.memory_space<vmem>>, vector<1x128x128xbf16>
    %108 = vector.shape_cast %107 : vector<1x128x128xbf16> to vector<128x128xbf16>
    %cst_72 = arith.constant dense<0.000000e+00> : vector<128x128xf32>
    %109 = tpu.matmul %106, %108, %cst_72 {dimension_numbers = #tpu.dot_dimension_numbers<[1], [0], [0], [1], [0, 0, 1, 1], [], []>} : vector<128x128xbf16>, vector<128x128xbf16>, vector<128x128xf32> -> vector<128x128xf32>
    %c2_73 = arith.constant 2 : index
    %c0_74 = arith.constant 0 : index
    %c0_75 = arith.constant 0 : index
    %110 = vector.load %arg6[%c2_73, %c0_74, %c0_75] : memref<3x1x128xf32, #tpu.memory_space<vmem>>, vector<1x1x128xf32>
    %111 = vector.shape_cast %110 : vector<1x1x128xf32> to vector<1x128xf32>
    %112 = vector.broadcast %111 : vector<1x128xf32> to vector<128x128xf32>
    %113 = arith.addf %109, %112 : vector<128x128xf32>
    %cst_76 = arith.constant 0.000000e+00 : f32
    %114 = vector.broadcast %cst_76 : f32 to vector<128x128xf32>
    %115 = arith.maximumf %113, %114 : vector<128x128xf32>
    %116 = arith.truncf %115 : vector<128x128xf32> to vector<128x128xbf16>
    %c2_77 = arith.constant 2 : index
    %c0_78 = arith.constant 0 : index
    %c0_79 = arith.constant 0 : index
    %117 = vector.load %arg7[%c2_77, %c0_78, %c0_79] : memref<3x128x128xbf16, #tpu.memory_space<vmem>>, vector<1x128x128xbf16>
    %118 = vector.shape_cast %117 : vector<1x128x128xbf16> to vector<128x128xbf16>
    %cst_80 = arith.constant dense<0.000000e+00> : vector<128x128xf32>
    %119 = tpu.matmul %116, %118, %cst_80 {dimension_numbers = #tpu.dot_dimension_numbers<[1], [0], [0], [1], [0, 0, 1, 1], [], []>} : vector<128x128xbf16>, vector<128x128xbf16>, vector<128x128xf32> -> vector<128x128xf32>
    %c2_81 = arith.constant 2 : index
    %c0_82 = arith.constant 0 : index
    %c0_83 = arith.constant 0 : index
    %120 = vector.load %arg8[%c2_81, %c0_82, %c0_83] : memref<3x1x128xf32, #tpu.memory_space<vmem>>, vector<1x1x128xf32>
    %121 = vector.shape_cast %120 : vector<1x1x128xf32> to vector<1x128xf32>
    %122 = vector.broadcast %121 : vector<1x128xf32> to vector<128x128xf32>
    %123 = arith.addf %119, %122 : vector<128x128xf32>
    %cst_84 = arith.constant 0.000000e+00 : f32
    %124 = vector.broadcast %cst_84 : f32 to vector<128x128xf32>
    %125 = arith.maximumf %123, %124 : vector<128x128xf32>
    %126 = arith.truncf %125 : vector<128x128xf32> to vector<128x128xbf16>
    %cst_85 = arith.constant dense<0.000000e+00> : vector<8x128xf32>
    %127 = tpu.matmul %1, %126, %cst_85 {dimension_numbers = #tpu.dot_dimension_numbers<[1], [0], [0], [1], [0, 0, 1, 1], [], []>} : vector<8x128xbf16>, vector<128x128xbf16>, vector<8x128xf32> -> vector<8x128xf32>
    %128 = vector.broadcast %3 : vector<8x1xf32> to vector<8x128xf32>
    %129 = arith.mulf %127, %128 : vector<8x128xf32>
    %130 = arith.truncf %129 : vector<8x128xf32> to vector<8x128xbf16>
    %c0_86 = arith.constant 0 : index
    %c0_87 = arith.constant 0 : index
    %131 = vector.load %arg11[%c0_86, %c0_87] : memref<128x128xbf16, #tpu.memory_space<vmem>>, vector<128x128xbf16>
    %cst_88 = arith.constant dense<0.000000e+00> : vector<8x128xf32>
    %132 = tpu.matmul %130, %131, %cst_88 {dimension_numbers = #tpu.dot_dimension_numbers<[1], [0], [0], [1], [0, 0, 1, 1], [], []>} : vector<8x128xbf16>, vector<128x128xbf16>, vector<8x128xf32> -> vector<8x128xf32>
    %c0_89 = arith.constant 0 : index
    %c0_90 = arith.constant 0 : index
    %133 = vector.load %arg12[%c0_89, %c0_90] : memref<1x128xf32, #tpu.memory_space<vmem>>, vector<1x128xf32>
    %134 = vector.broadcast %133 : vector<1x128xf32> to vector<8x128xf32>
    %135 = arith.addf %132, %134 : vector<8x128xf32>
    %c0_91 = arith.constant 0 : index
    %c0_92 = arith.constant 0 : index
    %136 = vector.load %arg13[%c0_91, %c0_92] : memref<8x128xf32, #tpu.memory_space<vmem>>, vector<8x128xf32>
    tpu.vector_store %arg13[%c0_91, %c0_92], %135 {strides = array<i32>} : memref<8x128xf32, #tpu.memory_space<vmem>>, vector<8x128xf32>,
    return
  }
}

</mosaic_0001>

<llo_original>
// kernel: tpu_custom_call.1
$region0: #{tpu_custom_call.1}
  #allocation0 [shape = 'u32[]', space=smem, size = 0x4, offset = 0x4, fixed_abs, tag = 'smem constant byte address 0x4 - core index']
  #allocation1 [shape = 'u32[144,128]{1,0:T(1,128)}', space=vmem, size = 0x12000, scoped, tag = 'internal scratch']
  %s0 = inlined_call_operand.vmem [shape: bf16[128,128], index: 0, kind: input, shape index: {}]
  %s1 = inlined_call_operand.hbm [shape: bf16[128,128], index: 1, kind: input, shape index: {}]
  %s2 = inlined_call_operand.vmem [shape: bf16[8,128], index: 2, kind: input, shape index: {}]
  %s3 = inlined_call_operand.vmem [shape: bf16[128,8], index: 3, kind: input, shape index: {}]
  %s4 = inlined_call_operand.vmem [shape: f32[8,1], index: 4, kind: input, shape index: {}]
  %s5 = inlined_call_operand.hbm [shape: bf16[3,128,128], index: 5, kind: input, shape index: {}]
  %s6 = inlined_call_operand.vmem [shape: f32[3,1,128], index: 6, kind: input, shape index: {}]
  %s7 = inlined_call_operand.hbm [shape: bf16[3,128,128], index: 7, kind: input, shape index: {}]
  %s8 = inlined_call_operand.vmem [shape: f32[3,1,128], index: 8, kind: input, shape index: {}]
  %s9 = inlined_call_operand.hbm [shape: bf16[3,128,128], index: 9, kind: input, shape index: {}]
  %s10 = inlined_call_operand.vmem [shape: f32[3,1,128], index: 10, kind: input, shape index: {}]
  %s11 = inlined_call_operand.hbm [shape: bf16[128,128], index: 11, kind: input, shape index: {}]
  %s12 = inlined_call_operand.vmem [shape: f32[1,128], index: 12, kind: input, shape index: {}]
  %s13 = inlined_call_operand.hbm [shape: f32[8,128], index: 13, kind: output, shape index: {}]
  %s14 = sld [smem:[#allocation0]]
  $region82: #{tpu_custom_call.1} parent=0
    _
  %s16 = ssub.s32 1, %s14
  %s17 = scalar_select 0, %s16, %s14
  $region1: #{tpu_custom_call.1} parent=0
    #allocation2 [shape = 'u8[32768]{0}', space=vmem, size = 0x8000, scoped, tag = 'input window, operand 1, single buffered']
    #allocation3 [shape = 's32[1]{0}', space=sflag, size = 0x4, scoped, tag = 'scoped memory for tpu_custom_call.1']
    #allocation4 [shape = 's32[1]{0}', space=sflag, size = 0x4, scoped, tag = 'scoped memory for tpu_custom_call.1']
    #allocation5 [shape = 'u8[98304]{0}', space=vmem, size = 0x18000, scoped, tag = 'input window, operand 5, single buffered']
    #allocation6 [shape = 's32[1]{0}', space=sflag, size = 0x4, scoped, tag = 'scoped memory for tpu_custom_call.1']
    #allocation7 [shape = 'u8[98304]{0}', space=vmem, size = 0x18000, scoped, tag = 'input window, operand 7, single buffered']
    #allocation8 [shape = 'u8[98304]{0}', space=vmem, size = 0x18000, scoped, tag = 'input window, operand 9, single buffered']
    #allocation9 [shape = 's32[1]{0}', space=sflag, size = 0x4, scoped, tag = 'scoped memory for tpu_custom_call.1']
    #allocation10 [shape = 'u8[32768]{0}', space=vmem, size = 0x8000, scoped, tag = 'input window, operand 11, single buffered']
    #allocation11 [shape = 'u8[4096]{0}', space=vmem, size = 0x1000, scoped, tag = 'output window, operand 0, single buffered']
    %18 = vsyncpa [#allocation3], 0
    %19 = vsyncpa [#allocation6], 0
    %20 = vsyncpa [#allocation9], 0
    %21 = vsyncpa [#allocation4], 0
    // Predicated region
    $region2: #{tpu_custom_call.1} parent=1 // pred_check
      _
    $region3: #{tpu_custom_call.1} parent=1 // pred_check_branch
      %23 = sbr.rel (0) target = $region5
    $region4: #{tpu_custom_call.1} parent=1 // pred_region
      _
    $region5: #{tpu_custom_call.1} parent=1 // pred_fallthru
      _
    // Predicated region
    $region6: #{tpu_custom_call.1} parent=1 // pred_check
      _
    $region7: #{tpu_custom_call.1} parent=1 // pred_check_branch
      %25 = sbr.rel (0) target = $region9
    $region8: #{tpu_custom_call.1} parent=1 // pred_region
      %s27 = ssub.s32 1024, 1024
      %28 = vsyncadd [#allocation3], %s27
      %s29 = sshll.u32 [#allocation2], 4
      %s30 = int_to_ptr.vmem [resolvable:$true] %s29
      %35 = dma.hbm_to_vmem [thread:$0]  %s1, 1024, %s30, [#allocation3], 64, 64, 4
    $region9: #{tpu_custom_call.1} parent=1 // pred_fallthru
      _
    // Predicated region
    $region10: #{tpu_custom_call.1} parent=1 // pred_check
      _
    $region11: #{tpu_custom_call.1} parent=1 // pred_check_branch
      %37 = sbr.rel (0) target = $region13
    $region12: #{tpu_custom_call.1} parent=1 // pred_region
      _
    $region13: #{tpu_custom_call.1} parent=1 // pred_fallthru
      _
    // Predicated region
    $region14: #{tpu_custom_call.1} parent=1 // pred_check
      _
    $region15: #{tpu_custom_call.1} parent=1 // pred_check_branch
      %39 = sbr.rel (0) target = $region17
    $region16: #{tpu_custom_call.1} parent=1 // pred_region
      _
    $region17: #{tpu_custom_call.1} parent=1 // pred_fallthru
      _
    // Predicated region
    $region18: #{tpu_custom_call.1} parent=1 // pred_check
      _
    $region19: #{tpu_custom_call.1} parent=1 // pred_check_branch
      %41 = sbr.rel (0) target = $region21
    $region20: #{tpu_custom_call.1} parent=1 // pred_region
      _
    $region21: #{tpu_custom_call.1} parent=1 // pred_fallthru
      _
    // Predicated region
    $region22: #{tpu_custom_call.1} parent=1 // pred_check
      _
    $region23: #{tpu_custom_call.1} parent=1 // pred_check_branch
      %43 = sbr.rel (0) target = $region25
    $region24: #{tpu_custom_call.1} parent=1 // pred_region
      %s45 = ssub.s32 3072, 3072
      %46 = vsyncadd [#allocation6], %s45
      %s47 = sshll.u32 [#allocation5], 4
      %s48 = int_to_ptr.vmem [resolvable:$true] %s47
      %53 = dma.hbm_to_vmem [thread:$0]  %s5, 3072, %s48, [#allocation6], 64, 64, 4
    $region25: #{tpu_custom_call.1} parent=1 // pred_fallthru
      _
    // Predicated region
    $region26: #{tpu_custom_call.1} parent=1 // pred_check
      _
    $region27: #{tpu_custom_call.1} parent=1 // pred_check_branch
      %55 = sbr.rel (0) target = $region29
    $region28: #{tpu_custom_call.1} parent=1 // pred_region
      _
    $region29: #{tpu_custom_call.1} parent=1 // pred_fallthru
      _
    // Predicated region
    $region30: #{tpu_custom_call.1} parent=1 // pred_check
      _
    $region31: #{tpu_custom_call.1} parent=1 // pred_check_branch
      %57 = sbr.rel (0) target = $region33
    $region32: #{tpu_custom_call.1} parent=1 // pred_region
      %s59 = ssub.s32 3072, 3072
      %60 = vsyncadd [#allocation6], %s59
      %s61 = sshll.u32 [#allocation7], 4
      %s62 = int_to_ptr.vmem [resolvable:$true] %s61
      %67 = dma.hbm_to_vmem [thread:$0]  %s7, 3072, %s62, [#allocation6], 64, 64, 4
    $region33: #{tpu_custom_call.1} parent=1 // pred_fallthru
      _
    // Predicated region
    $region34: #{tpu_custom_call.1} parent=1 // pred_check
      _
    $region35: #{tpu_custom_call.1} parent=1 // pred_check_branch
      %69 = sbr.rel (0) target = $region37
    $region36: #{tpu_custom_call.1} parent=1 // pred_region
      _
    $region37: #{tpu_custom_call.1} parent=1 // pred_fallthru
      _
    // Predicated region
    $region38: #{tpu_custom_call.1} parent=1 // pred_check
      _
    $region39: #{tpu_custom_call.1} parent=1 // pred_check_branch
      %71 = sbr.rel (0) target = $region41
    $region40: #{tpu_custom_call.1} parent=1 // pred_region
      %s73 = ssub.s32 3072, 3072
      %74 = vsyncadd [#allocation9], %s73
      %s75 = sshll.u32 [#allocation8], 4
      %s76 = int_to_ptr.vmem [resolvable:$true] %s75
      %81 = dma.hbm_to_vmem [thread:$0]  %s9, 3072, %s76, [#allocation9], 64, 64, 4
    $region41: #{tpu_custom_call.1} parent=1 // pred_fallthru
      _
    // Predicated region
    $region42: #{tpu_custom_call.1} parent=1 // pred_check
      _
    $region43: #{tpu_custom_call.1} parent=1 // pred_check_branch
      %83 = sbr.rel (0) target = $region45
    $region44: #{tpu_custom_call.1} parent=1 // pred_region
      _
    $region45: #{tpu_custom_call.1} parent=1 // pred_fallthru
      _
    // Predicated region
    $region46: #{tpu_custom_call.1} parent=1 // pred_check
      _
    $region47: #{tpu_custom_call.1} parent=1 // pred_check_branch
      %85 = sbr.rel (0) target = $region49
    $region48: #{tpu_custom_call.1} parent=1 // pred_region
      %s87 = ssub.s32 1024, 1024
      %88 = vsyncadd [#allocation9], %s87
      %s89 = sshll.u32 [#allocation10], 4
      %s90 = int_to_ptr.vmem [resolvable:$true] %s89
      %95 = dma.hbm_to_vmem [thread:$0]  %s11, 1024, %s90, [#allocation9], 64, 64, 4
    $region49: #{tpu_custom_call.1} parent=1 // pred_fallthru
      _
    // Predicated region
    $region50: #{tpu_custom_call.1} parent=1 // pred_check
      _
    $region51: #{tpu_custom_call.1} parent=1 // pred_check_branch
      %97 = sbr.rel (0) target = $region53
    $region52: #{tpu_custom_call.1} parent=1 // pred_region
      _
    $region53: #{tpu_custom_call.1} parent=1 // pred_fallthru
      _
    // Predicated region
    $region54: #{tpu_custom_call.1} parent=1 // pred_check
      _
    $region55: #{tpu_custom_call.1} parent=1 // pred_check_branch
      %99 = sbr.rel (0) target = $region57
    $region56: #{tpu_custom_call.1} parent=1 // pred_region
      %100 = dma.done [#allocation3], 1024
    $region57: #{tpu_custom_call.1} parent=1 // pred_fallthru
      _
    // Predicated region
    $region58: #{tpu_custom_call.1} parent=1 // pred_check
      _
    $region59: #{tpu_custom_call.1} parent=1 // pred_check_branch
      %102 = sbr.rel (0) target = $region61
    $region60: #{tpu_custom_call.1} parent=1 // pred_region
      %103 = dma.done [#allocation6], 3072
    $region61: #{tpu_custom_call.1} parent=1 // pred_fallthru
      _
    // Predicated region
    $region62: #{tpu_custom_call.1} parent=1 // pred_check
      _
    $region63: #{tpu_custom_call.1} parent=1 // pred_check_branch
      %105 = sbr.rel (0) target = $region65
    $region64: #{tpu_custom_call.1} parent=1 // pred_region
      %106 = dma.done [#allocation6], 3072
    $region65: #{tpu_custom_call.1} parent=1 // pred_fallthru
      _
    // Predicated region
    $region66: #{tpu_custom_call.1} parent=1 // pred_check
      _
    $region67: #{tpu_custom_call.1} parent=1 // pred_check_branch
      %108 = sbr.rel (0) target = $region69
    $region68: #{tpu_custom_call.1} parent=1 // pred_region
      %109 = dma.done [#allocation9], 3072
    $region69: #{tpu_custom_call.1} parent=1 // pred_fallthru
      _
    // Predicated region
    $region70: #{tpu_custom_call.1} parent=1 // pred_check
      _
    $region71: #{tpu_custom_call.1} parent=1 // pred_check_branch
      %111 = sbr.rel (0) target = $region73
    $region72: #{tpu_custom_call.1} parent=1 // pred_region
      %112 = dma.done [#allocation9], 1024
    $region73: #{tpu_custom_call.1} parent=1 // pred_fallthru
      _
    %v115 = vld [vmem:[%s0] sm:$0xf]
    %v116 = vld [vmem:[%s0 + $0x4] sm:$0xf]
    %v117 = vld [vmem:[%s0 + $0x8] sm:$0xf]
    %v118 = vld [vmem:[%s0 + $0xc] sm:$0xf]
    %v119 = vld [vmem:[%s0 + $0x10] sm:$0xf]
    %v120 = vld [vmem:[%s0 + $0x14] sm:$0xf]
    %v121 = vld [vmem:[%s0 + $0x18] sm:$0xf]
    %v122 = vld [vmem:[%s0 + $0x1c] sm:$0xf]
    %v123 = vld [vmem:[%s0 + $0x20] sm:$0xf]
    %v124 = vld [vmem:[%s0 + $0x24] sm:$0xf]
    %v125 = vld [vmem:[%s0 + $0x28] sm:$0xf]
    %v126 = vld [vmem:[%s0 + $0x2c] sm:$0xf]
    %v127 = vld [vmem:[%s0 + $0x30] sm:$0xf]
    %v128 = vld [vmem:[%s0 + $0x34] sm:$0xf]
    %v129 = vld [vmem:[%s0 + $0x38] sm:$0xf]
    %v130 = vld [vmem:[%s0 + $0x3c] sm:$0xf]
    %v131 = vld [vmem:[%s2] sm:$0xf]
    %v132 = vld [vmem:[%s3] sm:$0xf]
    %v133 = vld [vmem:[%s3 + $0x4] sm:$0xf]
    %v134 = vld [vmem:[%s3 + $0x8] sm:$0xf]
    %v135 = vld [vmem:[%s3 + $0xc] sm:$0xf]
    %v136 = vld [vmem:[%s3 + $0x10] sm:$0xf]
    %v137 = vld [vmem:[%s3 + $0x14] sm:$0xf]
    %v138 = vld [vmem:[%s3 + $0x18] sm:$0xf]
    %v139 = vld [vmem:[%s3 + $0x1c] sm:$0xf]
    %v140 = vld [vmem:[%s3 + $0x20] sm:$0xf]
    %v141 = vld [vmem:[%s3 + $0x24] sm:$0xf]
    %v142 = vld [vmem:[%s3 + $0x28] sm:$0xf]
    %v143 = vld [vmem:[%s3 + $0x2c] sm:$0xf]
    %v144 = vld [vmem:[%s3 + $0x30] sm:$0xf]
    %v145 = vld [vmem:[%s3 + $0x34] sm:$0xf]
    %v146 = vld [vmem:[%s3 + $0x38] sm:$0xf]
    %v147 = vld [vmem:[%s3 + $0x3c] sm:$0xf]
    %v148 = vld [vmem:[%s4] sm:$0xff]
    %v149 = vlaneseq
    %v150 = vshrl.u32 %v149, 7
    %v151 = vadd.s32 %v150, 8
    %v152 = vadd.s32 %v150, 16
    %v153 = vadd.s32 %v150, 24
    %v154 = vadd.s32 %v150, 32
    %v155 = vadd.s32 %v150, 40
    %v156 = vadd.s32 %v150, 48
    %v157 = vadd.s32 %v150, 56
    %v158 = vadd.s32 %v150, 64
    %v159 = vadd.s32 %v150, 72
    %v160 = vadd.s32 %v150, 80
    %v161 = vadd.s32 %v150, 88
    %v162 = vadd.s32 %v150, 96
    %v163 = vadd.s32 %v150, 104
    %v164 = vadd.s32 %v150, 112
    %v165 = vadd.s32 %v150, 120
    %v166 = vlaneseq
    %v167 = vand.u32 %v166, 127
    %vm168 = vcmp.eq.s32.totalorder %v150, %v167
    %vm169 = vcmp.eq.s32.totalorder %v151, %v167
    %vm170 = vcmp.eq.s32.totalorder %v152, %v167
    %vm171 = vcmp.eq.s32.totalorder %v153, %v167
    %vm172 = vcmp.eq.s32.totalorder %v154, %v167
    %vm173 = vcmp.eq.s32.totalorder %v155, %v167
    %vm174 = vcmp.eq.s32.totalorder %v156, %v167
    %vm175 = vcmp.eq.s32.totalorder %v157, %v167
    %vm176 = vcmp.eq.s32.totalorder %v158, %v167
    %vm177 = vcmp.eq.s32.totalorder %v159, %v167
    %vm178 = vcmp.eq.s32.totalorder %v160, %v167
    %vm179 = vcmp.eq.s32.totalorder %v161, %v167
    %vm180 = vcmp.eq.s32.totalorder %v162, %v167
    %vm181 = vcmp.eq.s32.totalorder %v163, %v167
    %vm182 = vcmp.eq.s32.totalorder %v164, %v167
    %vm183 = vcmp.eq.s32.totalorder %v165, %v167
    %v184 = vld [vmem:[#allocation2] sm:$0xf]
    %v185 = vld [vmem:[#allocation2 + $0x4] sm:$0xf]
    %v186 = vld [vmem:[#allocation2 + $0x8] sm:$0xf]
    %v187 = vld [vmem:[#allocation2 + $0xc] sm:$0xf]
    %v188 = vld [vmem:[#allocation2 + $0x10] sm:$0xf]
    %v189 = vld [vmem:[#allocation2 + $0x14] sm:$0xf]
    %v190 = vld [vmem:[#allocation2 + $0x18] sm:$0xf]
    %v191 = vld [vmem:[#allocation2 + $0x1c] sm:$0xf]
    %v192 = vld [vmem:[#allocation2 + $0x20] sm:$0xf]
    %v193 = vld [vmem:[#allocation2 + $0x24] sm:$0xf]
    %v194 = vld [vmem:[#allocation2 + $0x28] sm:$0xf]
    %v195 = vld [vmem:[#allocation2 + $0x2c] sm:$0xf]
    %v196 = vld [vmem:[#allocation2 + $0x30] sm:$0xf]
    %v197 = vld [vmem:[#allocation2 + $0x34] sm:$0xf]
    %v198 = vld [vmem:[#allocation2 + $0x38] sm:$0xf]
    %v199 = vld [vmem:[#allocation2 + $0x3c] sm:$0xf]
    %vm200 = vmpackc.low %vm168, %vm168
    %vm201 = vmpackc.low %vm169, %vm169
    %vm202 = vmpackc.low %vm170, %vm170
    %vm203 = vmpackc.low %vm171, %vm171
    %vm204 = vmpackc.low %vm172, %vm172
    %vm205 = vmpackc.low %vm173, %vm173
    %vm206 = vmpackc.low %vm174, %vm174
    %vm207 = vmpackc.low %vm175, %vm175
    %vm208 = vmpackc.low %vm176, %vm176
    %vm209 = vmpackc.low %vm177, %vm177
    %vm210 = vmpackc.low %vm178, %vm178
    %vm211 = vmpackc.low %vm179, %vm179
    %vm212 = vmpackc.low %vm180, %vm180
    %vm213 = vmpackc.low %vm181, %vm181
    %vm214 = vmpackc.low %vm182, %vm182
    %vm215 = vmpackc.low %vm183, %vm183
    %v216 = vsel %vm200, 1066221453, %v115
    %v217 = vsel %vm201, 1066221453, %v116
    %v218 = vsel %vm202, 1066221453, %v117
    %v219 = vsel %vm203, 1066221453, %v118
    %v220 = vsel %vm204, 1066221453, %v119
    %v221 = vsel %vm205, 1066221453, %v120
    %v222 = vsel %vm206, 1066221453, %v121
    %v223 = vsel %vm207, 1066221453, %v122
    %v224 = vsel %vm208, 1066221453, %v123
    %v225 = vsel %vm209, 1066221453, %v124
    %v226 = vsel %vm210, 1066221453, %v125
    %v227 = vsel %vm211, 1066221453, %v126
    %v228 = vsel %vm212, 1066221453, %v127
    %v229 = vsel %vm213, 1066221453, %v128
    %v230 = vsel %vm214, 1066221453, %v129
    %v231 = vsel %vm215, 1066221453, %v130
    %v248 = vunpack.c.l.b16 %v216
    %v249 = vunpack.c.l.b16 %v217
    %v250 = vunpack.c.l.b16 %v218
    %v251 = vunpack.c.l.b16 %v219
    %v252 = vunpack.c.l.b16 %v220
    %v253 = vunpack.c.l.b16 %v221
    %v254 = vunpack.c.l.b16 %v222
    %v255 = vunpack.c.l.b16 %v223
    %v256 = vunpack.c.l.b16 %v224
    %v257 = vunpack.c.l.b16 %v225
    %v258 = vunpack.c.l.b16 %v226
    %v259 = vunpack.c.l.b16 %v227
    %v260 = vunpack.c.l.b16 %v228
    %v261 = vunpack.c.l.b16 %v229
    %v262 = vunpack.c.l.b16 %v230
    %v263 = vunpack.c.l.b16 %v231
    %v264 = vpack.c.b16 %v249, %v248
    %v265 = vpack.c.b16 %v251, %v250
    %v266 = vpack.c.b16 %v253, %v252
    %v267 = vpack.c.b16 %v255, %v254
    %v268 = vpack.c.b16 %v257, %v256
    %v269 = vpack.c.b16 %v259, %v258
    %v270 = vpack.c.b16 %v261, %v260
    %v271 = vpack.c.b16 %v263, %v262
    %v296 = vunpack.c.l.b16 %v184
    %v297 = vunpack.c.l.b16 %v185
    %v298 = vunpack.c.l.b16 %v186
    %v299 = vunpack.c.l.b16 %v187
    %v300 = vunpack.c.l.b16 %v188
    %v301 = vunpack.c.l.b16 %v189
    %v302 = vunpack.c.l.b16 %v190
    %v303 = vunpack.c.l.b16 %v191
    %v304 = vunpack.c.l.b16 %v192
    %v305 = vunpack.c.l.b16 %v193
    %v306 = vunpack.c.l.b16 %v194
    %v307 = vunpack.c.l.b16 %v195
    %v308 = vunpack.c.l.b16 %v196
    %v309 = vunpack.c.l.b16 %v197
    %v310 = vunpack.c.l.b16 %v198
    %v311 = vunpack.c.l.b16 %v199
    %v312 = vpack.c.b16 %v297, %v296
    %v313 = vpack.c.b16 %v299, %v298
    %v314 = vpack.c.b16 %v301, %v300
    %v315 = vpack.c.b16 %v303, %v302
    %v316 = vpack.c.b16 %v305, %v304
    %v317 = vpack.c.b16 %v307, %v306
    %v318 = vpack.c.b16 %v309, %v308
    %v319 = vpack.c.b16 %v311, %v310
    %328 = vmatprep.subr.bf16.mxu0 0
    %329 = vmatpush1.bf16.msra.mxu0 %v319
    %330 = vmatprep.subr.bf16.mxu0 0
    %331 = vmatpush1.bf16.msra.mxu0 %v318
    %332 = vmatprep.subr.bf16.mxu0 0
    %333 = vmatpush1.bf16.msra.mxu0 %v317
    %334 = vmatprep.subr.bf16.mxu0 0
    %335 = vmatpush1.bf16.msra.mxu0 %v316
    %336 = vmatprep.subr.bf16.mxu0 0
    %337 = vmatpush1.bf16.msra.mxu0 %v315
    %338 = vmatprep.subr.bf16.mxu0 0
    %339 = vmatpush1.bf16.msra.mxu0 %v314
    %340 = vmatprep.subr.bf16.mxu0 0
    %341 = vmatpush1.bf16.msra.mxu0 %v313
    %342 = vmatprep.subr.bf16.mxu0 0
    %343 = vmatpush1.bf16.msra.mxu0 %v312
    %344 = vmatprep.subr.bf16.mxu0 0
    %345 = vmatpush2.bf16.msra.mxu0 0
    %346 = vmatprep.subr.bf16.mxu0 0
    %347 = vmatpush2.bf16.msra.mxu0 0
    %348 = vmatprep.subr.bf16.mxu0 0
    %349 = vmatpush2.bf16.msra.mxu0 0
    %350 = vmatprep.subr.bf16.mxu0 0
    %351 = vmatpush2.bf16.msra.mxu0 0
    %352 = vmatprep.subr.bf16.mxu0 0
    %353 = vmatpush2.bf16.msra.mxu0 0
    %354 = vmatprep.subr.bf16.mxu0 0
    %355 = vmatpush2.bf16.msra.mxu0 0
    %356 = vmatprep.subr.bf16.mxu0 0
    %357 = vmatpush2.bf16.msra.mxu0 0
    %358 = vmatprep.subr.bf16.mxu0 0
    %359 = vmatpush2.bf16.msra.mxu0 0
    %360 = vmatprep.mubr.bf16.mxu0 0
    %361 = vmatmul.mubr.bf16.gmra.mxu0 %v264
    %v362 = vpop.f32.mrf.mxu0
    %v363 = vadd.f32 0.0, %v362
    %v364 = vpop.f32.mrf.mxu0
    %v365 = vpop.f32.mrf.mxu0
    %v366 = vadd.f32 0.0, %v365
    %v367 = vpop.f32.mrf.mxu0
    %368 = vmatprep.mubr.bf16.mxu0 0
    %369 = vmatmul.mubr.bf16.gmra.mxu0 %v265
    %v370 = vpop.f32.mrf.mxu0
    %v371 = vadd.f32 0.0, %v370
    %v372 = vpop.f32.mrf.mxu0
    %v373 = vpop.f32.mrf.mxu0
    %v374 = vadd.f32 0.0, %v373
    %v375 = vpop.f32.mrf.mxu0
    %376 = vmatprep.mubr.bf16.mxu0 0
    %377 = vmatmul.mubr.bf16.gmra.mxu0 %v266
    %v378 = vpop.f32.mrf.mxu0
    %v379 = vadd.f32 0.0, %v378
    %v380 = vpop.f32.mrf.mxu0
    %v381 = vpop.f32.mrf.mxu0
    %v382 = vadd.f32 0.0, %v381
    %v383 = vpop.f32.mrf.mxu0
    %384 = vmatprep.mubr.bf16.mxu0 0
    %385 = vmatmul.mubr.bf16.gmra.mxu0 %v267
    %v386 = vpop.f32.mrf.mxu0
    %v387 = vadd.f32 0.0, %v386
    %v388 = vpop.f32.mrf.mxu0
    %v389 = vpop.f32.mrf.mxu0
    %v390 = vadd.f32 0.0, %v389
    %v391 = vpop.f32.mrf.mxu0
    %392 = vmatprep.mubr.bf16.mxu0 0
    %393 = vmatmul.mubr.bf16.gmra.mxu0 %v268
    %v394 = vpop.f32.mrf.mxu0
    %v395 = vadd.f32 0.0, %v394
    %v396 = vpop.f32.mrf.mxu0
    %v397 = vpop.f32.mrf.mxu0
    %v398 = vadd.f32 0.0, %v397
    %v399 = vpop.f32.mrf.mxu0
    %400 = vmatprep.mubr.bf16.mxu0 0
    %401 = vmatmul.mubr.bf16.gmra.mxu0 %v269
    %v402 = vpop.f32.mrf.mxu0
    %v403 = vadd.f32 0.0, %v402
    %v404 = vpop.f32.mrf.mxu0
    %v405 = vpop.f32.mrf.mxu0
    %v406 = vadd.f32 0.0, %v405
    %v407 = vpop.f32.mrf.mxu0
    %408 = vmatprep.mubr.bf16.mxu0 0
    %409 = vmatmul.mubr.bf16.gmra.mxu0 %v270
    %v410 = vpop.f32.mrf.mxu0
    %v411 = vadd.f32 0.0, %v410
    %v412 = vpop.f32.mrf.mxu0
    %v413 = vpop.f32.mrf.mxu0
    %v414 = vadd.f32 0.0, %v413
    %v415 = vpop.f32.mrf.mxu0
    %416 = vmatprep.mubr.bf16.mxu0 0
    %417 = vmatmul.mubr.bf16.gmra.mxu0 %v271
    %v418 = vpop.f32.mrf.mxu0
    %v419 = vadd.f32 0.0, %v418
    %v420 = vpop.f32.mrf.mxu0
    %v421 = vpop.f32.mrf.mxu0
    %v422 = vadd.f32 0.0, %v421
    %v423 = vpop.f32.mrf.mxu0
    %424 = vdwg.mxu0
    %v425 = vpack.c.bf16 %v366, %v363
    %v426 = vpack.c.bf16 %v374, %v371
    %v427 = vpack.c.bf16 %v382, %v379
    %v428 = vpack.c.bf16 %v390, %v387
    %v429 = vpack.c.bf16 %v398, %v395
    %v430 = vpack.c.bf16 %v406, %v403
    %v431 = vpack.c.bf16 %v414, %v411
    %v432 = vpack.c.bf16 %v422, %v419
    %v433 = vld [vmem:[#allocation5] sm:$0xf]
    %v434 = vld [vmem:[#allocation5 + $0x4] sm:$0xf]
    %v435 = vld [vmem:[#allocation5 + $0x8] sm:$0xf]
    %v436 = vld [vmem:[#allocation5 + $0xc] sm:$0xf]
    %v437 = vld [vmem:[#allocation5 + $0x10] sm:$0xf]
    %v438 = vld [vmem:[#allocation5 + $0x14] sm:$0xf]
    %v439 = vld [vmem:[#allocation5 + $0x18] sm:$0xf]
    %v440 = vld [vmem:[#allocation5 + $0x1c] sm:$0xf]
    %v441 = vld [vmem:[#allocation5 + $0x20] sm:$0xf]
    %v442 = vld [vmem:[#allocation5 + $0x24] sm:$0xf]
    %v443 = vld [vmem:[#allocation5 + $0x28] sm:$0xf]
    %v444 = vld [vmem:[#allocation5 + $0x2c] sm:$0xf]
    %v445 = vld [vmem:[#allocation5 + $0x30] sm:$0xf]
    %v446 = vld [vmem:[#allocation5 + $0x34] sm:$0xf]
    %v447 = vld [vmem:[#allocation5 + $0x38] sm:$0xf]
    %v448 = vld [vmem:[#allocation5 + $0x3c] sm:$0xf]
    %v449 = vld [vmem:[%s6] sm:$0x1]
    %v451 = vlaneseq
    %v452 = vshrl.u32 %v451, 7
    %v453 = vsub.s32 0, %v452
    %v454 = vrot.slane %v449, %v453
    %v472 = vunpack.c.l.b16 %v433
    %v473 = vunpack.c.l.b16 %v434
    %v474 = vunpack.c.l.b16 %v435
    %v475 = vunpack.c.l.b16 %v436
    %v476 = vunpack.c.l.b16 %v437
    %v477 = vunpack.c.l.b16 %v438
    %v478 = vunpack.c.l.b16 %v439
    %v479 = vunpack.c.l.b16 %v440
    %v480 = vunpack.c.l.b16 %v441
    %v481 = vunpack.c.l.b16 %v442
    %v482 = vunpack.c.l.b16 %v443
    %v483 = vunpack.c.l.b16 %v444
    %v484 = vunpack.c.l.b16 %v445
    %v485 = vunpack.c.l.b16 %v446
    %v486 = vunpack.c.l.b16 %v447
    %v487 = vunpack.c.l.b16 %v448
    %v488 = vpack.c.b16 %v473, %v472
    %v489 = vpack.c.b16 %v475, %v474
    %v490 = vpack.c.b16 %v477, %v476
    %v491 = vpack.c.b16 %v479, %v478
    %v492 = vpack.c.b16 %v481, %v480
    %v493 = vpack.c.b16 %v483, %v482
    %v494 = vpack.c.b16 %v485, %v484
    %v495 = vpack.c.b16 %v487, %v486
    %504 = vmatprep.subr.bf16.mxu0 0
    %505 = vmatpush1.bf16.msra.mxu0 %v495
    %506 = vmatprep.subr.bf16.mxu0 0
    %507 = vmatpush1.bf16.msra.mxu0 %v494
    %508 = vmatprep.subr.bf16.mxu0 0
    %509 = vmatpush1.bf16.msra.mxu0 %v493
    %510 = vmatprep.subr.bf16.mxu0 0
    %511 = vmatpush1.bf16.msra.mxu0 %v492
    %512 = vmatprep.subr.bf16.mxu0 0
    %513 = vmatpush1.bf16.msra.mxu0 %v491
    %514 = vmatprep.subr.bf16.mxu0 0
    %515 = vmatpush1.bf16.msra.mxu0 %v490
    %516 = vmatprep.subr.bf16.mxu0 0
    %517 = vmatpush1.bf16.msra.mxu0 %v489
    %518 = vmatprep.subr.bf16.mxu0 0
    %519 = vmatpush1.bf16.msra.mxu0 %v488
    %520 = vmatprep.subr.bf16.mxu0 0
    %521 = vmatpush2.bf16.msra.mxu0 0
    %522 = vmatprep.subr.bf16.mxu0 0
    %523 = vmatpush2.bf16.msra.mxu0 0
    %524 = vmatprep.subr.bf16.mxu0 0
    %525 = vmatpush2.bf16.msra.mxu0 0
    %526 = vmatprep.subr.bf16.mxu0 0
    %527 = vmatpush2.bf16.msra.mxu0 0
    %528 = vmatprep.subr.bf16.mxu0 0
    %529 = vmatpush2.bf16.msra.mxu0 0
    %530 = vmatprep.subr.bf16.mxu0 0
    %531 = vmatpush2.bf16.msra.mxu0 0
    %532 = vmatprep.subr.bf16.mxu0 0
    %533 = vmatpush2.bf16.msra.mxu0 0
    %534 = vmatprep.subr.bf16.mxu0 0
    %535 = vmatpush2.bf16.msra.mxu0 0
    %536 = vmatprep.mubr.bf16.mxu0 0
    %537 = vmatmul.mubr.bf16.gmra.mxu0 %v425
    %v538 = vpop.f32.mrf.mxu0
    %v539 = vadd.f32 %v454, %v538
    %v540 = vpop.f32.mrf.mxu0
    %v541 = vpop.f32.mrf.mxu0
    %v542 = vadd.f32 %v454, %v541
    %v543 = vpop.f32.mrf.mxu0
    %544 = vmatprep.mubr.bf16.mxu0 0
    %545 = vmatmul.mubr.bf16.gmra.mxu0 %v426
    %v546 = vpop.f32.mrf.mxu0
    %v547 = vadd.f32 %v454, %v546
    %v548 = vpop.f32.mrf.mxu0
    %v549 = vpop.f32.mrf.mxu0
    %v550 = vadd.f32 %v454, %v549
    %v551 = vpop.f32.mrf.mxu0
    %552 = vmatprep.mubr.bf16.mxu0 0
    %553 = vmatmul.mubr.bf16.gmra.mxu0 %v427
    %v554 = vpop.f32.mrf.mxu0
    %v555 = vadd.f32 %v454, %v554
    %v556 = vpop.f32.mrf.mxu0
    %v557 = vpop.f32.mrf.mxu0
    %v558 = vadd.f32 %v454, %v557
    %v559 = vpop.f32.mrf.mxu0
    %560 = vmatprep.mubr.bf16.mxu0 0
    %561 = vmatmul.mubr.bf16.gmra.mxu0 %v428
    %v562 = vpop.f32.mrf.mxu0
    %v563 = vadd.f32 %v454, %v562
    %v564 = vpop.f32.mrf.mxu0
    %v565 = vpop.f32.mrf.mxu0
    %v566 = vadd.f32 %v454, %v565
    %v567 = vpop.f32.mrf.mxu0
    %568 = vmatprep.mubr.bf16.mxu0 0
    %569 = vmatmul.mubr.bf16.gmra.mxu0 %v429
    %v570 = vpop.f32.mrf.mxu0
    %v571 = vadd.f32 %v454, %v570
    %v572 = vpop.f32.mrf.mxu0
    %v573 = vpop.f32.mrf.mxu0
    %v574 = vadd.f32 %v454, %v573
    %v575 = vpop.f32.mrf.mxu0
    %576 = vmatprep.mubr.bf16.mxu0 0
    %577 = vmatmul.mubr.bf16.gmra.mxu0 %v430
    %v578 = vpop.f32.mrf.mxu0
    %v579 = vadd.f32 %v454, %v578
    %v580 = vpop.f32.mrf.mxu0
    %v581 = vpop.f32.mrf.mxu0
    %v582 = vadd.f32 %v454, %v581
    %v583 = vpop.f32.mrf.mxu0
    %584 = vmatprep.mubr.bf16.mxu0 0
    %585 = vmatmul.mubr.bf16.gmra.mxu0 %v431
    %v586 = vpop.f32.mrf.mxu0
    %v587 = vadd.f32 %v454, %v586
    %v588 = vpop.f32.mrf.mxu0
    %v589 = vpop.f32.mrf.mxu0
    %v590 = vadd.f32 %v454, %v589
    %v591 = vpop.f32.mrf.mxu0
    %592 = vmatprep.mubr.bf16.mxu0 0
    %593 = vmatmul.mubr.bf16.gmra.mxu0 %v432
    %v594 = vpop.f32.mrf.mxu0
    %v595 = vadd.f32 %v454, %v594
    %v596 = vpop.f32.mrf.mxu0
    %v597 = vpop.f32.mrf.mxu0
    %v598 = vadd.f32 %v454, %v597
    %v599 = vpop.f32.mrf.mxu0
    %600 = vdwg.mxu0
    %v601 = vmax.f32 %v539, 0.0
    %v602 = vmax.f32 %v542, 0.0
    %v603 = vmax.f32 %v547, 0.0
    %v604 = vmax.f32 %v550, 0.0
    %v605 = vmax.f32 %v555, 0.0
    %v606 = vmax.f32 %v558, 0.0
    %v607 = vmax.f32 %v563, 0.0
    %v608 = vmax.f32 %v566, 0.0
    %v609 = vmax.f32 %v571, 0.0
    %v610 = vmax.f32 %v574, 0.0
    %v611 = vmax.f32 %v579, 0.0
    %v612 = vmax.f32 %v582, 0.0
    %v613 = vmax.f32 %v587, 0.0
    %v614 = vmax.f32 %v590, 0.0
    %v615 = vmax.f32 %v595, 0.0
    %v616 = vmax.f32 %v598, 0.0
    %v617 = vpack.c.bf16 %v602, %v601
    %v618 = vpack.c.bf16 %v604, %v603
    %v619 = vpack.c.bf16 %v606, %v605
    %v620 = vpack.c.bf16 %v608, %v607
    %v621 = vpack.c.bf16 %v610, %v609
    %v622 = vpack.c.bf16 %v612, %v611
    %v623 = vpack.c.bf16 %v614, %v613
    %v624 = vpack.c.bf16 %v616, %v615
    %v625 = vld [vmem:[#allocation7] sm:$0xf]
    %v626 = vld [vmem:[#allocation7 + $0x4] sm:$0xf]
    %v627 = vld [vmem:[#allocation7 + $0x8] sm:$0xf]
    %v628 = vld [vmem:[#allocation7 + $0xc] sm:$0xf]
    %v629 = vld [vmem:[#allocation7 + $0x10] sm:$0xf]
    %v630 = vld [vmem:[#allocation7 + $0x14] sm:$0xf]
    %v631 = vld [vmem:[#allocation7 + $0x18] sm:$0xf]
    %v632 = vld [vmem:[#allocation7 + $0x1c] sm:$0xf]
    %v633 = vld [vmem:[#allocation7 + $0x20] sm:$0xf]
    %v634 = vld [vmem:[#allocation7 + $0x24] sm:$0xf]
    %v635 = vld [vmem:[#allocation7 + $0x28] sm:$0xf]
    %v636 = vld [vmem:[#allocation7 + $0x2c] sm:$0xf]
    %v637 = vld [vmem:[#allocation7 + $0x30] sm:$0xf]
    %v638 = vld [vmem:[#allocation7 + $0x34] sm:$0xf]
    %v639 = vld [vmem:[#allocation7 + $0x38] sm:$0xf]
    %v640 = vld [vmem:[#allocation7 + $0x3c] sm:$0xf]
    %v641 = vld [vmem:[%s8] sm:$0x1]
    %v643 = vlaneseq
    %v644 = vshrl.u32 %v643, 7
    %v645 = vsub.s32 0, %v644
    %v646 = vrot.slane %v641, %v645
    %v664 = vunpack.c.l.b16 %v625
    %v665 = vunpack.c.l.b16 %v626
    %v666 = vunpack.c.l.b16 %v627
    %v667 = vunpack.c.l.b16 %v628
    %v668 = vunpack.c.l.b16 %v629
    %v669 = vunpack.c.l.b16 %v630
    %v670 = vunpack.c.l.b16 %v631
    %v671 = vunpack.c.l.b16 %v632
    %v672 = vunpack.c.l.b16 %v633
    %v673 = vunpack.c.l.b16 %v634
    %v674 = vunpack.c.l.b16 %v635
    %v675 = vunpack.c.l.b16 %v636
    %v676 = vunpack.c.l.b16 %v637
    %v677 = vunpack.c.l.b16 %v638
    %v678 = vunpack.c.l.b16 %v639
    %v679 = vunpack.c.l.b16 %v640
    %v680 = vpack.c.b16 %v665, %v664
    %v681 = vpack.c.b16 %v667, %v666
    %v682 = vpack.c.b16 %v669, %v668
    %v683 = vpack.c.b16 %v671, %v670
    %v684 = vpack.c.b16 %v673, %v672
    %v685 = vpack.c.b16 %v675, %v674
    %v686 = vpack.c.b16 %v677, %v676
    %v687 = vpack.c.b16 %v679, %v678
    %696 = vmatprep.subr.bf16.mxu0 0
    %697 = vmatpush1.bf16.msra.mxu0 %v687
    %698 = vmatprep.subr.bf16.mxu0 0
    %699 = vmatpush1.bf16.msra.mxu0 %v686
    %700 = vmatprep.subr.bf16.mxu0 0
    %701 = vmatpush1.bf16.msra.mxu0 %v685
    %702 = vmatprep.subr.bf16.mxu0 0
    %703 = vmatpush1.bf16.msra.mxu0 %v684
    %704 = vmatprep.subr.bf16.mxu0 0
    %705 = vmatpush1.bf16.msra.mxu0 %v683
    %706 = vmatprep.subr.bf16.mxu0 0
    %707 = vmatpush1.bf16.msra.mxu0 %v682
    %708 = vmatprep.subr.bf16.mxu0 0
    %709 = vmatpush1.bf16.msra.mxu0 %v681
    %710 = vmatprep.subr.bf16.mxu0 0
    %711 = vmatpush1.bf16.msra.mxu0 %v680
    %712 = vmatprep.subr.bf16.mxu0 0
    %713 = vmatpush2.bf16.msra.mxu0 0
    %714 = vmatprep.subr.bf16.mxu0 0
    %715 = vmatpush2.bf16.msra.mxu0 0
    %716 = vmatprep.subr.bf16.mxu0 0
    %717 = vmatpush2.bf16.msra.mxu0 0
    %718 = vmatprep.subr.bf16.mxu0 0
    %719 = vmatpush2.bf16.msra.mxu0 0
    %720 = vmatprep.subr.bf16.mxu0 0
    %721 = vmatpush2.bf16.msra.mxu0 0
    %722 = vmatprep.subr.bf16.mxu0 0
    %723 = vmatpush2.bf16.msra.mxu0 0
    %724 = vmatprep.subr.bf16.mxu0 0
    %725 = vmatpush2.bf16.msra.mxu0 0
    %726 = vmatprep.subr.bf16.mxu0 0
    %727 = vmatpush2.bf16.msra.mxu0 0
    %728 = vmatprep.mubr.bf16.mxu0 0
    %729 = vmatmul.mubr.bf16.gmra.mxu0 %v617
    %v730 = vpop.f32.mrf.mxu0
    %v731 = vadd.f32 %v646, %v730
    %v732 = vpop.f32.mrf.mxu0
    %v733 = vpop.f32.mrf.mxu0
    %v734 = vadd.f32 %v646, %v733
    %v735 = vpop.f32.mrf.mxu0
    %736 = vmatprep.mubr.bf16.mxu0 0
    %737 = vmatmul.mubr.bf16.gmra.mxu0 %v618
    %v738 = vpop.f32.mrf.mxu0
    %v739 = vadd.f32 %v646, %v738
    %v740 = vpop.f32.mrf.mxu0
    %v741 = vpop.f32.mrf.mxu0
    %v742 = vadd.f32 %v646, %v741
    %v743 = vpop.f32.mrf.mxu0
    %744 = vmatprep.mubr.bf16.mxu0 0
    %745 = vmatmul.mubr.bf16.gmra.mxu0 %v619
    %v746 = vpop.f32.mrf.mxu0
    %v747 = vadd.f32 %v646, %v746
    %v748 = vpop.f32.mrf.mxu0
    %v749 = vpop.f32.mrf.mxu0
    %v750 = vadd.f32 %v646, %v749
    %v751 = vpop.f32.mrf.mxu0
    %752 = vmatprep.mubr.bf16.mxu0 0
    %753 = vmatmul.mubr.bf16.gmra.mxu0 %v620
    %v754 = vpop.f32.mrf.mxu0
    %v755 = vadd.f32 %v646, %v754
    %v756 = vpop.f32.mrf.mxu0
    %v757 = vpop.f32.mrf.mxu0
    %v758 = vadd.f32 %v646, %v757
    %v759 = vpop.f32.mrf.mxu0
    %760 = vmatprep.mubr.bf16.mxu0 0
    %761 = vmatmul.mubr.bf16.gmra.mxu0 %v621
    %v762 = vpop.f32.mrf.mxu0
    %v763 = vadd.f32 %v646, %v762
    %v764 = vpop.f32.mrf.mxu0
    %v765 = vpop.f32.mrf.mxu0
    %v766 = vadd.f32 %v646, %v765
    %v767 = vpop.f32.mrf.mxu0
    %768 = vmatprep.mubr.bf16.mxu0 0
    %769 = vmatmul.mubr.bf16.gmra.mxu0 %v622
    %v770 = vpop.f32.mrf.mxu0
    %v771 = vadd.f32 %v646, %v770
    %v772 = vpop.f32.mrf.mxu0
    %v773 = vpop.f32.mrf.mxu0
    %v774 = vadd.f32 %v646, %v773
    %v775 = vpop.f32.mrf.mxu0
    %776 = vmatprep.mubr.bf16.mxu0 0
    %777 = vmatmul.mubr.bf16.gmra.mxu0 %v623
    %v778 = vpop.f32.mrf.mxu0
    %v779 = vadd.f32 %v646, %v778
    %v780 = vpop.f32.mrf.mxu0
    %v781 = vpop.f32.mrf.mxu0
    %v782 = vadd.f32 %v646, %v781
    %v783 = vpop.f32.mrf.mxu0
    %784 = vmatprep.mubr.bf16.mxu0 0
    %785 = vmatmul.mubr.bf16.gmra.mxu0 %v624
    %v786 = vpop.f32.mrf.mxu0
    %v787 = vadd.f32 %v646, %v786
    %v788 = vpop.f32.mrf.mxu0
    %v789 = vpop.f32.mrf.mxu0
    %v790 = vadd.f32 %v646, %v789
    %v791 = vpop.f32.mrf.mxu0
    %792 = vdwg.mxu0
    %v793 = vmax.f32 %v731, 0.0
    %v794 = vmax.f32 %v734, 0.0
    %v795 = vmax.f32 %v739, 0.0
    %v796 = vmax.f32 %v742, 0.0
    %v797 = vmax.f32 %v747, 0.0
    %v798 = vmax.f32 %v750, 0.0
    %v799 = vmax.f32 %v755, 0.0
    %v800 = vmax.f32 %v758, 0.0
    %v801 = vmax.f32 %v763, 0.0
    %v802 = vmax.f32 %v766, 0.0
    %v803 = vmax.f32 %v771, 0.0
    %v804 = vmax.f32 %v774, 0.0
    %v805 = vmax.f32 %v779, 0.0
    %v806 = vmax.f32 %v782, 0.0
    %v807 = vmax.f32 %v787, 0.0
    %v808 = vmax.f32 %v790, 0.0
    %v809 = vpack.c.bf16 %v794, %v793
    %v810 = vpack.c.bf16 %v796, %v795
    %v811 = vpack.c.bf16 %v798, %v797
    %v812 = vpack.c.bf16 %v800, %v799
    %v813 = vpack.c.bf16 %v802, %v801
    %v814 = vpack.c.bf16 %v804, %v803
    %v815 = vpack.c.bf16 %v806, %v805
    %v816 = vpack.c.bf16 %v808, %v807
    %817 = vmatprep.subr.bf16.mxu0 0
    %818 = vmatpush1.bf16.msra.mxu0 %v816
    %819 = vmatprep.subr.bf16.mxu0 0
    %820 = vmatpush1.bf16.msra.mxu0 %v815
    %821 = vmatprep.subr.bf16.mxu0 0
    %822 = vmatpush1.bf16.msra.mxu0 %v814
    %823 = vmatprep.subr.bf16.mxu0 0
    %824 = vmatpush1.bf16.msra.mxu0 %v813
    %825 = vmatprep.subr.bf16.mxu0 0
    %826 = vmatpush1.bf16.msra.mxu0 %v812
    %827 = vmatprep.subr.bf16.mxu0 0
    %828 = vmatpush1.bf16.msra.mxu0 %v811
    %829 = vmatprep.subr.bf16.mxu0 0
    %830 = vmatpush1.bf16.msra.mxu0 %v810
    %831 = vmatprep.subr.bf16.mxu0 0
    %832 = vmatpush1.bf16.msra.mxu0 %v809
    %833 = vmatprep.subr.bf16.mxu0 0
    %834 = vmatpush2.bf16.msra.mxu0 0
    %835 = vmatprep.subr.bf16.mxu0 0
    %836 = vmatpush2.bf16.msra.mxu0 0
    %837 = vmatprep.subr.bf16.mxu0 0
    %838 = vmatpush2.bf16.msra.mxu0 0
    %839 = vmatprep.subr.bf16.mxu0 0
    %840 = vmatpush2.bf16.msra.mxu0 0
    %841 = vmatprep.subr.bf16.mxu0 0
    %842 = vmatpush2.bf16.msra.mxu0 0
    %843 = vmatprep.subr.bf16.mxu0 0
    %844 = vmatpush2.bf16.msra.mxu0 0
    %845 = vmatprep.subr.bf16.mxu0 0
    %846 = vmatpush2.bf16.msra.mxu0 0
    %847 = vmatprep.subr.bf16.mxu0 0
    %848 = vmatpush2.bf16.msra.mxu0 0
    %849 = vmatprep.mubr.bf16.mxu0 0
    %850 = vmatmul.mubr.bf16.gmra.mxu0 %v131
    %v851 = vpop.f32.mrf.mxu0
    %v852 = vadd.f32 0.0, %v851
    %v853 = vpop.f32.mrf.mxu0
    %v854 = vpop.f32.mrf.mxu0
    %v855 = vpop.f32.mrf.mxu0
    %856 = vdwg.mxu0
    %v857 = vpack.c.bf16 %v852, %v852
    %v858 = vld [vmem:[#allocation8] sm:$0xf]
    %v859 = vld [vmem:[#allocation8 + $0x4] sm:$0xf]
    %v860 = vld [vmem:[#allocation8 + $0x8] sm:$0xf]
    %v861 = vld [vmem:[#allocation8 + $0xc] sm:$0xf]
    %v862 = vld [vmem:[#allocation8 + $0x10] sm:$0xf]
    %v863 = vld [vmem:[#allocation8 + $0x14] sm:$0xf]
    %v864 = vld [vmem:[#allocation8 + $0x18] sm:$0xf]
    %v865 = vld [vmem:[#allocation8 + $0x1c] sm:$0xf]
    %v866 = vld [vmem:[#allocation8 + $0x20] sm:$0xf]
    %v867 = vld [vmem:[#allocation8 + $0x24] sm:$0xf]
    %v868 = vld [vmem:[#allocation8 + $0x28] sm:$0xf]
    %v869 = vld [vmem:[#allocation8 + $0x2c] sm:$0xf]
    %v870 = vld [vmem:[#allocation8 + $0x30] sm:$0xf]
    %v871 = vld [vmem:[#allocation8 + $0x34] sm:$0xf]
    %v872 = vld [vmem:[#allocation8 + $0x38] sm:$0xf]
    %v873 = vld [vmem:[#allocation8 + $0x3c] sm:$0xf]
    %v874 = vld [vmem:[%s10] sm:$0x1]
    %v876 = vlaneseq
    %v877 = vshrl.u32 %v876, 7
    %v878 = vsub.s32 0, %v877
    %v879 = vrot.slane %v874, %v878
    %v897 = vunpack.c.l.b16 %v858
    %v898 = vunpack.c.l.b16 %v859
    %v899 = vunpack.c.l.b16 %v860
    %v900 = vunpack.c.l.b16 %v861
    %v901 = vunpack.c.l.b16 %v862
    %v902 = vunpack.c.l.b16 %v863
    %v903 = vunpack.c.l.b16 %v864
    %v904 = vunpack.c.l.b16 %v865
    %v905 = vunpack.c.l.b16 %v866
    %v906 = vunpack.c.l.b16 %v867
    %v907 = vunpack.c.l.b16 %v868
    %v908 = vunpack.c.l.b16 %v869
    %v909 = vunpack.c.l.b16 %v870
    %v910 = vunpack.c.l.b16 %v871
    %v911 = vunpack.c.l.b16 %v872
    %v912 = vunpack.c.l.b16 %v873
    %v913 = vpack.c.b16 %v898, %v897
    %v914 = vpack.c.b16 %v900, %v899
    %v915 = vpack.c.b16 %v902, %v901
    %v916 = vpack.c.b16 %v904, %v903
    %v917 = vpack.c.b16 %v906, %v905
    %v918 = vpack.c.b16 %v908, %v907
    %v919 = vpack.c.b16 %v910, %v909
    %v920 = vpack.c.b16 %v912, %v911
    %929 = vmatprep.subr.bf16.mxu0 0
    %930 = vmatpush1.bf16.msra.mxu0 %v920
    %931 = vmatprep.subr.bf16.mxu0 0
    %932 = vmatpush1.bf16.msra.mxu0 %v919
    %933 = vmatprep.subr.bf16.mxu0 0
    %934 = vmatpush1.bf16.msra.mxu0 %v918
    %935 = vmatprep.subr.bf16.mxu0 0
    %936 = vmatpush1.bf16.msra.mxu0 %v917
    %937 = vmatprep.subr.bf16.mxu0 0
    %938 = vmatpush1.bf16.msra.mxu0 %v916
    %939 = vmatprep.subr.bf16.mxu0 0
    %940 = vmatpush1.bf16.msra.mxu0 %v915
    %941 = vmatprep.subr.bf16.mxu0 0
    %942 = vmatpush1.bf16.msra.mxu0 %v914
    %943 = vmatprep.subr.bf16.mxu0 0
    %944 = vmatpush1.bf16.msra.mxu0 %v913
    %945 = vmatprep.subr.bf16.mxu0 0
    %946 = vmatpush2.bf16.msra.mxu0 0
    %947 = vmatprep.subr.bf16.mxu0 0
    %948 = vmatpush2.bf16.msra.mxu0 0
    %949 = vmatprep.subr.bf16.mxu0 0
    %950 = vmatpush2.bf16.msra.mxu0 0
    %951 = vmatprep.subr.bf16.mxu0 0
    %952 = vmatpush2.bf16.msra.mxu0 0
    %953 = vmatprep.subr.bf16.mxu0 0
    %954 = vmatpush2.bf16.msra.mxu0 0
    %955 = vmatprep.subr.bf16.mxu0 0
    %956 = vmatpush2.bf16.msra.mxu0 0
    %957 = vmatprep.subr.bf16.mxu0 0
    %958 = vmatpush2.bf16.msra.mxu0 0
    %959 = vmatprep.subr.bf16.mxu0 0
    %960 = vmatpush2.bf16.msra.mxu0 0
    %961 = vmatprep.mubr.bf16.mxu0 0
    %962 = vmatmul.mubr.bf16.gmra.mxu0 %v857
    %v963 = vpop.f32.mrf.mxu0
    %v964 = vadd.f32 %v879, %v963
    %v965 = vpop.f32.mrf.mxu0
    %v966 = vpop.f32.mrf.mxu0
    %v967 = vpop.f32.mrf.mxu0
    %968 = vdwg.mxu0
    %v969 = vmax.f32 %v964, 0.0
    %v970 = vpack.c.bf16 %v969, %v969
    %v987 = vunpack.c.l.b16 %v115
    %v988 = vunpack.c.l.b16 %v116
    %v989 = vunpack.c.l.b16 %v117
    %v990 = vunpack.c.l.b16 %v118
    %v991 = vunpack.c.l.b16 %v119
    %v992 = vunpack.c.l.b16 %v120
    %v993 = vunpack.c.l.b16 %v121
    %v994 = vunpack.c.l.b16 %v122
    %v995 = vunpack.c.l.b16 %v123
    %v996 = vunpack.c.l.b16 %v124
    %v997 = vunpack.c.l.b16 %v125
    %v998 = vunpack.c.l.b16 %v126
    %v999 = vunpack.c.l.b16 %v127
    %v1000 = vunpack.c.l.b16 %v128
    %v1001 = vunpack.c.l.b16 %v129
    %v1002 = vunpack.c.l.b16 %v130
    %v1003 = vpack.c.b16 %v988, %v987
    %v1004 = vpack.c.b16 %v990, %v989
    %v1005 = vpack.c.b16 %v992, %v991
    %v1006 = vpack.c.b16 %v994, %v993
    %v1007 = vpack.c.b16 %v996, %v995
    %v1008 = vpack.c.b16 %v998, %v997
    %v1009 = vpack.c.b16 %v1000, %v999
    %v1010 = vpack.c.b16 %v1002, %v1001
    %1019 = vmatprep.subr.bf16.mxu0 0
    %1020 = vmatpush1.bf16.msra.mxu0 %v1010
    %1021 = vmatprep.subr.bf16.mxu0 0
    %1022 = vmatpush1.bf16.msra.mxu0 %v1009
    %1023 = vmatprep.subr.bf16.mxu0 0
    %1024 = vmatpush1.bf16.msra.mxu0 %v1008
    %1025 = vmatprep.subr.bf16.mxu0 0
    %1026 = vmatpush1.bf16.msra.mxu0 %v1007
    %1027 = vmatprep.subr.bf16.mxu0 0
    %1028 = vmatpush1.bf16.msra.mxu0 %v1006
    %1029 = vmatprep.subr.bf16.mxu0 0
    %1030 = vmatpush1.bf16.msra.mxu0 %v1005
    %1031 = vmatprep.subr.bf16.mxu0 0
    %1032 = vmatpush1.bf16.msra.mxu0 %v1004
    %1033 = vmatprep.subr.bf16.mxu0 0
    %1034 = vmatpush1.bf16.msra.mxu0 %v1003
    %1035 = vmatprep.subr.bf16.mxu0 0
    %1036 = vmatpush2.bf16.msra.mxu0 0
    %1037 = vmatprep.subr.bf16.mxu0 0
    %1038 = vmatpush2.bf16.msra.mxu0 0
    %1039 = vmatprep.subr.bf16.mxu0 0
    %1040 = vmatpush2.bf16.msra.mxu0 0
    %1041 = vmatprep.subr.bf16.mxu0 0
    %1042 = vmatpush2.bf16.msra.mxu0 0
    %1043 = vmatprep.subr.bf16.mxu0 0
    %1044 = vmatpush2.bf16.msra.mxu0 0
    %1045 = vmatprep.subr.bf16.mxu0 0
    %1046 = vmatpush2.bf16.msra.mxu0 0
    %1047 = vmatprep.subr.bf16.mxu0 0
    %1048 = vmatpush2.bf16.msra.mxu0 0
    %1049 = vmatprep.subr.bf16.mxu0 0
    %1050 = vmatpush2.bf16.msra.mxu0 0
    %1051 = vmatprep.mubr.bf16.mxu0 0
    %1052 = vmatmul.mubr.bf16.gmra.mxu0 %v1003
    %v1053 = vpop.f32.mrf.mxu0
    %v1054 = vadd.f32 0.0, %v1053
    %v1055 = vpop.f32.mrf.mxu0
    %v1056 = vpop.f32.mrf.mxu0
    %v1057 = vadd.f32 0.0, %v1056
    %v1058 = vpop.f32.mrf.mxu0
    %1059 = vmatprep.mubr.bf16.mxu0 0
    %1060 = vmatmul.mubr.bf16.gmra.mxu0 %v1004
    %v1061 = vpop.f32.mrf.mxu0
    %v1062 = vadd.f32 0.0, %v1061
    %v1063 = vpop.f32.mrf.mxu0
    %v1064 = vpop.f32.mrf.mxu0
    %v1065 = vadd.f32 0.0, %v1064
    %v1066 = vpop.f32.mrf.mxu0
    %1067 = vmatprep.mubr.bf16.mxu0 0
    %1068 = vmatmul.mubr.bf16.gmra.mxu0 %v1005
    %v1069 = vpop.f32.mrf.mxu0
    %v1070 = vadd.f32 0.0, %v1069
    %v1071 = vpop.f32.mrf.mxu0
    %v1072 = vpop.f32.mrf.mxu0
    %v1073 = vadd.f32 0.0, %v1072
    %v1074 = vpop.f32.mrf.mxu0
    %1075 = vmatprep.mubr.bf16.mxu0 0
    %1076 = vmatmul.mubr.bf16.gmra.mxu0 %v1006
    %v1077 = vpop.f32.mrf.mxu0
    %v1078 = vadd.f32 0.0, %v1077
    %v1079 = vpop.f32.mrf.mxu0
    %v1080 = vpop.f32.mrf.mxu0
    %v1081 = vadd.f32 0.0, %v1080
    %v1082 = vpop.f32.mrf.mxu0
    %1083 = vmatprep.mubr.bf16.mxu0 0
    %1084 = vmatmul.mubr.bf16.gmra.mxu0 %v1007
    %v1085 = vpop.f32.mrf.mxu0
    %v1086 = vadd.f32 0.0, %v1085
    %v1087 = vpop.f32.mrf.mxu0
    %v1088 = vpop.f32.mrf.mxu0
    %v1089 = vadd.f32 0.0, %v1088
    %v1090 = vpop.f32.mrf.mxu0
    %1091 = vmatprep.mubr.bf16.mxu0 0
    %1092 = vmatmul.mubr.bf16.gmra.mxu0 %v1008
    %v1093 = vpop.f32.mrf.mxu0
    %v1094 = vadd.f32 0.0, %v1093
    %v1095 = vpop.f32.mrf.mxu0
    %v1096 = vpop.f32.mrf.mxu0
    %v1097 = vadd.f32 0.0, %v1096
    %v1098 = vpop.f32.mrf.mxu0
    %1099 = vmatprep.mubr.bf16.mxu0 0
    %1100 = vmatmul.mubr.bf16.gmra.mxu0 %v1009
    %v1101 = vpop.f32.mrf.mxu0
    %v1102 = vadd.f32 0.0, %v1101
    %v1103 = vpop.f32.mrf.mxu0
    %v1104 = vpop.f32.mrf.mxu0
    %v1105 = vadd.f32 0.0, %v1104
    %v1106 = vpop.f32.mrf.mxu0
    %1107 = vmatprep.mubr.bf16.mxu0 0
    %1108 = vmatmul.mubr.bf16.gmra.mxu0 %v1010
    %v1109 = vpop.f32.mrf.mxu0
    %v1110 = vadd.f32 0.0, %v1109
    %v1111 = vpop.f32.mrf.mxu0
    %v1112 = vpop.f32.mrf.mxu0
    %v1113 = vadd.f32 0.0, %v1112
    %v1114 = vpop.f32.mrf.mxu0
    %1115 = vdwg.mxu0
    %vm1116 = vcmp.gt.f32.partialorder %v1054, 0.0
    %vm1117 = vcmp.gt.f32.partialorder %v1057, 0.0
    %vm1118 = vcmp.gt.f32.partialorder %v1062, 0.0
    %vm1119 = vcmp.gt.f32.partialorder %v1065, 0.0
    %vm1120 = vcmp.gt.f32.partialorder %v1070, 0.0
    %vm1121 = vcmp.gt.f32.partialorder %v1073, 0.0
    %vm1122 = vcmp.gt.f32.partialorder %v1078, 0.0
    %vm1123 = vcmp.gt.f32.partialorder %v1081, 0.0
    %vm1124 = vcmp.gt.f32.partialorder %v1086, 0.0
    %vm1125 = vcmp.gt.f32.partialorder %v1089, 0.0
    %vm1126 = vcmp.gt.f32.partialorder %v1094, 0.0
    %vm1127 = vcmp.gt.f32.partialorder %v1097, 0.0
    %vm1128 = vcmp.gt.f32.partialorder %v1102, 0.0
    %vm1129 = vcmp.gt.f32.partialorder %v1105, 0.0
    %vm1130 = vcmp.gt.f32.partialorder %v1110, 0.0
    %vm1131 = vcmp.gt.f32.partialorder %v1113, 0.0
    %v1132 = vsel %vm1116, 1, 0
    %v1133 = vsel %vm1117, 1, 0
    %v1134 = vsel %vm1118, 1, 0
    %v1135 = vsel %vm1119, 1, 0
    %v1136 = vsel %vm1120, 1, 0
    %v1137 = vsel %vm1121, 1, 0
    %v1138 = vsel %vm1122, 1, 0
    %v1139 = vsel %vm1123, 1, 0
    %v1140 = vsel %vm1124, 1, 0
    %v1141 = vsel %vm1125, 1, 0
    %v1142 = vsel %vm1126, 1, 0
    %v1143 = vsel %vm1127, 1, 0
    %v1144 = vsel %vm1128, 1, 0
    %v1145 = vsel %vm1129, 1, 0
    %v1146 = vsel %vm1130, 1, 0
    %v1147 = vsel %vm1131, 1, 0
    %v1148 = vcvt.s32.f32 %v1132
    %v1149 = vcvt.s32.f32 %v1133
    %v1150 = vcvt.s32.f32 %v1134
    %v1151 = vcvt.s32.f32 %v1135
    %v1152 = vcvt.s32.f32 %v1136
    %v1153 = vcvt.s32.f32 %v1137
    %v1154 = vcvt.s32.f32 %v1138
    %v1155 = vcvt.s32.f32 %v1139
    %v1156 = vcvt.s32.f32 %v1140
    %v1157 = vcvt.s32.f32 %v1141
    %v1158 = vcvt.s32.f32 %v1142
    %v1159 = vcvt.s32.f32 %v1143
    %v1160 = vcvt.s32.f32 %v1144
    %v1161 = vcvt.s32.f32 %v1145
    %v1162 = vcvt.s32.f32 %v1146
    %v1163 = vcvt.s32.f32 %v1147
    %v1164 = vpack.c.bf16 %v1149, %v1148
    %v1165 = vpack.c.bf16 %v1151, %v1150
    %v1166 = vpack.c.bf16 %v1153, %v1152
    %v1167 = vpack.c.bf16 %v1155, %v1154
    %v1168 = vpack.c.bf16 %v1157, %v1156
    %v1169 = vpack.c.bf16 %v1159, %v1158
    %v1170 = vpack.c.bf16 %v1161, %v1160
    %v1171 = vpack.c.bf16 %v1163, %v1162
    %v1180 = vunpack.c.l.b16 %v1164
    %v1181 = vunpack.c.h.b16 %v1164
    %v1182 = vunpack.c.l.b16 %v1165
    %v1183 = vunpack.c.h.b16 %v1165
    %v1184 = vunpack.c.l.b16 %v1166
    %v1185 = vunpack.c.h.b16 %v1166
    %v1186 = vunpack.c.l.b16 %v1167
    %v1187 = vunpack.c.h.b16 %v1167
    %v1188 = vunpack.c.l.b16 %v1168
    %v1189 = vunpack.c.h.b16 %v1168
    %v1190 = vunpack.c.l.b16 %v1169
    %v1191 = vunpack.c.h.b16 %v1169
    %v1192 = vunpack.c.l.b16 %v1170
    %v1193 = vunpack.c.h.b16 %v1170
    %v1194 = vunpack.c.l.b16 %v1171
    %v1195 = vunpack.c.h.b16 %v1171
    %v1196 = vpack.c.b16 %v1180, %v1180
    %v1197 = vpack.c.b16 %v1181, %v1181
    %v1198 = vpack.c.b16 %v1182, %v1182
    %v1199 = vpack.c.b16 %v1183, %v1183
    %v1200 = vpack.c.b16 %v1184, %v1184
    %v1201 = vpack.c.b16 %v1185, %v1185
    %v1202 = vpack.c.b16 %v1186, %v1186
    %v1203 = vpack.c.b16 %v1187, %v1187
    %v1204 = vpack.c.b16 %v1188, %v1188
    %v1205 = vpack.c.b16 %v1189, %v1189
    %v1206 = vpack.c.b16 %v1190, %v1190
    %v1207 = vpack.c.b16 %v1191, %v1191
    %v1208 = vpack.c.b16 %v1192, %v1192
    %v1209 = vpack.c.b16 %v1193, %v1193
    %v1210 = vpack.c.b16 %v1194, %v1194
    %v1211 = vpack.c.b16 %v1195, %v1195
    %v1228 = vmax.bf16 %v115, %v1196
    %v1229 = vmax.bf16 %v116, %v1197
    %v1230 = vmax.bf16 %v117, %v1198
    %v1231 = vmax.bf16 %v118, %v1199
    %v1232 = vmax.bf16 %v119, %v1200
    %v1233 = vmax.bf16 %v120, %v1201
    %v1234 = vmax.bf16 %v121, %v1202
    %v1235 = vmax.bf16 %v122, %v1203
    %v1236 = vmax.bf16 %v123, %v1204
    %v1237 = vmax.bf16 %v124, %v1205
    %v1238 = vmax.bf16 %v125, %v1206
    %v1239 = vmax.bf16 %v126, %v1207
    %v1240 = vmax.bf16 %v127, %v1208
    %v1241 = vmax.bf16 %v128, %v1209
    %v1242 = vmax.bf16 %v129, %v1210
    %v1243 = vmax.bf16 %v130, %v1211
    %v1244 = vsel %vm200, 1066221453, %v1228
    %v1245 = vsel %vm201, 1066221453, %v1229
    %v1246 = vsel %vm202, 1066221453, %v1230
    %v1247 = vsel %vm203, 1066221453, %v1231
    %v1248 = vsel %vm204, 1066221453, %v1232
    %v1249 = vsel %vm205, 1066221453, %v1233
    %v1250 = vsel %vm206, 1066221453, %v1234
    %v1251 = vsel %vm207, 1066221453, %v1235
    %v1252 = vsel %vm208, 1066221453, %v1236
    %v1253 = vsel %vm209, 1066221453, %v1237
    %v1254 = vsel %vm210, 1066221453, %v1238
    %v1255 = vsel %vm211, 1066221453, %v1239
    %v1256 = vsel %vm212, 1066221453, %v1240
    %v1257 = vsel %vm213, 1066221453, %v1241
    %v1258 = vsel %vm214, 1066221453, %v1242
    %v1259 = vsel %vm215, 1066221453, %v1243
    %v1276 = vunpack.c.l.b16 %v132
    %v1277 = vunpack.c.l.b16 %v133
    %v1278 = vunpack.c.l.b16 %v134
    %v1279 = vunpack.c.l.b16 %v135
    %v1280 = vunpack.c.l.b16 %v136
    %v1281 = vunpack.c.l.b16 %v137
    %v1282 = vunpack.c.l.b16 %v138
    %v1283 = vunpack.c.l.b16 %v139
    %v1284 = vunpack.c.l.b16 %v140
    %v1285 = vunpack.c.l.b16 %v141
    %v1286 = vunpack.c.l.b16 %v142
    %v1287 = vunpack.c.l.b16 %v143
    %v1288 = vunpack.c.l.b16 %v144
    %v1289 = vunpack.c.l.b16 %v145
    %v1290 = vunpack.c.l.b16 %v146
    %v1291 = vunpack.c.l.b16 %v147
    %v1292 = vpack.c.b16 %v1277, %v1276
    %v1293 = vpack.c.b16 %v1279, %v1278
    %v1294 = vpack.c.b16 %v1281, %v1280
    %v1295 = vpack.c.b16 %v1283, %v1282
    %v1296 = vpack.c.b16 %v1285, %v1284
    %v1297 = vpack.c.b16 %v1287, %v1286
    %v1298 = vpack.c.b16 %v1289, %v1288
    %v1299 = vpack.c.b16 %v1291, %v1290
    %vm1300 = vcmask 64512
    %v1302 = vsel %vm1300, %v1292, 0
    %v1305 = vsel %vm1300, %v1293, 0
    %v1308 = vsel %vm1300, %v1294, 0
    %v1311 = vsel %vm1300, %v1295, 0
    %v1314 = vsel %vm1300, %v1296, 0
    %v1317 = vsel %vm1300, %v1297, 0
    %v1320 = vsel %vm1300, %v1298, 0
    %v1323 = vsel %vm1300, %v1299, 0
    %vm1325 = vcmask 1043456
    %v1327 = vsel %vm1325, %v970, 0
    %1329 = vmatprep.subr.bf16.mxu0 0
    %1330 = vmatpush1.bf16.msra.mxu0 0
    %1331 = vmatprep.subr.bf16.mxu0 0
    %1332 = vmatpush1.bf16.msra.mxu0 0
    %1333 = vmatprep.subr.bf16.mxu0 0
    %1334 = vmatpush1.bf16.msra.mxu0 0
    %1335 = vmatprep.subr.bf16.mxu0 0
    %1336 = vmatpush1.bf16.msra.mxu0 0
    %1337 = vmatprep.subr.bf16.mxu0 0
    %1338 = vmatpush1.bf16.msra.mxu0 0
    %1339 = vmatprep.subr.bf16.mxu0 0
    %1340 = vmatpush1.bf16.msra.mxu0 0
    %1341 = vmatprep.subr.bf16.mxu0 0
    %1342 = vmatpush1.bf16.msra.mxu0 0
    %1343 = vmatprep.subr.bf16.mxu0 0
    %1344 = vmatpush1.bf16.msra.mxu0 %v1327
    %1345 = vmatprep.subr.bf16.mxu0 0
    %1346 = vmatpush2.bf16.msra.mxu0 0
    %1347 = vmatprep.subr.bf16.mxu0 0
    %1348 = vmatpush2.bf16.msra.mxu0 0
    %1349 = vmatprep.subr.bf16.mxu0 0
    %1350 = vmatpush2.bf16.msra.mxu0 0
    %1351 = vmatprep.subr.bf16.mxu0 0
    %1352 = vmatpush2.bf16.msra.mxu0 0
    %1353 = vmatprep.subr.bf16.mxu0 0
    %1354 = vmatpush2.bf16.msra.mxu0 0
    %1355 = vmatprep.subr.bf16.mxu0 0
    %1356 = vmatpush2.bf16.msra.mxu0 0
    %1357 = vmatprep.subr.bf16.mxu0 0
    %1358 = vmatpush2.bf16.msra.mxu0 0
    %1359 = vmatprep.subr.bf16.mxu0 0
    %1360 = vmatpush2.bf16.msra.mxu0 0
    %1361 = vmatprep.mubr.bf16.mxu0 0
    %1362 = vmatmul.mubr.bf16.gmra.mxu0 %v1302
    %v1363 = vpop.f32.mrf.mxu0
    %v1364 = vadd.f32 0.0, %v1363
    %v1365 = vpop.f32.mrf.mxu0
    %v1366 = vpop.f32.mrf.mxu0
    %v1367 = vadd.f32 0.0, %v1366
    %v1368 = vpop.f32.mrf.mxu0
    %1369 = vmatprep.mubr.bf16.mxu0 0
    %1370 = vmatmul.mubr.bf16.gmra.mxu0 %v1305
    %v1371 = vpop.f32.mrf.mxu0
    %v1372 = vadd.f32 0.0, %v1371
    %v1373 = vpop.f32.mrf.mxu0
    %v1374 = vpop.f32.mrf.mxu0
    %v1375 = vadd.f32 0.0, %v1374
    %v1376 = vpop.f32.mrf.mxu0
    %1377 = vmatprep.mubr.bf16.mxu0 0
    %1378 = vmatmul.mubr.bf16.gmra.mxu0 %v1308
    %v1379 = vpop.f32.mrf.mxu0
    %v1380 = vadd.f32 0.0, %v1379
    %v1381 = vpop.f32.mrf.mxu0
    %v1382 = vpop.f32.mrf.mxu0
    %v1383 = vadd.f32 0.0, %v1382
    %v1384 = vpop.f32.mrf.mxu0
    %1385 = vmatprep.mubr.bf16.mxu0 0
    %1386 = vmatmul.mubr.bf16.gmra.mxu0 %v1311
    %v1387 = vpop.f32.mrf.mxu0
    %v1388 = vadd.f32 0.0, %v1387
    %v1389 = vpop.f32.mrf.mxu0
    %v1390 = vpop.f32.mrf.mxu0
    %v1391 = vadd.f32 0.0, %v1390
    %v1392 = vpop.f32.mrf.mxu0
    %1393 = vmatprep.mubr.bf16.mxu0 0
    %1394 = vmatmul.mubr.bf16.gmra.mxu0 %v1314
    %v1395 = vpop.f32.mrf.mxu0
    %v1396 = vadd.f32 0.0, %v1395
    %v1397 = vpop.f32.mrf.mxu0
    %v1398 = vpop.f32.mrf.mxu0
    %v1399 = vadd.f32 0.0, %v1398
    %v1400 = vpop.f32.mrf.mxu0
    %1401 = vmatprep.mubr.bf16.mxu0 0
    %1402 = vmatmul.mubr.bf16.gmra.mxu0 %v1317
    %v1403 = vpop.f32.mrf.mxu0
    %v1404 = vadd.f32 0.0, %v1403
    %v1405 = vpop.f32.mrf.mxu0
    %v1406 = vpop.f32.mrf.mxu0
    %v1407 = vadd.f32 0.0, %v1406
    %v1408 = vpop.f32.mrf.mxu0
    %1409 = vmatprep.mubr.bf16.mxu0 0
    %1410 = vmatmul.mubr.bf16.gmra.mxu0 %v1320
    %v1411 = vpop.f32.mrf.mxu0
    %v1412 = vadd.f32 0.0, %v1411
    %v1413 = vpop.f32.mrf.mxu0
    %v1414 = vpop.f32.mrf.mxu0
    %v1415 = vadd.f32 0.0, %v1414
    %v1416 = vpop.f32.mrf.mxu0
    %1417 = vmatprep.mubr.bf16.mxu0 0
    %1418 = vmatmul.mubr.bf16.gmra.mxu0 %v1323
    %v1419 = vpop.f32.mrf.mxu0
    %v1420 = vadd.f32 0.0, %v1419
    %v1421 = vpop.f32.mrf.mxu0
    %v1422 = vpop.f32.mrf.mxu0
    %v1423 = vadd.f32 0.0, %v1422
    %v1424 = vpop.f32.mrf.mxu0
    %1425 = vdwg.mxu0
    %v1442 = vunpack.c.l.b16 %v1244
    %v1443 = vunpack.c.l.b16 %v1245
    %v1444 = vunpack.c.l.b16 %v1246
    %v1445 = vunpack.c.l.b16 %v1247
    %v1446 = vunpack.c.l.b16 %v1248
    %v1447 = vunpack.c.l.b16 %v1249
    %v1448 = vunpack.c.l.b16 %v1250
    %v1449 = vunpack.c.l.b16 %v1251
    %v1450 = vunpack.c.l.b16 %v1252
    %v1451 = vunpack.c.l.b16 %v1253
    %v1452 = vunpack.c.l.b16 %v1254
    %v1453 = vunpack.c.l.b16 %v1255
    %v1454 = vunpack.c.l.b16 %v1256
    %v1455 = vunpack.c.l.b16 %v1257
    %v1456 = vunpack.c.l.b16 %v1258
    %v1457 = vunpack.c.l.b16 %v1259
    %v1458 = vpack.c.b16 %v1443, %v1442
    %v1459 = vpack.c.b16 %v1445, %v1444
    %v1460 = vpack.c.b16 %v1447, %v1446
    %v1461 = vpack.c.b16 %v1449, %v1448
    %v1462 = vpack.c.b16 %v1451, %v1450
    %v1463 = vpack.c.b16 %v1453, %v1452
    %v1464 = vpack.c.b16 %v1455, %v1454
    %v1465 = vpack.c.b16 %v1457, %v1456
    %1474 = vmatprep.subr.bf16.mxu0 0
    %1475 = vmatpush1.bf16.msra.mxu0 %v816
    %1476 = vmatprep.subr.bf16.mxu0 0
    %1477 = vmatpush1.bf16.msra.mxu0 %v815
    %1478 = vmatprep.subr.bf16.mxu0 0
    %1479 = vmatpush1.bf16.msra.mxu0 %v814
    %1480 = vmatprep.subr.bf16.mxu0 0
    %1481 = vmatpush1.bf16.msra.mxu0 %v813
    %1482 = vmatprep.subr.bf16.mxu0 0
    %1483 = vmatpush1.bf16.msra.mxu0 %v812
    %1484 = vmatprep.subr.bf16.mxu0 0
    %1485 = vmatpush1.bf16.msra.mxu0 %v811
    %1486 = vmatprep.subr.bf16.mxu0 0
    %1487 = vmatpush1.bf16.msra.mxu0 %v810
    %1488 = vmatprep.subr.bf16.mxu0 0
    %1489 = vmatpush1.bf16.msra.mxu0 %v809
    %1490 = vmatprep.subr.bf16.mxu0 0
    %1491 = vmatpush2.bf16.msra.mxu0 0
    %1492 = vmatprep.subr.bf16.mxu0 0
    %1493 = vmatpush2.bf16.msra.mxu0 0
    %1494 = vmatprep.subr.bf16.mxu0 0
    %1495 = vmatpush2.bf16.msra.mxu0 0
    %1496 = vmatprep.subr.bf16.mxu0 0
    %1497 = vmatpush2.bf16.msra.mxu0 0
    %1498 = vmatprep.subr.bf16.mxu0 0
    %1499 = vmatpush2.bf16.msra.mxu0 0
    %1500 = vmatprep.subr.bf16.mxu0 0
    %1501 = vmatpush2.bf16.msra.mxu0 0
    %1502 = vmatprep.subr.bf16.mxu0 0
    %1503 = vmatpush2.bf16.msra.mxu0 0
    %1504 = vmatprep.subr.bf16.mxu0 0
    %1505 = vmatpush2.bf16.msra.mxu0 0
    %1506 = vmatprep.mubr.bf16.mxu0 0
    %1507 = vmatmul.mubr.bf16.gmra.mxu0 %v1458
    %v1508 = vpop.f32.mrf.mxu0
    %v1509 = vadd.f32 %v1364, %v1508
    %v1510 = vpop.f32.mrf.mxu0
    %v1511 = vpop.f32.mrf.mxu0
    %v1512 = vadd.f32 %v1367, %v1511
    %v1513 = vpop.f32.mrf.mxu0
    %1514 = vmatprep.mubr.bf16.mxu0 0
    %1515 = vmatmul.mubr.bf16.gmra.mxu0 %v1459
    %v1516 = vpop.f32.mrf.mxu0
    %v1517 = vadd.f32 %v1372, %v1516
    %v1518 = vpop.f32.mrf.mxu0
    %v1519 = vpop.f32.mrf.mxu0
    %v1520 = vadd.f32 %v1375, %v1519
    %v1521 = vpop.f32.mrf.mxu0
    %1522 = vmatprep.mubr.bf16.mxu0 0
    %1523 = vmatmul.mubr.bf16.gmra.mxu0 %v1460
    %v1524 = vpop.f32.mrf.mxu0
    %v1525 = vadd.f32 %v1380, %v1524
    %v1526 = vpop.f32.mrf.mxu0
    %v1527 = vpop.f32.mrf.mxu0
    %v1528 = vadd.f32 %v1383, %v1527
    %v1529 = vpop.f32.mrf.mxu0
    %1530 = vmatprep.mubr.bf16.mxu0 0
    %1531 = vmatmul.mubr.bf16.gmra.mxu0 %v1461
    %v1532 = vpop.f32.mrf.mxu0
    %v1533 = vadd.f32 %v1388, %v1532
    %v1534 = vpop.f32.mrf.mxu0
    %v1535 = vpop.f32.mrf.mxu0
    %v1536 = vadd.f32 %v1391, %v1535
    %v1537 = vpop.f32.mrf.mxu0
    %1538 = vmatprep.mubr.bf16.mxu0 0
    %1539 = vmatmul.mubr.bf16.gmra.mxu0 %v1462
    %v1540 = vpop.f32.mrf.mxu0
    %v1541 = vadd.f32 %v1396, %v1540
    %v1542 = vpop.f32.mrf.mxu0
    %v1543 = vpop.f32.mrf.mxu0
    %v1544 = vadd.f32 %v1399, %v1543
    %v1545 = vpop.f32.mrf.mxu0
    %1546 = vmatprep.mubr.bf16.mxu0 0
    %1547 = vmatmul.mubr.bf16.gmra.mxu0 %v1463
    %v1548 = vpop.f32.mrf.mxu0
    %v1549 = vadd.f32 %v1404, %v1548
    %v1550 = vpop.f32.mrf.mxu0
    %v1551 = vpop.f32.mrf.mxu0
    %v1552 = vadd.f32 %v1407, %v1551
    %v1553 = vpop.f32.mrf.mxu0
    %1554 = vmatprep.mubr.bf16.mxu0 0
    %1555 = vmatmul.mubr.bf16.gmra.mxu0 %v1464
    %v1556 = vpop.f32.mrf.mxu0
    %v1557 = vadd.f32 %v1412, %v1556
    %v1558 = vpop.f32.mrf.mxu0
    %v1559 = vpop.f32.mrf.mxu0
    %v1560 = vadd.f32 %v1415, %v1559
    %v1561 = vpop.f32.mrf.mxu0
    %1562 = vmatprep.mubr.bf16.mxu0 0
    %1563 = vmatmul.mubr.bf16.gmra.mxu0 %v1465
    %v1564 = vpop.f32.mrf.mxu0
    %v1565 = vadd.f32 %v1420, %v1564
    %v1566 = vpop.f32.mrf.mxu0
    %v1567 = vpop.f32.mrf.mxu0
    %v1568 = vadd.f32 %v1423, %v1567
    %v1569 = vpop.f32.mrf.mxu0
    %1570 = vdwg.mxu0
    %v1571 = vpack.c.bf16 %v1512, %v1509
    %v1572 = vpack.c.bf16 %v1520, %v1517
    %v1573 = vpack.c.bf16 %v1528, %v1525
    %v1574 = vpack.c.bf16 %v1536, %v1533
    %v1575 = vpack.c.bf16 %v1544, %v1541
    %v1576 = vpack.c.bf16 %v1552, %v1549
    %v1577 = vpack.c.bf16 %v1560, %v1557
    %v1578 = vpack.c.bf16 %v1568, %v1565
    %s1579 = scalar_lea.vmem [#allocation5], 64
    %v1580 = vld [vmem:[%s1579] sm:$0xf]
    %v1581 = vld [vmem:[%s1579 + $0x4] sm:$0xf]
    %v1582 = vld [vmem:[%s1579 + $0x8] sm:$0xf]
    %v1583 = vld [vmem:[%s1579 + $0xc] sm:$0xf]
    %v1584 = vld [vmem:[%s1579 + $0x10] sm:$0xf]
    %v1585 = vld [vmem:[%s1579 + $0x14] sm:$0xf]
    %v1586 = vld [vmem:[%s1579 + $0x18] sm:$0xf]
    %v1587 = vld [vmem:[%s1579 + $0x1c] sm:$0xf]
    %v1588 = vld [vmem:[%s1579 + $0x20] sm:$0xf]
    %v1589 = vld [vmem:[%s1579 + $0x24] sm:$0xf]
    %v1590 = vld [vmem:[%s1579 + $0x28] sm:$0xf]
    %v1591 = vld [vmem:[%s1579 + $0x2c] sm:$0xf]
    %v1592 = vld [vmem:[%s1579 + $0x30] sm:$0xf]
    %v1593 = vld [vmem:[%s1579 + $0x34] sm:$0xf]
    %v1594 = vld [vmem:[%s1579 + $0x38] sm:$0xf]
    %v1595 = vld [vmem:[%s1579 + $0x3c] sm:$0xf]
    %s1596 = scalar_lea.vmem %s6, 1
    %v1597 = vld [vmem:[%s1596] sm:$0x1]
    %v1599 = vlaneseq
    %v1600 = vshrl.u32 %v1599, 7
    %v1601 = vsub.s32 0, %v1600
    %v1602 = vrot.slane %v1597, %v1601
    %v1620 = vunpack.c.l.b16 %v1580
    %v1621 = vunpack.c.l.b16 %v1581
    %v1622 = vunpack.c.l.b16 %v1582
    %v1623 = vunpack.c.l.b16 %v1583
    %v1624 = vunpack.c.l.b16 %v1584
    %v1625 = vunpack.c.l.b16 %v1585
    %v1626 = vunpack.c.l.b16 %v1586
    %v1627 = vunpack.c.l.b16 %v1587
    %v1628 = vunpack.c.l.b16 %v1588
    %v1629 = vunpack.c.l.b16 %v1589
    %v1630 = vunpack.c.l.b16 %v1590
    %v1631 = vunpack.c.l.b16 %v1591
    %v1632 = vunpack.c.l.b16 %v1592
    %v1633 = vunpack.c.l.b16 %v1593
    %v1634 = vunpack.c.l.b16 %v1594
    %v1635 = vunpack.c.l.b16 %v1595
    %v1636 = vpack.c.b16 %v1621, %v1620
    %v1637 = vpack.c.b16 %v1623, %v1622
    %v1638 = vpack.c.b16 %v1625, %v1624
    %v1639 = vpack.c.b16 %v1627, %v1626
    %v1640 = vpack.c.b16 %v1629, %v1628
    %v1641 = vpack.c.b16 %v1631, %v1630
    %v1642 = vpack.c.b16 %v1633, %v1632
    %v1643 = vpack.c.b16 %v1635, %v1634
    %1652 = vmatprep.subr.bf16.mxu0 0
    %1653 = vmatpush1.bf16.msra.mxu0 %v1643
    %1654 = vmatprep.subr.bf16.mxu0 0
    %1655 = vmatpush1.bf16.msra.mxu0 %v1642
    %1656 = vmatprep.subr.bf16.mxu0 0
    %1657 = vmatpush1.bf16.msra.mxu0 %v1641
    %1658 = vmatprep.subr.bf16.mxu0 0
    %1659 = vmatpush1.bf16.msra.mxu0 %v1640
    %1660 = vmatprep.subr.bf16.mxu0 0
    %1661 = vmatpush1.bf16.msra.mxu0 %v1639
    %1662 = vmatprep.subr.bf16.mxu0 0
    %1663 = vmatpush1.bf16.msra.mxu0 %v1638
    %1664 = vmatprep.subr.bf16.mxu0 0
    %1665 = vmatpush1.bf16.msra.mxu0 %v1637
    %1666 = vmatprep.subr.bf16.mxu0 0
    %1667 = vmatpush1.bf16.msra.mxu0 %v1636
    %1668 = vmatprep.subr.bf16.mxu0 0
    %1669 = vmatpush2.bf16.msra.mxu0 0
    %1670 = vmatprep.subr.bf16.mxu0 0
    %1671 = vmatpush2.bf16.msra.mxu0 0
    %1672 = vmatprep.subr.bf16.mxu0 0
    %1673 = vmatpush2.bf16.msra.mxu0 0
    %1674 = vmatprep.subr.bf16.mxu0 0
    %1675 = vmatpush2.bf16.msra.mxu0 0
    %1676 = vmatprep.subr.bf16.mxu0 0
    %1677 = vmatpush2.bf16.msra.mxu0 0
    %1678 = vmatprep.subr.bf16.mxu0 0
    %1679 = vmatpush2.bf16.msra.mxu0 0
    %1680 = vmatprep.subr.bf16.mxu0 0
    %1681 = vmatpush2.bf16.msra.mxu0 0
    %1682 = vmatprep.subr.bf16.mxu0 0
    %1683 = vmatpush2.bf16.msra.mxu0 0
    %1684 = vmatprep.mubr.bf16.mxu0 0
    %1685 = vmatmul.mubr.bf16.gmra.mxu0 %v1571
    %v1686 = vpop.f32.mrf.mxu0
    %v1687 = vadd.f32 %v1602, %v1686
    %v1688 = vpop.f32.mrf.mxu0
    %v1689 = vpop.f32.mrf.mxu0
    %v1690 = vadd.f32 %v1602, %v1689
    %v1691 = vpop.f32.mrf.mxu0
    %1692 = vmatprep.mubr.bf16.mxu0 0
    %1693 = vmatmul.mubr.bf16.gmra.mxu0 %v1572
    %v1694 = vpop.f32.mrf.mxu0
    %v1695 = vadd.f32 %v1602, %v1694
    %v1696 = vpop.f32.mrf.mxu0
    %v1697 = vpop.f32.mrf.mxu0
    %v1698 = vadd.f32 %v1602, %v1697
    %v1699 = vpop.f32.mrf.mxu0
    %1700 = vmatprep.mubr.bf16.mxu0 0
    %1701 = vmatmul.mubr.bf16.gmra.mxu0 %v1573
    %v1702 = vpop.f32.mrf.mxu0
    %v1703 = vadd.f32 %v1602, %v1702
    %v1704 = vpop.f32.mrf.mxu0
    %v1705 = vpop.f32.mrf.mxu0
    %v1706 = vadd.f32 %v1602, %v1705
    %v1707 = vpop.f32.mrf.mxu0
    %1708 = vmatprep.mubr.bf16.mxu0 0
    %1709 = vmatmul.mubr.bf16.gmra.mxu0 %v1574
    %v1710 = vpop.f32.mrf.mxu0
    %v1711 = vadd.f32 %v1602, %v1710
    %v1712 = vpop.f32.mrf.mxu0
    %v1713 = vpop.f32.mrf.mxu0
    %v1714 = vadd.f32 %v1602, %v1713
    %v1715 = vpop.f32.mrf.mxu0
    %1716 = vmatprep.mubr.bf16.mxu0 0
    %1717 = vmatmul.mubr.bf16.gmra.mxu0 %v1575
    %v1718 = vpop.f32.mrf.mxu0
    %v1719 = vadd.f32 %v1602, %v1718
    %v1720 = vpop.f32.mrf.mxu0
    %v1721 = vpop.f32.mrf.mxu0
    %v1722 = vadd.f32 %v1602, %v1721
    %v1723 = vpop.f32.mrf.mxu0
    %1724 = vmatprep.mubr.bf16.mxu0 0
    %1725 = vmatmul.mubr.bf16.gmra.mxu0 %v1576
    %v1726 = vpop.f32.mrf.mxu0
    %v1727 = vadd.f32 %v1602, %v1726
    %v1728 = vpop.f32.mrf.mxu0
    %v1729 = vpop.f32.mrf.mxu0
    %v1730 = vadd.f32 %v1602, %v1729
    %v1731 = vpop.f32.mrf.mxu0
    %1732 = vmatprep.mubr.bf16.mxu0 0
    %1733 = vmatmul.mubr.bf16.gmra.mxu0 %v1577
    %v1734 = vpop.f32.mrf.mxu0
    %v1735 = vadd.f32 %v1602, %v1734
    %v1736 = vpop.f32.mrf.mxu0
    %v1737 = vpop.f32.mrf.mxu0
    %v1738 = vadd.f32 %v1602, %v1737
    %v1739 = vpop.f32.mrf.mxu0
    %1740 = vmatprep.mubr.bf16.mxu0 0
    %1741 = vmatmul.mubr.bf16.gmra.mxu0 %v1578
    %v1742 = vpop.f32.mrf.mxu0
    %v1743 = vadd.f32 %v1602, %v1742
    %v1744 = vpop.f32.mrf.mxu0
    %v1745 = vpop.f32.mrf.mxu0
    %v1746 = vadd.f32 %v1602, %v1745
    %v1747 = vpop.f32.mrf.mxu0
    %1748 = vdwg.mxu0
    %v1749 = vmax.f32 %v1687, 0.0
    %v1750 = vmax.f32 %v1690, 0.0
    %v1751 = vmax.f32 %v1695, 0.0
    %v1752 = vmax.f32 %v1698, 0.0
    %v1753 = vmax.f32 %v1703, 0.0
    %v1754 = vmax.f32 %v1706, 0.0
    %v1755 = vmax.f32 %v1711, 0.0
    %v1756 = vmax.f32 %v1714, 0.0
    %v1757 = vmax.f32 %v1719, 0.0
    %v1758 = vmax.f32 %v1722, 0.0
    %v1759 = vmax.f32 %v1727, 0.0
    %v1760 = vmax.f32 %v1730, 0.0
    %v1761 = vmax.f32 %v1735, 0.0
    %v1762 = vmax.f32 %v1738, 0.0
    %v1763 = vmax.f32 %v1743, 0.0
    %v1764 = vmax.f32 %v1746, 0.0
    %v1765 = vpack.c.bf16 %v1750, %v1749
    %v1766 = vpack.c.bf16 %v1752, %v1751
    %v1767 = vpack.c.bf16 %v1754, %v1753
    %v1768 = vpack.c.bf16 %v1756, %v1755
    %v1769 = vpack.c.bf16 %v1758, %v1757
    %v1770 = vpack.c.bf16 %v1760, %v1759
    %v1771 = vpack.c.bf16 %v1762, %v1761
    %v1772 = vpack.c.bf16 %v1764, %v1763
    %s1773 = scalar_lea.vmem [#allocation7], 64
    %v1774 = vld [vmem:[%s1773] sm:$0xf]
    %v1775 = vld [vmem:[%s1773 + $0x4] sm:$0xf]
    %v1776 = vld [vmem:[%s1773 + $0x8] sm:$0xf]
    %v1777 = vld [vmem:[%s1773 + $0xc] sm:$0xf]
    %v1778 = vld [vmem:[%s1773 + $0x10] sm:$0xf]
    %v1779 = vld [vmem:[%s1773 + $0x14] sm:$0xf]
    %v1780 = vld [vmem:[%s1773 + $0x18] sm:$0xf]
    %v1781 = vld [vmem:[%s1773 + $0x1c] sm:$0xf]
    %v1782 = vld [vmem:[%s1773 + $0x20] sm:$0xf]
    %v1783 = vld [vmem:[%s1773 + $0x24] sm:$0xf]
    %v1784 = vld [vmem:[%s1773 + $0x28] sm:$0xf]
    %v1785 = vld [vmem:[%s1773 + $0x2c] sm:$0xf]
    %v1786 = vld [vmem:[%s1773 + $0x30] sm:$0xf]
    %v1787 = vld [vmem:[%s1773 + $0x34] sm:$0xf]
    %v1788 = vld [vmem:[%s1773 + $0x38] sm:$0xf]
    %v1789 = vld [vmem:[%s1773 + $0x3c] sm:$0xf]
    %s1790 = scalar_lea.vmem %s8, 1
    %v1791 = vld [vmem:[%s1790] sm:$0x1]
    %v1793 = vlaneseq
    %v1794 = vshrl.u32 %v1793, 7
    %v1795 = vsub.s32 0, %v1794
    %v1796 = vrot.slane %v1791, %v1795
    %v1814 = vunpack.c.l.b16 %v1774
    %v1815 = vunpack.c.l.b16 %v1775
    %v1816 = vunpack.c.l.b16 %v1776
    %v1817 = vunpack.c.l.b16 %v1777
    %v1818 = vunpack.c.l.b16 %v1778
    %v1819 = vunpack.c.l.b16 %v1779
    %v1820 = vunpack.c.l.b16 %v1780
    %v1821 = vunpack.c.l.b16 %v1781
    %v1822 = vunpack.c.l.b16 %v1782
    %v1823 = vunpack.c.l.b16 %v1783
    %v1824 = vunpack.c.l.b16 %v1784
    %v1825 = vunpack.c.l.b16 %v1785
    %v1826 = vunpack.c.l.b16 %v1786
    %v1827 = vunpack.c.l.b16 %v1787
    %v1828 = vunpack.c.l.b16 %v1788
    %v1829 = vunpack.c.l.b16 %v1789
    %v1830 = vpack.c.b16 %v1815, %v1814
    %v1831 = vpack.c.b16 %v1817, %v1816
    %v1832 = vpack.c.b16 %v1819, %v1818
    %v1833 = vpack.c.b16 %v1821, %v1820
    %v1834 = vpack.c.b16 %v1823, %v1822
    %v1835 = vpack.c.b16 %v1825, %v1824
    %v1836 = vpack.c.b16 %v1827, %v1826
    %v1837 = vpack.c.b16 %v1829, %v1828
    %1846 = vmatprep.subr.bf16.mxu0 0
    %1847 = vmatpush1.bf16.msra.mxu0 %v1837
    %1848 = vmatprep.subr.bf16.mxu0 0
    %1849 = vmatpush1.bf16.msra.mxu0 %v1836
    %1850 = vmatprep.subr.bf16.mxu0 0
    %1851 = vmatpush1.bf16.msra.mxu0 %v1835
    %1852 = vmatprep.subr.bf16.mxu0 0
    %1853 = vmatpush1.bf16.msra.mxu0 %v1834
    %1854 = vmatprep.subr.bf16.mxu0 0
    %1855 = vmatpush1.bf16.msra.mxu0 %v1833
    %1856 = vmatprep.subr.bf16.mxu0 0
    %1857 = vmatpush1.bf16.msra.mxu0 %v1832
    %1858 = vmatprep.subr.bf16.mxu0 0
    %1859 = vmatpush1.bf16.msra.mxu0 %v1831
    %1860 = vmatprep.subr.bf16.mxu0 0
    %1861 = vmatpush1.bf16.msra.mxu0 %v1830
    %1862 = vmatprep.subr.bf16.mxu0 0
    %1863 = vmatpush2.bf16.msra.mxu0 0
    %1864 = vmatprep.subr.bf16.mxu0 0
    %1865 = vmatpush2.bf16.msra.mxu0 0
    %1866 = vmatprep.subr.bf16.mxu0 0
    %1867 = vmatpush2.bf16.msra.mxu0 0
    %1868 = vmatprep.subr.bf16.mxu0 0
    %1869 = vmatpush2.bf16.msra.mxu0 0
    %1870 = vmatprep.subr.bf16.mxu0 0
    %1871 = vmatpush2.bf16.msra.mxu0 0
    %1872 = vmatprep.subr.bf16.mxu0 0
    %1873 = vmatpush2.bf16.msra.mxu0 0
    %1874 = vmatprep.subr.bf16.mxu0 0
    %1875 = vmatpush2.bf16.msra.mxu0 0
    %1876 = vmatprep.subr.bf16.mxu0 0
    %1877 = vmatpush2.bf16.msra.mxu0 0
    %1878 = vmatprep.mubr.bf16.mxu0 0
    %1879 = vmatmul.mubr.bf16.gmra.mxu0 %v1765
    %v1880 = vpop.f32.mrf.mxu0
    %v1881 = vadd.f32 %v1796, %v1880
    %v1882 = vpop.f32.mrf.mxu0
    %v1883 = vpop.f32.mrf.mxu0
    %v1884 = vadd.f32 %v1796, %v1883
    %v1885 = vpop.f32.mrf.mxu0
    %1886 = vmatprep.mubr.bf16.mxu0 0
    %1887 = vmatmul.mubr.bf16.gmra.mxu0 %v1766
    %v1888 = vpop.f32.mrf.mxu0
    %v1889 = vadd.f32 %v1796, %v1888
    %v1890 = vpop.f32.mrf.mxu0
    %v1891 = vpop.f32.mrf.mxu0
    %v1892 = vadd.f32 %v1796, %v1891
    %v1893 = vpop.f32.mrf.mxu0
    %1894 = vmatprep.mubr.bf16.mxu0 0
    %1895 = vmatmul.mubr.bf16.gmra.mxu0 %v1767
    %v1896 = vpop.f32.mrf.mxu0
    %v1897 = vadd.f32 %v1796, %v1896
    %v1898 = vpop.f32.mrf.mxu0
    %v1899 = vpop.f32.mrf.mxu0
    %v1900 = vadd.f32 %v1796, %v1899
    %v1901 = vpop.f32.mrf.mxu0
    %1902 = vmatprep.mubr.bf16.mxu0 0
    %1903 = vmatmul.mubr.bf16.gmra.mxu0 %v1768
    %v1904 = vpop.f32.mrf.mxu0
    %v1905 = vadd.f32 %v1796, %v1904
    %v1906 = vpop.f32.mrf.mxu0
    %v1907 = vpop.f32.mrf.mxu0
    %v1908 = vadd.f32 %v1796, %v1907
    %v1909 = vpop.f32.mrf.mxu0
    %1910 = vmatprep.mubr.bf16.mxu0 0
    %1911 = vmatmul.mubr.bf16.gmra.mxu0 %v1769
    %v1912 = vpop.f32.mrf.mxu0
    %v1913 = vadd.f32 %v1796, %v1912
    %v1914 = vpop.f32.mrf.mxu0
    %v1915 = vpop.f32.mrf.mxu0
    %v1916 = vadd.f32 %v1796, %v1915
    %v1917 = vpop.f32.mrf.mxu0
    %1918 = vmatprep.mubr.bf16.mxu0 0
    %1919 = vmatmul.mubr.bf16.gmra.mxu0 %v1770
    %v1920 = vpop.f32.mrf.mxu0
    %v1921 = vadd.f32 %v1796, %v1920
    %v1922 = vpop.f32.mrf.mxu0
    %v1923 = vpop.f32.mrf.mxu0
    %v1924 = vadd.f32 %v1796, %v1923
    %v1925 = vpop.f32.mrf.mxu0
    %1926 = vmatprep.mubr.bf16.mxu0 0
    %1927 = vmatmul.mubr.bf16.gmra.mxu0 %v1771
    %v1928 = vpop.f32.mrf.mxu0
    %v1929 = vadd.f32 %v1796, %v1928
    %v1930 = vpop.f32.mrf.mxu0
    %v1931 = vpop.f32.mrf.mxu0
    %v1932 = vadd.f32 %v1796, %v1931
    %v1933 = vpop.f32.mrf.mxu0
    %1934 = vmatprep.mubr.bf16.mxu0 0
    %1935 = vmatmul.mubr.bf16.gmra.mxu0 %v1772
    %v1936 = vpop.f32.mrf.mxu0
    %v1937 = vadd.f32 %v1796, %v1936
    %v1938 = vpop.f32.mrf.mxu0
    %v1939 = vpop.f32.mrf.mxu0
    %v1940 = vadd.f32 %v1796, %v1939
    %v1941 = vpop.f32.mrf.mxu0
    %1942 = vdwg.mxu0
    %v1943 = vmax.f32 %v1881, 0.0
    %v1944 = vmax.f32 %v1884, 0.0
    %v1945 = vmax.f32 %v1889, 0.0
    %v1946 = vmax.f32 %v1892, 0.0
    %v1947 = vmax.f32 %v1897, 0.0
    %v1948 = vmax.f32 %v1900, 0.0
    %v1949 = vmax.f32 %v1905, 0.0
    %v1950 = vmax.f32 %v1908, 0.0
    %v1951 = vmax.f32 %v1913, 0.0
    %v1952 = vmax.f32 %v1916, 0.0
    %v1953 = vmax.f32 %v1921, 0.0
    %v1954 = vmax.f32 %v1924, 0.0
    %v1955 = vmax.f32 %v1929, 0.0
    %v1956 = vmax.f32 %v1932, 0.0
    %v1957 = vmax.f32 %v1937, 0.0
    %v1958 = vmax.f32 %v1940, 0.0
    %v1959 = vpack.c.bf16 %v1944, %v1943
    %v1960 = vpack.c.bf16 %v1946, %v1945
    %v1961 = vpack.c.bf16 %v1948, %v1947
    %v1962 = vpack.c.bf16 %v1950, %v1949
    %v1963 = vpack.c.bf16 %v1952, %v1951
    %v1964 = vpack.c.bf16 %v1954, %v1953
    %v1965 = vpack.c.bf16 %v1956, %v1955
    %v1966 = vpack.c.bf16 %v1958, %v1957
    %v1967 = vunpack.c.l.bf16 %v970
    %1968 = vmatprep.subr.bf16.mxu0 0
    %1969 = vmatpush1.bf16.msra.mxu0 %v1966
    %1970 = vmatprep.subr.bf16.mxu0 0
    %1971 = vmatpush1.bf16.msra.mxu0 %v1965
    %1972 = vmatprep.subr.bf16.mxu0 0
    %1973 = vmatpush1.bf16.msra.mxu0 %v1964
    %1974 = vmatprep.subr.bf16.mxu0 0
    %1975 = vmatpush1.bf16.msra.mxu0 %v1963
    %1976 = vmatprep.subr.bf16.mxu0 0
    %1977 = vmatpush1.bf16.msra.mxu0 %v1962
    %1978 = vmatprep.subr.bf16.mxu0 0
    %1979 = vmatpush1.bf16.msra.mxu0 %v1961
    %1980 = vmatprep.subr.bf16.mxu0 0
    %1981 = vmatpush1.bf16.msra.mxu0 %v1960
    %1982 = vmatprep.subr.bf16.mxu0 0
    %1983 = vmatpush1.bf16.msra.mxu0 %v1959
    %1984 = vmatprep.subr.bf16.mxu0 0
    %1985 = vmatpush2.bf16.msra.mxu0 0
    %1986 = vmatprep.subr.bf16.mxu0 0
    %1987 = vmatpush2.bf16.msra.mxu0 0
    %1988 = vmatprep.subr.bf16.mxu0 0
    %1989 = vmatpush2.bf16.msra.mxu0 0
    %1990 = vmatprep.subr.bf16.mxu0 0
    %1991 = vmatpush2.bf16.msra.mxu0 0
    %1992 = vmatprep.subr.bf16.mxu0 0
    %1993 = vmatpush2.bf16.msra.mxu0 0
    %1994 = vmatprep.subr.bf16.mxu0 0
    %1995 = vmatpush2.bf16.msra.mxu0 0
    %1996 = vmatprep.subr.bf16.mxu0 0
    %1997 = vmatpush2.bf16.msra.mxu0 0
    %1998 = vmatprep.subr.bf16.mxu0 0
    %1999 = vmatpush2.bf16.msra.mxu0 0
    %2000 = vmatprep.mubr.bf16.mxu0 0
    %2001 = vmatmul.mubr.bf16.gmra.mxu0 %v131
    %v2002 = vpop.f32.mrf.mxu0
    %v2003 = vadd.f32 %v1967, %v2002
    %v2004 = vpop.f32.mrf.mxu0
    %v2005 = vpop.f32.mrf.mxu0
    %v2006 = vpop.f32.mrf.mxu0
    %2007 = vdwg.mxu0
    %v2008 = vpack.c.bf16 %v2003, %v2003
    %s2009 = scalar_lea.vmem [#allocation8], 64
    %v2010 = vld [vmem:[%s2009] sm:$0xf]
    %v2011 = vld [vmem:[%s2009 + $0x4] sm:$0xf]
    %v2012 = vld [vmem:[%s2009 + $0x8] sm:$0xf]
    %v2013 = vld [vmem:[%s2009 + $0xc] sm:$0xf]
    %v2014 = vld [vmem:[%s2009 + $0x10] sm:$0xf]
    %v2015 = vld [vmem:[%s2009 + $0x14] sm:$0xf]
    %v2016 = vld [vmem:[%s2009 + $0x18] sm:$0xf]
    %v2017 = vld [vmem:[%s2009 + $0x1c] sm:$0xf]
    %v2018 = vld [vmem:[%s2009 + $0x20] sm:$0xf]
    %v2019 = vld [vmem:[%s2009 + $0x24] sm:$0xf]
    %v2020 = vld [vmem:[%s2009 + $0x28] sm:$0xf]
    %v2021 = vld [vmem:[%s2009 + $0x2c] sm:$0xf]
    %v2022 = vld [vmem:[%s2009 + $0x30] sm:$0xf]
    %v2023 = vld [vmem:[%s2009 + $0x34] sm:$0xf]
    %v2024 = vld [vmem:[%s2009 + $0x38] sm:$0xf]
    %v2025 = vld [vmem:[%s2009 + $0x3c] sm:$0xf]
    %s2026 = scalar_lea.vmem %s10, 1
    %v2027 = vld [vmem:[%s2026] sm:$0x1]
    %v2029 = vlaneseq
    %v2030 = vshrl.u32 %v2029, 7
    %v2031 = vsub.s32 0, %v2030
    %v2032 = vrot.slane %v2027, %v2031
    %v2050 = vunpack.c.l.b16 %v2010
    %v2051 = vunpack.c.l.b16 %v2011
    %v2052 = vunpack.c.l.b16 %v2012
    %v2053 = vunpack.c.l.b16 %v2013
    %v2054 = vunpack.c.l.b16 %v2014
    %v2055 = vunpack.c.l.b16 %v2015
    %v2056 = vunpack.c.l.b16 %v2016
    %v2057 = vunpack.c.l.b16 %v2017
    %v2058 = vunpack.c.l.b16 %v2018
    %v2059 = vunpack.c.l.b16 %v2019
    %v2060 = vunpack.c.l.b16 %v2020
    %v2061 = vunpack.c.l.b16 %v2021
    %v2062 = vunpack.c.l.b16 %v2022
    %v2063 = vunpack.c.l.b16 %v2023
    %v2064 = vunpack.c.l.b16 %v2024
    %v2065 = vunpack.c.l.b16 %v2025
    %v2066 = vpack.c.b16 %v2051, %v2050
    %v2067 = vpack.c.b16 %v2053, %v2052
    %v2068 = vpack.c.b16 %v2055, %v2054
    %v2069 = vpack.c.b16 %v2057, %v2056
    %v2070 = vpack.c.b16 %v2059, %v2058
    %v2071 = vpack.c.b16 %v2061, %v2060
    %v2072 = vpack.c.b16 %v2063, %v2062
    %v2073 = vpack.c.b16 %v2065, %v2064
    %2082 = vmatprep.subr.bf16.mxu0 0
    %2083 = vmatpush1.bf16.msra.mxu0 %v2073
    %2084 = vmatprep.subr.bf16.mxu0 0
    %2085 = vmatpush1.bf16.msra.mxu0 %v2072
    %2086 = vmatprep.subr.bf16.mxu0 0
    %2087 = vmatpush1.bf16.msra.mxu0 %v2071
    %2088 = vmatprep.subr.bf16.mxu0 0
    %2089 = vmatpush1.bf16.msra.mxu0 %v2070
    %2090 = vmatprep.subr.bf16.mxu0 0
    %2091 = vmatpush1.bf16.msra.mxu0 %v2069
    %2092 = vmatprep.subr.bf16.mxu0 0
    %2093 = vmatpush1.bf16.msra.mxu0 %v2068
    %2094 = vmatprep.subr.bf16.mxu0 0
    %2095 = vmatpush1.bf16.msra.mxu0 %v2067
    %2096 = vmatprep.subr.bf16.mxu0 0
    %2097 = vmatpush1.bf16.msra.mxu0 %v2066
    %2098 = vmatprep.subr.bf16.mxu0 0
    %2099 = vmatpush2.bf16.msra.mxu0 0
    %2100 = vmatprep.subr.bf16.mxu0 0
    %2101 = vmatpush2.bf16.msra.mxu0 0
    %2102 = vmatprep.subr.bf16.mxu0 0
    %2103 = vmatpush2.bf16.msra.mxu0 0
    %2104 = vmatprep.subr.bf16.mxu0 0
    %2105 = vmatpush2.bf16.msra.mxu0 0
    %2106 = vmatprep.subr.bf16.mxu0 0
    %2107 = vmatpush2.bf16.msra.mxu0 0
    %2108 = vmatprep.subr.bf16.mxu0 0
    %2109 = vmatpush2.bf16.msra.mxu0 0
    %2110 = vmatprep.subr.bf16.mxu0 0
    %2111 = vmatpush2.bf16.msra.mxu0 0
    %2112 = vmatprep.subr.bf16.mxu0 0
    %2113 = vmatpush2.bf16.msra.mxu0 0
    %2114 = vmatprep.mubr.bf16.mxu0 0
    %2115 = vmatmul.mubr.bf16.gmra.mxu0 %v2008
    %v2116 = vpop.f32.mrf.mxu0
    %v2117 = vadd.f32 %v2032, %v2116
    %v2118 = vpop.f32.mrf.mxu0
    %v2119 = vpop.f32.mrf.mxu0
    %v2120 = vpop.f32.mrf.mxu0
    %2121 = vdwg.mxu0
    %v2122 = vmax.f32 %v2117, 0.0
    %v2123 = vpack.c.bf16 %v2122, %v2122
    %2124 = vmatprep.subr.bf16.mxu0 0
    %2125 = vmatpush1.bf16.msra.mxu0 %v1010
    %2126 = vmatprep.subr.bf16.mxu0 0
    %2127 = vmatpush1.bf16.msra.mxu0 %v1009
    %2128 = vmatprep.subr.bf16.mxu0 0
    %2129 = vmatpush1.bf16.msra.mxu0 %v1008
    %2130 = vmatprep.subr.bf16.mxu0 0
    %2131 = vmatpush1.bf16.msra.mxu0 %v1007
    %2132 = vmatprep.subr.bf16.mxu0 0
    %2133 = vmatpush1.bf16.msra.mxu0 %v1006
    %2134 = vmatprep.subr.bf16.mxu0 0
    %2135 = vmatpush1.bf16.msra.mxu0 %v1005
    %2136 = vmatprep.subr.bf16.mxu0 0
    %2137 = vmatpush1.bf16.msra.mxu0 %v1004
    %2138 = vmatprep.subr.bf16.mxu0 0
    %2139 = vmatpush1.bf16.msra.mxu0 %v1003
    %2140 = vmatprep.subr.bf16.mxu0 0
    %2141 = vmatpush2.bf16.msra.mxu0 0
    %2142 = vmatprep.subr.bf16.mxu0 0
    %2143 = vmatpush2.bf16.msra.mxu0 0
    %2144 = vmatprep.subr.bf16.mxu0 0
    %2145 = vmatpush2.bf16.msra.mxu0 0
    %2146 = vmatprep.subr.bf16.mxu0 0
    %2147 = vmatpush2.bf16.msra.mxu0 0
    %2148 = vmatprep.subr.bf16.mxu0 0
    %2149 = vmatpush2.bf16.msra.mxu0 0
    %2150 = vmatprep.subr.bf16.mxu0 0
    %2151 = vmatpush2.bf16.msra.mxu0 0
    %2152 = vmatprep.subr.bf16.mxu0 0
    %2153 = vmatpush2.bf16.msra.mxu0 0
    %2154 = vmatprep.subr.bf16.mxu0 0
    %2155 = vmatpush2.bf16.msra.mxu0 0
    %2156 = vmatprep.mubr.bf16.mxu0 0
    %2157 = vmatmul.mubr.bf16.gmra.mxu0 %v1164
    %v2158 = vpop.f32.mrf.mxu0
    %v2159 = vadd.f32 0.0, %v2158
    %v2160 = vpop.f32.mrf.mxu0
    %v2161 = vpop.f32.mrf.mxu0
    %v2162 = vadd.f32 0.0, %v2161
    %v2163 = vpop.f32.mrf.mxu0
    %2164 = vmatprep.mubr.bf16.mxu0 0
    %2165 = vmatmul.mubr.bf16.gmra.mxu0 %v1165
    %v2166 = vpop.f32.mrf.mxu0
    %v2167 = vadd.f32 0.0, %v2166
    %v2168 = vpop.f32.mrf.mxu0
    %v2169 = vpop.f32.mrf.mxu0
    %v2170 = vadd.f32 0.0, %v2169
    %v2171 = vpop.f32.mrf.mxu0
    %2172 = vmatprep.mubr.bf16.mxu0 0
    %2173 = vmatmul.mubr.bf16.gmra.mxu0 %v1166
    %v2174 = vpop.f32.mrf.mxu0
    %v2175 = vadd.f32 0.0, %v2174
    %v2176 = vpop.f32.mrf.mxu0
    %v2177 = vpop.f32.mrf.mxu0
    %v2178 = vadd.f32 0.0, %v2177
    %v2179 = vpop.f32.mrf.mxu0
    %2180 = vmatprep.mubr.bf16.mxu0 0
    %2181 = vmatmul.mubr.bf16.gmra.mxu0 %v1167
    %v2182 = vpop.f32.mrf.mxu0
    %v2183 = vadd.f32 0.0, %v2182
    %v2184 = vpop.f32.mrf.mxu0
    %v2185 = vpop.f32.mrf.mxu0
    %v2186 = vadd.f32 0.0, %v2185
    %v2187 = vpop.f32.mrf.mxu0
    %2188 = vmatprep.mubr.bf16.mxu0 0
    %2189 = vmatmul.mubr.bf16.gmra.mxu0 %v1168
    %v2190 = vpop.f32.mrf.mxu0
    %v2191 = vadd.f32 0.0, %v2190
    %v2192 = vpop.f32.mrf.mxu0
    %v2193 = vpop.f32.mrf.mxu0
    %v2194 = vadd.f32 0.0, %v2193
    %v2195 = vpop.f32.mrf.mxu0
    %2196 = vmatprep.mubr.bf16.mxu0 0
    %2197 = vmatmul.mubr.bf16.gmra.mxu0 %v1169
    %v2198 = vpop.f32.mrf.mxu0
    %v2199 = vadd.f32 0.0, %v2198
    %v2200 = vpop.f32.mrf.mxu0
    %v2201 = vpop.f32.mrf.mxu0
    %v2202 = vadd.f32 0.0, %v2201
    %v2203 = vpop.f32.mrf.mxu0
    %2204 = vmatprep.mubr.bf16.mxu0 0
    %2205 = vmatmul.mubr.bf16.gmra.mxu0 %v1170
    %v2206 = vpop.f32.mrf.mxu0
    %v2207 = vadd.f32 0.0, %v2206
    %v2208 = vpop.f32.mrf.mxu0
    %v2209 = vpop.f32.mrf.mxu0
    %v2210 = vadd.f32 0.0, %v2209
    %v2211 = vpop.f32.mrf.mxu0
    %2212 = vmatprep.mubr.bf16.mxu0 0
    %2213 = vmatmul.mubr.bf16.gmra.mxu0 %v1171
    %v2214 = vpop.f32.mrf.mxu0
    %v2215 = vadd.f32 0.0, %v2214
    %v2216 = vpop.f32.mrf.mxu0
    %v2217 = vpop.f32.mrf.mxu0
    %v2218 = vadd.f32 0.0, %v2217
    %v2219 = vpop.f32.mrf.mxu0
    %2220 = vdwg.mxu0
    %vm2221 = vcmp.gt.f32.partialorder %v2159, 0.0
    %vm2222 = vcmp.gt.f32.partialorder %v2162, 0.0
    %vm2223 = vcmp.gt.f32.partialorder %v2167, 0.0
    %vm2224 = vcmp.gt.f32.partialorder %v2170, 0.0
    %vm2225 = vcmp.gt.f32.partialorder %v2175, 0.0
    %vm2226 = vcmp.gt.f32.partialorder %v2178, 0.0
    %vm2227 = vcmp.gt.f32.partialorder %v2183, 0.0
    %vm2228 = vcmp.gt.f32.partialorder %v2186, 0.0
    %vm2229 = vcmp.gt.f32.partialorder %v2191, 0.0
    %vm2230 = vcmp.gt.f32.partialorder %v2194, 0.0
    %vm2231 = vcmp.gt.f32.partialorder %v2199, 0.0
    %vm2232 = vcmp.gt.f32.partialorder %v2202, 0.0
    %vm2233 = vcmp.gt.f32.partialorder %v2207, 0.0
    %vm2234 = vcmp.gt.f32.partialorder %v2210, 0.0
    %vm2235 = vcmp.gt.f32.partialorder %v2215, 0.0
    %vm2236 = vcmp.gt.f32.partialorder %v2218, 0.0
    %v2237 = vsel %vm2221, 1, 0
    %v2238 = vsel %vm2222, 1, 0
    %v2239 = vsel %vm2223, 1, 0
    %v2240 = vsel %vm2224, 1, 0
    %v2241 = vsel %vm2225, 1, 0
    %v2242 = vsel %vm2226, 1, 0
    %v2243 = vsel %vm2227, 1, 0
    %v2244 = vsel %vm2228, 1, 0
    %v2245 = vsel %vm2229, 1, 0
    %v2246 = vsel %vm2230, 1, 0
    %v2247 = vsel %vm2231, 1, 0
    %v2248 = vsel %vm2232, 1, 0
    %v2249 = vsel %vm2233, 1, 0
    %v2250 = vsel %vm2234, 1, 0
    %v2251 = vsel %vm2235, 1, 0
    %v2252 = vsel %vm2236, 1, 0
    %v2253 = vcvt.s32.f32 %v2237
    %v2254 = vcvt.s32.f32 %v2238
    %v2255 = vcvt.s32.f32 %v2239
    %v2256 = vcvt.s32.f32 %v2240
    %v2257 = vcvt.s32.f32 %v2241
    %v2258 = vcvt.s32.f32 %v2242
    %v2259 = vcvt.s32.f32 %v2243
    %v2260 = vcvt.s32.f32 %v2244
    %v2261 = vcvt.s32.f32 %v2245
    %v2262 = vcvt.s32.f32 %v2246
    %v2263 = vcvt.s32.f32 %v2247
    %v2264 = vcvt.s32.f32 %v2248
    %v2265 = vcvt.s32.f32 %v2249
    %v2266 = vcvt.s32.f32 %v2250
    %v2267 = vcvt.s32.f32 %v2251
    %v2268 = vcvt.s32.f32 %v2252
    %v2269 = vpack.c.bf16 %v2254, %v2253
    %v2270 = vpack.c.bf16 %v2256, %v2255
    %v2271 = vpack.c.bf16 %v2258, %v2257
    %v2272 = vpack.c.bf16 %v2260, %v2259
    %v2273 = vpack.c.bf16 %v2262, %v2261
    %v2274 = vpack.c.bf16 %v2264, %v2263
    %v2275 = vpack.c.bf16 %v2266, %v2265
    %v2276 = vpack.c.bf16 %v2268, %v2267
    %v2285 = vunpack.c.l.b16 %v2269
    %v2286 = vunpack.c.h.b16 %v2269
    %v2287 = vunpack.c.l.b16 %v2270
    %v2288 = vunpack.c.h.b16 %v2270
    %v2289 = vunpack.c.l.b16 %v2271
    %v2290 = vunpack.c.h.b16 %v2271
    %v2291 = vunpack.c.l.b16 %v2272
    %v2292 = vunpack.c.h.b16 %v2272
    %v2293 = vunpack.c.l.b16 %v2273
    %v2294 = vunpack.c.h.b16 %v2273
    %v2295 = vunpack.c.l.b16 %v2274
    %v2296 = vunpack.c.h.b16 %v2274
    %v2297 = vunpack.c.l.b16 %v2275
    %v2298 = vunpack.c.h.b16 %v2275
    %v2299 = vunpack.c.l.b16 %v2276
    %v2300 = vunpack.c.h.b16 %v2276
    %v2301 = vpack.c.b16 %v2285, %v2285
    %v2302 = vpack.c.b16 %v2286, %v2286
    %v2303 = vpack.c.b16 %v2287, %v2287
    %v2304 = vpack.c.b16 %v2288, %v2288
    %v2305 = vpack.c.b16 %v2289, %v2289
    %v2306 = vpack.c.b16 %v2290, %v2290
    %v2307 = vpack.c.b16 %v2291, %v2291
    %v2308 = vpack.c.b16 %v2292, %v2292
    %v2309 = vpack.c.b16 %v2293, %v2293
    %v2310 = vpack.c.b16 %v2294, %v2294
    %v2311 = vpack.c.b16 %v2295, %v2295
    %v2312 = vpack.c.b16 %v2296, %v2296
    %v2313 = vpack.c.b16 %v2297, %v2297
    %v2314 = vpack.c.b16 %v2298, %v2298
    %v2315 = vpack.c.b16 %v2299, %v2299
    %v2316 = vpack.c.b16 %v2300, %v2300
    %v2333 = vmax.bf16 %v1228, %v2301
    %v2334 = vmax.bf16 %v1229, %v2302
    %v2335 = vmax.bf16 %v1230, %v2303
    %v2336 = vmax.bf16 %v1231, %v2304
    %v2337 = vmax.bf16 %v1232, %v2305
    %v2338 = vmax.bf16 %v1233, %v2306
    %v2339 = vmax.bf16 %v1234, %v2307
    %v2340 = vmax.bf16 %v1235, %v2308
    %v2341 = vmax.bf16 %v1236, %v2309
    %v2342 = vmax.bf16 %v1237, %v2310
    %v2343 = vmax.bf16 %v1238, %v2311
    %v2344 = vmax.bf16 %v1239, %v2312
    %v2345 = vmax.bf16 %v1240, %v2313
    %v2346 = vmax.bf16 %v1241, %v2314
    %v2347 = vmax.bf16 %v1242, %v2315
    %v2348 = vmax.bf16 %v1243, %v2316
    %v2349 = vsel %vm200, 1066221453, %v2333
    %v2350 = vsel %vm201, 1066221453, %v2334
    %v2351 = vsel %vm202, 1066221453, %v2335
    %v2352 = vsel %vm203, 1066221453, %v2336
    %v2353 = vsel %vm204, 1066221453, %v2337
    %v2354 = vsel %vm205, 1066221453, %v2338
    %v2355 = vsel %vm206, 1066221453, %v2339
    %v2356 = vsel %vm207, 1066221453, %v2340
    %v2357 = vsel %vm208, 1066221453, %v2341
    %v2358 = vsel %vm209, 1066221453, %v2342
    %v2359 = vsel %vm210, 1066221453, %v2343
    %v2360 = vsel %vm211, 1066221453, %v2344
    %v2361 = vsel %vm212, 1066221453, %v2345
    %v2362 = vsel %vm213, 1066221453, %v2346
    %v2363 = vsel %vm214, 1066221453, %v2347
    %v2364 = vsel %vm215, 1066221453, %v2348
    %v2366 = vsel %vm1325, %v2123, 0
    %2368 = vmatprep.subr.bf16.mxu0 0
    %2369 = vmatpush1.bf16.msra.mxu0 0
    %2370 = vmatprep.subr.bf16.mxu0 0
    %2371 = vmatpush1.bf16.msra.mxu0 0
    %2372 = vmatprep.subr.bf16.mxu0 0
    %2373 = vmatpush1.bf16.msra.mxu0 0
    %2374 = vmatprep.subr.bf16.mxu0 0
    %2375 = vmatpush1.bf16.msra.mxu0 0
    %2376 = vmatprep.subr.bf16.mxu0 0
    %2377 = vmatpush1.bf16.msra.mxu0 0
    %2378 = vmatprep.subr.bf16.mxu0 0
    %2379 = vmatpush1.bf16.msra.mxu0 0
    %2380 = vmatprep.subr.bf16.mxu0 0
    %2381 = vmatpush1.bf16.msra.mxu0 0
    %2382 = vmatprep.subr.bf16.mxu0 0
    %2383 = vmatpush1.bf16.msra.mxu0 %v2366
    %2384 = vmatprep.subr.bf16.mxu0 0
    %2385 = vmatpush2.bf16.msra.mxu0 0
    %2386 = vmatprep.subr.bf16.mxu0 0
    %2387 = vmatpush2.bf16.msra.mxu0 0
    %2388 = vmatprep.subr.bf16.mxu0 0
    %2389 = vmatpush2.bf16.msra.mxu0 0
    %2390 = vmatprep.subr.bf16.mxu0 0
    %2391 = vmatpush2.bf16.msra.mxu0 0
    %2392 = vmatprep.subr.bf16.mxu0 0
    %2393 = vmatpush2.bf16.msra.mxu0 0
    %2394 = vmatprep.subr.bf16.mxu0 0
    %2395 = vmatpush2.bf16.msra.mxu0 0
    %2396 = vmatprep.subr.bf16.mxu0 0
    %2397 = vmatpush2.bf16.msra.mxu0 0
    %2398 = vmatprep.subr.bf16.mxu0 0
    %2399 = vmatpush2.bf16.msra.mxu0 0
    %2400 = vmatprep.mubr.bf16.mxu0 0
    %2401 = vmatmul.mubr.bf16.gmra.mxu0 %v1302
    %v2402 = vpop.f32.mrf.mxu0
    %v2403 = vadd.f32 0.0, %v2402
    %v2404 = vpop.f32.mrf.mxu0
    %v2405 = vpop.f32.mrf.mxu0
    %v2406 = vadd.f32 0.0, %v2405
    %v2407 = vpop.f32.mrf.mxu0
    %2408 = vmatprep.mubr.bf16.mxu0 0
    %2409 = vmatmul.mubr.bf16.gmra.mxu0 %v1305
    %v2410 = vpop.f32.mrf.mxu0
    %v2411 = vadd.f32 0.0, %v2410
    %v2412 = vpop.f32.mrf.mxu0
    %v2413 = vpop.f32.mrf.mxu0
    %v2414 = vadd.f32 0.0, %v2413
    %v2415 = vpop.f32.mrf.mxu0
    %2416 = vmatprep.mubr.bf16.mxu0 0
    %2417 = vmatmul.mubr.bf16.gmra.mxu0 %v1308
    %v2418 = vpop.f32.mrf.mxu0
    %v2419 = vadd.f32 0.0, %v2418
    %v2420 = vpop.f32.mrf.mxu0
    %v2421 = vpop.f32.mrf.mxu0
    %v2422 = vadd.f32 0.0, %v2421
    %v2423 = vpop.f32.mrf.mxu0
    %2424 = vmatprep.mubr.bf16.mxu0 0
    %2425 = vmatmul.mubr.bf16.gmra.mxu0 %v1311
    %v2426 = vpop.f32.mrf.mxu0
    %v2427 = vadd.f32 0.0, %v2426
    %v2428 = vpop.f32.mrf.mxu0
    %v2429 = vpop.f32.mrf.mxu0
    %v2430 = vadd.f32 0.0, %v2429
    %v2431 = vpop.f32.mrf.mxu0
    %2432 = vmatprep.mubr.bf16.mxu0 0
    %2433 = vmatmul.mubr.bf16.gmra.mxu0 %v1314
    %v2434 = vpop.f32.mrf.mxu0
    %v2435 = vadd.f32 0.0, %v2434
    %v2436 = vpop.f32.mrf.mxu0
    %v2437 = vpop.f32.mrf.mxu0
    %v2438 = vadd.f32 0.0, %v2437
    %v2439 = vpop.f32.mrf.mxu0
    %2440 = vmatprep.mubr.bf16.mxu0 0
    %2441 = vmatmul.mubr.bf16.gmra.mxu0 %v1317
    %v2442 = vpop.f32.mrf.mxu0
    %v2443 = vadd.f32 0.0, %v2442
    %v2444 = vpop.f32.mrf.mxu0
    %v2445 = vpop.f32.mrf.mxu0
    %v2446 = vadd.f32 0.0, %v2445
    %v2447 = vpop.f32.mrf.mxu0
    %2448 = vmatprep.mubr.bf16.mxu0 0
    %2449 = vmatmul.mubr.bf16.gmra.mxu0 %v1320
    %v2450 = vpop.f32.mrf.mxu0
    %v2451 = vadd.f32 0.0, %v2450
    %v2452 = vpop.f32.mrf.mxu0
    %v2453 = vpop.f32.mrf.mxu0
    %v2454 = vadd.f32 0.0, %v2453
    %v2455 = vpop.f32.mrf.mxu0
    %2456 = vmatprep.mubr.bf16.mxu0 0
    %2457 = vmatmul.mubr.bf16.gmra.mxu0 %v1323
    %v2458 = vpop.f32.mrf.mxu0
    %v2459 = vadd.f32 0.0, %v2458
    %v2460 = vpop.f32.mrf.mxu0
    %v2461 = vpop.f32.mrf.mxu0
    %v2462 = vadd.f32 0.0, %v2461
    %v2463 = vpop.f32.mrf.mxu0
    %2464 = vdwg.mxu0
    %v2481 = vunpack.c.l.b16 %v2349
    %v2482 = vunpack.c.l.b16 %v2350
    %v2483 = vunpack.c.l.b16 %v2351
    %v2484 = vunpack.c.l.b16 %v2352
    %v2485 = vunpack.c.l.b16 %v2353
    %v2486 = vunpack.c.l.b16 %v2354
    %v2487 = vunpack.c.l.b16 %v2355
    %v2488 = vunpack.c.l.b16 %v2356
    %v2489 = vunpack.c.l.b16 %v2357
    %v2490 = vunpack.c.l.b16 %v2358
    %v2491 = vunpack.c.l.b16 %v2359
    %v2492 = vunpack.c.l.b16 %v2360
    %v2493 = vunpack.c.l.b16 %v2361
    %v2494 = vunpack.c.l.b16 %v2362
    %v2495 = vunpack.c.l.b16 %v2363
    %v2496 = vunpack.c.l.b16 %v2364
    %v2497 = vpack.c.b16 %v2482, %v2481
    %v2498 = vpack.c.b16 %v2484, %v2483
    %v2499 = vpack.c.b16 %v2486, %v2485
    %v2500 = vpack.c.b16 %v2488, %v2487
    %v2501 = vpack.c.b16 %v2490, %v2489
    %v2502 = vpack.c.b16 %v2492, %v2491
    %v2503 = vpack.c.b16 %v2494, %v2493
    %v2504 = vpack.c.b16 %v2496, %v2495
    %2513 = vmatprep.subr.bf16.mxu0 0
    %2514 = vmatpush1.bf16.msra.mxu0 %v1966
    %2515 = vmatprep.subr.bf16.mxu0 0
    %2516 = vmatpush1.bf16.msra.mxu0 %v1965
    %2517 = vmatprep.subr.bf16.mxu0 0
    %2518 = vmatpush1.bf16.msra.mxu0 %v1964
    %2519 = vmatprep.subr.bf16.mxu0 0
    %2520 = vmatpush1.bf16.msra.mxu0 %v1963
    %2521 = vmatprep.subr.bf16.mxu0 0
    %2522 = vmatpush1.bf16.msra.mxu0 %v1962
    %2523 = vmatprep.subr.bf16.mxu0 0
    %2524 = vmatpush1.bf16.msra.mxu0 %v1961
    %2525 = vmatprep.subr.bf16.mxu0 0
    %2526 = vmatpush1.bf16.msra.mxu0 %v1960
    %2527 = vmatprep.subr.bf16.mxu0 0
    %2528 = vmatpush1.bf16.msra.mxu0 %v1959
    %2529 = vmatprep.subr.bf16.mxu0 0
    %2530 = vmatpush2.bf16.msra.mxu0 0
    %2531 = vmatprep.subr.bf16.mxu0 0
    %2532 = vmatpush2.bf16.msra.mxu0 0
    %2533 = vmatprep.subr.bf16.mxu0 0
    %2534 = vmatpush2.bf16.msra.mxu0 0
    %2535 = vmatprep.subr.bf16.mxu0 0
    %2536 = vmatpush2.bf16.msra.mxu0 0
    %2537 = vmatprep.subr.bf16.mxu0 0
    %2538 = vmatpush2.bf16.msra.mxu0 0
    %2539 = vmatprep.subr.bf16.mxu0 0
    %2540 = vmatpush2.bf16.msra.mxu0 0
    %2541 = vmatprep.subr.bf16.mxu0 0
    %2542 = vmatpush2.bf16.msra.mxu0 0
    %2543 = vmatprep.subr.bf16.mxu0 0
    %2544 = vmatpush2.bf16.msra.mxu0 0
    %2545 = vmatprep.mubr.bf16.mxu0 0
    %2546 = vmatmul.mubr.bf16.gmra.mxu0 %v2497
    %v2547 = vpop.f32.mrf.mxu0
    %v2548 = vadd.f32 %v2403, %v2547
    %v2549 = vpop.f32.mrf.mxu0
    %v2550 = vpop.f32.mrf.mxu0
    %v2551 = vadd.f32 %v2406, %v2550
    %v2552 = vpop.f32.mrf.mxu0
    %2553 = vmatprep.mubr.bf16.mxu0 0
    %2554 = vmatmul.mubr.bf16.gmra.mxu0 %v2498
    %v2555 = vpop.f32.mrf.mxu0
    %v2556 = vadd.f32 %v2411, %v2555
    %v2557 = vpop.f32.mrf.mxu0
    %v2558 = vpop.f32.mrf.mxu0
    %v2559 = vadd.f32 %v2414, %v2558
    %v2560 = vpop.f32.mrf.mxu0
    %2561 = vmatprep.mubr.bf16.mxu0 0
    %2562 = vmatmul.mubr.bf16.gmra.mxu0 %v2499
    %v2563 = vpop.f32.mrf.mxu0
    %v2564 = vadd.f32 %v2419, %v2563
    %v2565 = vpop.f32.mrf.mxu0
    %v2566 = vpop.f32.mrf.mxu0
    %v2567 = vadd.f32 %v2422, %v2566
    %v2568 = vpop.f32.mrf.mxu0
    %2569 = vmatprep.mubr.bf16.mxu0 0
    %2570 = vmatmul.mubr.bf16.gmra.mxu0 %v2500
    %v2571 = vpop.f32.mrf.mxu0
    %v2572 = vadd.f32 %v2427, %v2571
    %v2573 = vpop.f32.mrf.mxu0
    %v2574 = vpop.f32.mrf.mxu0
    %v2575 = vadd.f32 %v2430, %v2574
    %v2576 = vpop.f32.mrf.mxu0
    %2577 = vmatprep.mubr.bf16.mxu0 0
    %2578 = vmatmul.mubr.bf16.gmra.mxu0 %v2501
    %v2579 = vpop.f32.mrf.mxu0
    %v2580 = vadd.f32 %v2435, %v2579
    %v2581 = vpop.f32.mrf.mxu0
    %v2582 = vpop.f32.mrf.mxu0
    %v2583 = vadd.f32 %v2438, %v2582
    %v2584 = vpop.f32.mrf.mxu0
    %2585 = vmatprep.mubr.bf16.mxu0 0
    %2586 = vmatmul.mubr.bf16.gmra.mxu0 %v2502
    %v2587 = vpop.f32.mrf.mxu0
    %v2588 = vadd.f32 %v2443, %v2587
    %v2589 = vpop.f32.mrf.mxu0
    %v2590 = vpop.f32.mrf.mxu0
    %v2591 = vadd.f32 %v2446, %v2590
    %v2592 = vpop.f32.mrf.mxu0
    %2593 = vmatprep.mubr.bf16.mxu0 0
    %2594 = vmatmul.mubr.bf16.gmra.mxu0 %v2503
    %v2595 = vpop.f32.mrf.mxu0
    %v2596 = vadd.f32 %v2451, %v2595
    %v2597 = vpop.f32.mrf.mxu0
    %v2598 = vpop.f32.mrf.mxu0
    %v2599 = vadd.f32 %v2454, %v2598
    %v2600 = vpop.f32.mrf.mxu0
    %2601 = vmatprep.mubr.bf16.mxu0 0
    %2602 = vmatmul.mubr.bf16.gmra.mxu0 %v2504
    %v2603 = vpop.f32.mrf.mxu0
    %v2604 = vadd.f32 %v2459, %v2603
    %v2605 = vpop.f32.mrf.mxu0
    %v2606 = vpop.f32.mrf.mxu0
    %v2607 = vadd.f32 %v2462, %v2606
    %v2608 = vpop.f32.mrf.mxu0
    %2609 = vdwg.mxu0
    %v2610 = vpack.c.bf16 %v2551, %v2548
    %v2611 = vpack.c.bf16 %v2559, %v2556
    %v2612 = vpack.c.bf16 %v2567, %v2564
    %v2613 = vpack.c.bf16 %v2575, %v2572
    %v2614 = vpack.c.bf16 %v2583, %v2580
    %v2615 = vpack.c.bf16 %v2591, %v2588
    %v2616 = vpack.c.bf16 %v2599, %v2596
    %v2617 = vpack.c.bf16 %v2607, %v2604
    %s2618 = scalar_lea.vmem [#allocation5], 128
    %v2619 = vld [vmem:[%s2618] sm:$0xf]
    %v2620 = vld [vmem:[%s2618 + $0x4] sm:$0xf]
    %v2621 = vld [vmem:[%s2618 + $0x8] sm:$0xf]
    %v2622 = vld [vmem:[%s2618 + $0xc] sm:$0xf]
    %v2623 = vld [vmem:[%s2618 + $0x10] sm:$0xf]
    %v2624 = vld [vmem:[%s2618 + $0x14] sm:$0xf]
    %v2625 = vld [vmem:[%s2618 + $0x18] sm:$0xf]
    %v2626 = vld [vmem:[%s2618 + $0x1c] sm:$0xf]
    %v2627 = vld [vmem:[%s2618 + $0x20] sm:$0xf]
    %v2628 = vld [vmem:[%s2618 + $0x24] sm:$0xf]
    %v2629 = vld [vmem:[%s2618 + $0x28] sm:$0xf]
    %v2630 = vld [vmem:[%s2618 + $0x2c] sm:$0xf]
    %v2631 = vld [vmem:[%s2618 + $0x30] sm:$0xf]
    %v2632 = vld [vmem:[%s2618 + $0x34] sm:$0xf]
    %v2633 = vld [vmem:[%s2618 + $0x38] sm:$0xf]
    %v2634 = vld [vmem:[%s2618 + $0x3c] sm:$0xf]
    %s2635 = scalar_lea.vmem %s6, 2
    %v2636 = vld [vmem:[%s2635] sm:$0x1]
    %v2638 = vlaneseq
    %v2639 = vshrl.u32 %v2638, 7
    %v2640 = vsub.s32 0, %v2639
    %v2641 = vrot.slane %v2636, %v2640
    %v2659 = vunpack.c.l.b16 %v2619
    %v2660 = vunpack.c.l.b16 %v2620
    %v2661 = vunpack.c.l.b16 %v2621
    %v2662 = vunpack.c.l.b16 %v2622
    %v2663 = vunpack.c.l.b16 %v2623
    %v2664 = vunpack.c.l.b16 %v2624
    %v2665 = vunpack.c.l.b16 %v2625
    %v2666 = vunpack.c.l.b16 %v2626
    %v2667 = vunpack.c.l.b16 %v2627
    %v2668 = vunpack.c.l.b16 %v2628
    %v2669 = vunpack.c.l.b16 %v2629
    %v2670 = vunpack.c.l.b16 %v2630
    %v2671 = vunpack.c.l.b16 %v2631
    %v2672 = vunpack.c.l.b16 %v2632
    %v2673 = vunpack.c.l.b16 %v2633
    %v2674 = vunpack.c.l.b16 %v2634
    %v2675 = vpack.c.b16 %v2660, %v2659
    %v2676 = vpack.c.b16 %v2662, %v2661
    %v2677 = vpack.c.b16 %v2664, %v2663
    %v2678 = vpack.c.b16 %v2666, %v2665
    %v2679 = vpack.c.b16 %v2668, %v2667
    %v2680 = vpack.c.b16 %v2670, %v2669
    %v2681 = vpack.c.b16 %v2672, %v2671
    %v2682 = vpack.c.b16 %v2674, %v2673
    %2691 = vmatprep.subr.bf16.mxu0 0
    %2692 = vmatpush1.bf16.msra.mxu0 %v2682
    %2693 = vmatprep.subr.bf16.mxu0 0
    %2694 = vmatpush1.bf16.msra.mxu0 %v2681
    %2695 = vmatprep.subr.bf16.mxu0 0
    %2696 = vmatpush1.bf16.msra.mxu0 %v2680
    %2697 = vmatprep.subr.bf16.mxu0 0
    %2698 = vmatpush1.bf16.msra.mxu0 %v2679
    %2699 = vmatprep.subr.bf16.mxu0 0
    %2700 = vmatpush1.bf16.msra.mxu0 %v2678
    %2701 = vmatprep.subr.bf16.mxu0 0
    %2702 = vmatpush1.bf16.msra.mxu0 %v2677
    %2703 = vmatprep.subr.bf16.mxu0 0
    %2704 = vmatpush1.bf16.msra.mxu0 %v2676
    %2705 = vmatprep.subr.bf16.mxu0 0
    %2706 = vmatpush1.bf16.msra.mxu0 %v2675
    %2707 = vmatprep.subr.bf16.mxu0 0
    %2708 = vmatpush2.bf16.msra.mxu0 0
    %2709 = vmatprep.subr.bf16.mxu0 0
    %2710 = vmatpush2.bf16.msra.mxu0 0
    %2711 = vmatprep.subr.bf16.mxu0 0
    %2712 = vmatpush2.bf16.msra.mxu0 0
    %2713 = vmatprep.subr.bf16.mxu0 0
    %2714 = vmatpush2.bf16.msra.mxu0 0
    %2715 = vmatprep.subr.bf16.mxu0 0
    %2716 = vmatpush2.bf16.msra.mxu0 0
    %2717 = vmatprep.subr.bf16.mxu0 0
    %2718 = vmatpush2.bf16.msra.mxu0 0
    %2719 = vmatprep.subr.bf16.mxu0 0
    %2720 = vmatpush2.bf16.msra.mxu0 0
    %2721 = vmatprep.subr.bf16.mxu0 0
    %2722 = vmatpush2.bf16.msra.mxu0 0
    %2723 = vmatprep.mubr.bf16.mxu0 0
    %2724 = vmatmul.mubr.bf16.gmra.mxu0 %v2610
    %v2725 = vpop.f32.mrf.mxu0
    %v2726 = vadd.f32 %v2641, %v2725
    %v2727 = vpop.f32.mrf.mxu0
    %v2728 = vpop.f32.mrf.mxu0
    %v2729 = vadd.f32 %v2641, %v2728
    %v2730 = vpop.f32.mrf.mxu0
    %2731 = vmatprep.mubr.bf16.mxu0 0
    %2732 = vmatmul.mubr.bf16.gmra.mxu0 %v2611
    %v2733 = vpop.f32.mrf.mxu0
    %v2734 = vadd.f32 %v2641, %v2733
    %v2735 = vpop.f32.mrf.mxu0
    %v2736 = vpop.f32.mrf.mxu0
    %v2737 = vadd.f32 %v2641, %v2736
    %v2738 = vpop.f32.mrf.mxu0
    %2739 = vmatprep.mubr.bf16.mxu0 0
    %2740 = vmatmul.mubr.bf16.gmra.mxu0 %v2612
    %v2741 = vpop.f32.mrf.mxu0
    %v2742 = vadd.f32 %v2641, %v2741
    %v2743 = vpop.f32.mrf.mxu0
    %v2744 = vpop.f32.mrf.mxu0
    %v2745 = vadd.f32 %v2641, %v2744
    %v2746 = vpop.f32.mrf.mxu0
    %2747 = vmatprep.mubr.bf16.mxu0 0
    %2748 = vmatmul.mubr.bf16.gmra.mxu0 %v2613
    %v2749 = vpop.f32.mrf.mxu0
    %v2750 = vadd.f32 %v2641, %v2749
    %v2751 = vpop.f32.mrf.mxu0
    %v2752 = vpop.f32.mrf.mxu0
    %v2753 = vadd.f32 %v2641, %v2752
    %v2754 = vpop.f32.mrf.mxu0
    %2755 = vmatprep.mubr.bf16.mxu0 0
    %2756 = vmatmul.mubr.bf16.gmra.mxu0 %v2614
    %v2757 = vpop.f32.mrf.mxu0
    %v2758 = vadd.f32 %v2641, %v2757
    %v2759 = vpop.f32.mrf.mxu0
    %v2760 = vpop.f32.mrf.mxu0
    %v2761 = vadd.f32 %v2641, %v2760
    %v2762 = vpop.f32.mrf.mxu0
    %2763 = vmatprep.mubr.bf16.mxu0 0
    %2764 = vmatmul.mubr.bf16.gmra.mxu0 %v2615
    %v2765 = vpop.f32.mrf.mxu0
    %v2766 = vadd.f32 %v2641, %v2765
    %v2767 = vpop.f32.mrf.mxu0
    %v2768 = vpop.f32.mrf.mxu0
    %v2769 = vadd.f32 %v2641, %v2768
    %v2770 = vpop.f32.mrf.mxu0
    %2771 = vmatprep.mubr.bf16.mxu0 0
    %2772 = vmatmul.mubr.bf16.gmra.mxu0 %v2616
    %v2773 = vpop.f32.mrf.mxu0
    %v2774 = vadd.f32 %v2641, %v2773
    %v2775 = vpop.f32.mrf.mxu0
    %v2776 = vpop.f32.mrf.mxu0
    %v2777 = vadd.f32 %v2641, %v2776
    %v2778 = vpop.f32.mrf.mxu0
    %2779 = vmatprep.mubr.bf16.mxu0 0
    %2780 = vmatmul.mubr.bf16.gmra.mxu0 %v2617
    %v2781 = vpop.f32.mrf.mxu0
    %v2782 = vadd.f32 %v2641, %v2781
    %v2783 = vpop.f32.mrf.mxu0
    %v2784 = vpop.f32.mrf.mxu0
    %v2785 = vadd.f32 %v2641, %v2784
    %v2786 = vpop.f32.mrf.mxu0
    %2787 = vdwg.mxu0
    %v2788 = vmax.f32 %v2726, 0.0
    %v2789 = vmax.f32 %v2729, 0.0
    %v2790 = vmax.f32 %v2734, 0.0
    %v2791 = vmax.f32 %v2737, 0.0
    %v2792 = vmax.f32 %v2742, 0.0
    %v2793 = vmax.f32 %v2745, 0.0
    %v2794 = vmax.f32 %v2750, 0.0
    %v2795 = vmax.f32 %v2753, 0.0
    %v2796 = vmax.f32 %v2758, 0.0
    %v2797 = vmax.f32 %v2761, 0.0
    %v2798 = vmax.f32 %v2766, 0.0
    %v2799 = vmax.f32 %v2769, 0.0
    %v2800 = vmax.f32 %v2774, 0.0
    %v2801 = vmax.f32 %v2777, 0.0
    %v2802 = vmax.f32 %v2782, 0.0
    %v2803 = vmax.f32 %v2785, 0.0
    %v2804 = vpack.c.bf16 %v2789, %v2788
    %v2805 = vpack.c.bf16 %v2791, %v2790
    %v2806 = vpack.c.bf16 %v2793, %v2792
    %v2807 = vpack.c.bf16 %v2795, %v2794
    %v2808 = vpack.c.bf16 %v2797, %v2796
    %v2809 = vpack.c.bf16 %v2799, %v2798
    %v2810 = vpack.c.bf16 %v2801, %v2800
    %v2811 = vpack.c.bf16 %v2803, %v2802
    %s2812 = scalar_lea.vmem [#allocation7], 128
    %v2813 = vld [vmem:[%s2812] sm:$0xf]
    %v2814 = vld [vmem:[%s2812 + $0x4] sm:$0xf]
    %v2815 = vld [vmem:[%s2812 + $0x8] sm:$0xf]
    %v2816 = vld [vmem:[%s2812 + $0xc] sm:$0xf]
    %v2817 = vld [vmem:[%s2812 + $0x10] sm:$0xf]
    %v2818 = vld [vmem:[%s2812 + $0x14] sm:$0xf]
    %v2819 = vld [vmem:[%s2812 + $0x18] sm:$0xf]
    %v2820 = vld [vmem:[%s2812 + $0x1c] sm:$0xf]
    %v2821 = vld [vmem:[%s2812 + $0x20] sm:$0xf]
    %v2822 = vld [vmem:[%s2812 + $0x24] sm:$0xf]
    %v2823 = vld [vmem:[%s2812 + $0x28] sm:$0xf]
    %v2824 = vld [vmem:[%s2812 + $0x2c] sm:$0xf]
    %v2825 = vld [vmem:[%s2812 + $0x30] sm:$0xf]
    %v2826 = vld [vmem:[%s2812 + $0x34] sm:$0xf]
    %v2827 = vld [vmem:[%s2812 + $0x38] sm:$0xf]
    %v2828 = vld [vmem:[%s2812 + $0x3c] sm:$0xf]
    %s2829 = scalar_lea.vmem %s8, 2
    %v2830 = vld [vmem:[%s2829] sm:$0x1]
    %v2832 = vlaneseq
    %v2833 = vshrl.u32 %v2832, 7
    %v2834 = vsub.s32 0, %v2833
    %v2835 = vrot.slane %v2830, %v2834
    %v2853 = vunpack.c.l.b16 %v2813
    %v2854 = vunpack.c.l.b16 %v2814
    %v2855 = vunpack.c.l.b16 %v2815
    %v2856 = vunpack.c.l.b16 %v2816
    %v2857 = vunpack.c.l.b16 %v2817
    %v2858 = vunpack.c.l.b16 %v2818
    %v2859 = vunpack.c.l.b16 %v2819
    %v2860 = vunpack.c.l.b16 %v2820
    %v2861 = vunpack.c.l.b16 %v2821
    %v2862 = vunpack.c.l.b16 %v2822
    %v2863 = vunpack.c.l.b16 %v2823
    %v2864 = vunpack.c.l.b16 %v2824
    %v2865 = vunpack.c.l.b16 %v2825
    %v2866 = vunpack.c.l.b16 %v2826
    %v2867 = vunpack.c.l.b16 %v2827
    %v2868 = vunpack.c.l.b16 %v2828
    %v2869 = vpack.c.b16 %v2854, %v2853
    %v2870 = vpack.c.b16 %v2856, %v2855
    %v2871 = vpack.c.b16 %v2858, %v2857
    %v2872 = vpack.c.b16 %v2860, %v2859
    %v2873 = vpack.c.b16 %v2862, %v2861
    %v2874 = vpack.c.b16 %v2864, %v2863
    %v2875 = vpack.c.b16 %v2866, %v2865
    %v2876 = vpack.c.b16 %v2868, %v2867
    %2885 = vmatprep.subr.bf16.mxu0 0
    %2886 = vmatpush1.bf16.msra.mxu0 %v2876
    %2887 = vmatprep.subr.bf16.mxu0 0
    %2888 = vmatpush1.bf16.msra.mxu0 %v2875
    %2889 = vmatprep.subr.bf16.mxu0 0
    %2890 = vmatpush1.bf16.msra.mxu0 %v2874
    %2891 = vmatprep.subr.bf16.mxu0 0
    %2892 = vmatpush1.bf16.msra.mxu0 %v2873
    %2893 = vmatprep.subr.bf16.mxu0 0
    %2894 = vmatpush1.bf16.msra.mxu0 %v2872
    %2895 = vmatprep.subr.bf16.mxu0 0
    %2896 = vmatpush1.bf16.msra.mxu0 %v2871
    %2897 = vmatprep.subr.bf16.mxu0 0
    %2898 = vmatpush1.bf16.msra.mxu0 %v2870
    %2899 = vmatprep.subr.bf16.mxu0 0
    %2900 = vmatpush1.bf16.msra.mxu0 %v2869
    %2901 = vmatprep.subr.bf16.mxu0 0
    %2902 = vmatpush2.bf16.msra.mxu0 0
    %2903 = vmatprep.subr.bf16.mxu0 0
    %2904 = vmatpush2.bf16.msra.mxu0 0
    %2905 = vmatprep.subr.bf16.mxu0 0
    %2906 = vmatpush2.bf16.msra.mxu0 0
    %2907 = vmatprep.subr.bf16.mxu0 0
    %2908 = vmatpush2.bf16.msra.mxu0 0
    %2909 = vmatprep.subr.bf16.mxu0 0
    %2910 = vmatpush2.bf16.msra.mxu0 0
    %2911 = vmatprep.subr.bf16.mxu0 0
    %2912 = vmatpush2.bf16.msra.mxu0 0
    %2913 = vmatprep.subr.bf16.mxu0 0
    %2914 = vmatpush2.bf16.msra.mxu0 0
    %2915 = vmatprep.subr.bf16.mxu0 0
    %2916 = vmatpush2.bf16.msra.mxu0 0
    %2917 = vmatprep.mubr.bf16.mxu0 0
    %2918 = vmatmul.mubr.bf16.gmra.mxu0 %v2804
    %v2919 = vpop.f32.mrf.mxu0
    %v2920 = vadd.f32 %v2835, %v2919
    %v2921 = vpop.f32.mrf.mxu0
    %v2922 = vpop.f32.mrf.mxu0
    %v2923 = vadd.f32 %v2835, %v2922
    %v2924 = vpop.f32.mrf.mxu0
    %2925 = vmatprep.mubr.bf16.mxu0 0
    %2926 = vmatmul.mubr.bf16.gmra.mxu0 %v2805
    %v2927 = vpop.f32.mrf.mxu0
    %v2928 = vadd.f32 %v2835, %v2927
    %v2929 = vpop.f32.mrf.mxu0
    %v2930 = vpop.f32.mrf.mxu0
    %v2931 = vadd.f32 %v2835, %v2930
    %v2932 = vpop.f32.mrf.mxu0
    %2933 = vmatprep.mubr.bf16.mxu0 0
    %2934 = vmatmul.mubr.bf16.gmra.mxu0 %v2806
    %v2935 = vpop.f32.mrf.mxu0
    %v2936 = vadd.f32 %v2835, %v2935
    %v2937 = vpop.f32.mrf.mxu0
    %v2938 = vpop.f32.mrf.mxu0
    %v2939 = vadd.f32 %v2835, %v2938
    %v2940 = vpop.f32.mrf.mxu0
    %2941 = vmatprep.mubr.bf16.mxu0 0
    %2942 = vmatmul.mubr.bf16.gmra.mxu0 %v2807
    %v2943 = vpop.f32.mrf.mxu0
    %v2944 = vadd.f32 %v2835, %v2943
    %v2945 = vpop.f32.mrf.mxu0
    %v2946 = vpop.f32.mrf.mxu0
    %v2947 = vadd.f32 %v2835, %v2946
    %v2948 = vpop.f32.mrf.mxu0
    %2949 = vmatprep.mubr.bf16.mxu0 0
    %2950 = vmatmul.mubr.bf16.gmra.mxu0 %v2808
    %v2951 = vpop.f32.mrf.mxu0
    %v2952 = vadd.f32 %v2835, %v2951
    %v2953 = vpop.f32.mrf.mxu0
    %v2954 = vpop.f32.mrf.mxu0
    %v2955 = vadd.f32 %v2835, %v2954
    %v2956 = vpop.f32.mrf.mxu0
    %2957 = vmatprep.mubr.bf16.mxu0 0
    %2958 = vmatmul.mubr.bf16.gmra.mxu0 %v2809
    %v2959 = vpop.f32.mrf.mxu0
    %v2960 = vadd.f32 %v2835, %v2959
    %v2961 = vpop.f32.mrf.mxu0
    %v2962 = vpop.f32.mrf.mxu0
    %v2963 = vadd.f32 %v2835, %v2962
    %v2964 = vpop.f32.mrf.mxu0
    %2965 = vmatprep.mubr.bf16.mxu0 0
    %2966 = vmatmul.mubr.bf16.gmra.mxu0 %v2810
    %v2967 = vpop.f32.mrf.mxu0
    %v2968 = vadd.f32 %v2835, %v2967
    %v2969 = vpop.f32.mrf.mxu0
    %v2970 = vpop.f32.mrf.mxu0
    %v2971 = vadd.f32 %v2835, %v2970
    %v2972 = vpop.f32.mrf.mxu0
    %2973 = vmatprep.mubr.bf16.mxu0 0
    %2974 = vmatmul.mubr.bf16.gmra.mxu0 %v2811
    %v2975 = vpop.f32.mrf.mxu0
    %v2976 = vadd.f32 %v2835, %v2975
    %v2977 = vpop.f32.mrf.mxu0
    %v2978 = vpop.f32.mrf.mxu0
    %v2979 = vadd.f32 %v2835, %v2978
    %v2980 = vpop.f32.mrf.mxu0
    %2981 = vdwg.mxu0
    %v2982 = vmax.f32 %v2920, 0.0
    %v2983 = vmax.f32 %v2923, 0.0
    %v2984 = vmax.f32 %v2928, 0.0
    %v2985 = vmax.f32 %v2931, 0.0
    %v2986 = vmax.f32 %v2936, 0.0
    %v2987 = vmax.f32 %v2939, 0.0
    %v2988 = vmax.f32 %v2944, 0.0
    %v2989 = vmax.f32 %v2947, 0.0
    %v2990 = vmax.f32 %v2952, 0.0
    %v2991 = vmax.f32 %v2955, 0.0
    %v2992 = vmax.f32 %v2960, 0.0
    %v2993 = vmax.f32 %v2963, 0.0
    %v2994 = vmax.f32 %v2968, 0.0
    %v2995 = vmax.f32 %v2971, 0.0
    %v2996 = vmax.f32 %v2976, 0.0
    %v2997 = vmax.f32 %v2979, 0.0
    %v2998 = vpack.c.bf16 %v2983, %v2982
    %v2999 = vpack.c.bf16 %v2985, %v2984
    %v3000 = vpack.c.bf16 %v2987, %v2986
    %v3001 = vpack.c.bf16 %v2989, %v2988
    %v3002 = vpack.c.bf16 %v2991, %v2990
    %v3003 = vpack.c.bf16 %v2993, %v2992
    %v3004 = vpack.c.bf16 %v2995, %v2994
    %v3005 = vpack.c.bf16 %v2997, %v2996
    %3006 = vmatprep.subr.bf16.mxu0 0
    %3007 = vmatpush1.bf16.msra.mxu0 %v3005
    %3008 = vmatprep.subr.bf16.mxu0 0
    %3009 = vmatpush1.bf16.msra.mxu0 %v3004
    %3010 = vmatprep.subr.bf16.mxu0 0
    %3011 = vmatpush1.bf16.msra.mxu0 %v3003
    %3012 = vmatprep.subr.bf16.mxu0 0
    %3013 = vmatpush1.bf16.msra.mxu0 %v3002
    %3014 = vmatprep.subr.bf16.mxu0 0
    %3015 = vmatpush1.bf16.msra.mxu0 %v3001
    %3016 = vmatprep.subr.bf16.mxu0 0
    %3017 = vmatpush1.bf16.msra.mxu0 %v3000
    %3018 = vmatprep.subr.bf16.mxu0 0
    %3019 = vmatpush1.bf16.msra.mxu0 %v2999
    %3020 = vmatprep.subr.bf16.mxu0 0
    %3021 = vmatpush1.bf16.msra.mxu0 %v2998
    %3022 = vmatprep.subr.bf16.mxu0 0
    %3023 = vmatpush2.bf16.msra.mxu0 0
    %3024 = vmatprep.subr.bf16.mxu0 0
    %3025 = vmatpush2.bf16.msra.mxu0 0
    %3026 = vmatprep.subr.bf16.mxu0 0
    %3027 = vmatpush2.bf16.msra.mxu0 0
    %3028 = vmatprep.subr.bf16.mxu0 0
    %3029 = vmatpush2.bf16.msra.mxu0 0
    %3030 = vmatprep.subr.bf16.mxu0 0
    %3031 = vmatpush2.bf16.msra.mxu0 0
    %3032 = vmatprep.subr.bf16.mxu0 0
    %3033 = vmatpush2.bf16.msra.mxu0 0
    %3034 = vmatprep.subr.bf16.mxu0 0
    %3035 = vmatpush2.bf16.msra.mxu0 0
    %3036 = vmatprep.subr.bf16.mxu0 0
    %3037 = vmatpush2.bf16.msra.mxu0 0
    %3038 = vmatprep.mubr.bf16.mxu0 0
    %3039 = vmatmul.mubr.bf16.gmra.mxu0 %v131
    %v3040 = vpop.f32.mrf.mxu0
    %v3041 = vadd.f32 0.0, %v3040
    %v3042 = vpop.f32.mrf.mxu0
    %v3043 = vpop.f32.mrf.mxu0
    %v3044 = vpop.f32.mrf.mxu0
    %3045 = vdwg.mxu0
    %3047 = vset.pattern.permute.xlu0 0
    %3048 = vperm.xlu0 %3047, %v148
    %v3049 = vpop.permute.xlu0 %3048
    %v3051 = vmul.f32 %v3041, %v3049
    %v3052 = vpack.c.bf16 %v3051, %v3051
    %v3053 = vld [vmem:[#allocation10] sm:$0xf]
    %v3054 = vld [vmem:[#allocation10 + $0x4] sm:$0xf]
    %v3055 = vld [vmem:[#allocation10 + $0x8] sm:$0xf]
    %v3056 = vld [vmem:[#allocation10 + $0xc] sm:$0xf]
    %v3057 = vld [vmem:[#allocation10 + $0x10] sm:$0xf]
    %v3058 = vld [vmem:[#allocation10 + $0x14] sm:$0xf]
    %v3059 = vld [vmem:[#allocation10 + $0x18] sm:$0xf]
    %v3060 = vld [vmem:[#allocation10 + $0x1c] sm:$0xf]
    %v3061 = vld [vmem:[#allocation10 + $0x20] sm:$0xf]
    %v3062 = vld [vmem:[#allocation10 + $0x24] sm:$0xf]
    %v3063 = vld [vmem:[#allocation10 + $0x28] sm:$0xf]
    %v3064 = vld [vmem:[#allocation10 + $0x2c] sm:$0xf]
    %v3065 = vld [vmem:[#allocation10 + $0x30] sm:$0xf]
    %v3066 = vld [vmem:[#allocation10 + $0x34] sm:$0xf]
    %v3067 = vld [vmem:[#allocation10 + $0x38] sm:$0xf]
    %v3068 = vld [vmem:[#allocation10 + $0x3c] sm:$0xf]
    %v3069 = vld [vmem:[%s12] sm:$0x1]
    %v3071 = vlaneseq
    %v3072 = vshrl.u32 %v3071, 7
    %v3073 = vsub.s32 0, %v3072
    %v3074 = vrot.slane %v3069, %v3073
    %v3092 = vunpack.c.l.b16 %v3053
    %v3093 = vunpack.c.l.b16 %v3054
    %v3094 = vunpack.c.l.b16 %v3055
    %v3095 = vunpack.c.l.b16 %v3056
    %v3096 = vunpack.c.l.b16 %v3057
    %v3097 = vunpack.c.l.b16 %v3058
    %v3098 = vunpack.c.l.b16 %v3059
    %v3099 = vunpack.c.l.b16 %v3060
    %v3100 = vunpack.c.l.b16 %v3061
    %v3101 = vunpack.c.l.b16 %v3062
    %v3102 = vunpack.c.l.b16 %v3063
    %v3103 = vunpack.c.l.b16 %v3064
    %v3104 = vunpack.c.l.b16 %v3065
    %v3105 = vunpack.c.l.b16 %v3066
    %v3106 = vunpack.c.l.b16 %v3067
    %v3107 = vunpack.c.l.b16 %v3068
    %v3108 = vpack.c.b16 %v3093, %v3092
    %v3109 = vpack.c.b16 %v3095, %v3094
    %v3110 = vpack.c.b16 %v3097, %v3096
    %v3111 = vpack.c.b16 %v3099, %v3098
    %v3112 = vpack.c.b16 %v3101, %v3100
    %v3113 = vpack.c.b16 %v3103, %v3102
    %v3114 = vpack.c.b16 %v3105, %v3104
    %v3115 = vpack.c.b16 %v3107, %v3106
    %3124 = vmatprep.subr.bf16.mxu0 0
    %3125 = vmatpush1.bf16.msra.mxu0 %v3115
    %3126 = vmatprep.subr.bf16.mxu0 0
    %3127 = vmatpush1.bf16.msra.mxu0 %v3114
    %3128 = vmatprep.subr.bf16.mxu0 0
    %3129 = vmatpush1.bf16.msra.mxu0 %v3113
    %3130 = vmatprep.subr.bf16.mxu0 0
    %3131 = vmatpush1.bf16.msra.mxu0 %v3112
    %3132 = vmatprep.subr.bf16.mxu0 0
    %3133 = vmatpush1.bf16.msra.mxu0 %v3111
    %3134 = vmatprep.subr.bf16.mxu0 0
    %3135 = vmatpush1.bf16.msra.mxu0 %v3110
    %3136 = vmatprep.subr.bf16.mxu0 0
    %3137 = vmatpush1.bf16.msra.mxu0 %v3109
    %3138 = vmatprep.subr.bf16.mxu0 0
    %3139 = vmatpush1.bf16.msra.mxu0 %v3108
    %3140 = vmatprep.subr.bf16.mxu0 0
    %3141 = vmatpush2.bf16.msra.mxu0 0
    %3142 = vmatprep.subr.bf16.mxu0 0
    %3143 = vmatpush2.bf16.msra.mxu0 0
    %3144 = vmatprep.subr.bf16.mxu0 0
    %3145 = vmatpush2.bf16.msra.mxu0 0
    %3146 = vmatprep.subr.bf16.mxu0 0
    %3147 = vmatpush2.bf16.msra.mxu0 0
    %3148 = vmatprep.subr.bf16.mxu0 0
    %3149 = vmatpush2.bf16.msra.mxu0 0
    %3150 = vmatprep.subr.bf16.mxu0 0
    %3151 = vmatpush2.bf16.msra.mxu0 0
    %3152 = vmatprep.subr.bf16.mxu0 0
    %3153 = vmatpush2.bf16.msra.mxu0 0
    %3154 = vmatprep.subr.bf16.mxu0 0
    %3155 = vmatpush2.bf16.msra.mxu0 0
    %3156 = vmatprep.mubr.bf16.mxu0 0
    %3157 = vmatmul.mubr.bf16.gmra.mxu0 %v3052
    %v3158 = vpop.f32.mrf.mxu0
    %v3159 = vadd.f32 %v3074, %v3158
    %v3160 = vpop.f32.mrf.mxu0
    %v3161 = vpop.f32.mrf.mxu0
    %v3162 = vpop.f32.mrf.mxu0
    %3163 = vdwg.mxu0
    %3164 = vst [vmem:[#allocation11] sm:$0xff] %v3159
    // Predicated region
    $region74: #{tpu_custom_call.1} parent=1 // pred_check
      _
    $region75: #{tpu_custom_call.1} parent=1 // pred_check_branch
      %3166 = sbr.rel (0) target = $region77
    $region76: #{tpu_custom_call.1} parent=1 // pred_region
      %s3168 = ssub.s32 128, 128
      %3169 = vsyncadd [#allocation4], %s3168
      %s3171 = sshll.u32 [#allocation11], 4
      %s3172 = int_to_ptr.vmem [resolvable:$true] %s3171
      %3174 = dma.vmem_to_hbm [thread:$0]  %s3172, 128, %s13, [#allocation4]
    $region77: #{tpu_custom_call.1} parent=1 // pred_fallthru
      _
    // Predicated region
    $region78: #{tpu_custom_call.1} parent=1 // pred_check
      _
    $region79: #{tpu_custom_call.1} parent=1 // pred_check_branch
      %3176 = sbr.rel (0) target = $region81
    $region80: #{tpu_custom_call.1} parent=1 // pred_region
      %3177 = dma.done [#allocation4], 128
    $region81: #{tpu_custom_call.1} parent=1 // pred_fallthru
      _
    %3178 = vsyncpa [#allocation3], 1
    %3179 = vsyncpa [#allocation6], 1
    %3180 = vsyncpa [#allocation9], 1
    %3181 = vsyncpa [#allocation4], 1

</llo_original>
